<compile_context>
chip_gen: v7x
topology: tpu7x:2x2x1
jax: 0.10.0
libtpu: 0.0.40
codegen_flags: <defaults>
</compile_context>

<pallas_src>
import functools

import jax
import jax.numpy as jnp
from jax.experimental import pallas as pl
from jax.experimental.pallas import tpu as pltpu

BN_EPS = 1e-5
LANE = 128
F32 = jnp.float32
BF16 = jnp.bfloat16


def _round_up(x, m):
    return (x + m - 1) // m * m


def _relu6(x):
    return jnp.minimum(jnp.maximum(x, 0.0), 6.0)


def _partial_stats(h):
    """Per-tile (sum, sumsq) over rows -> (2, C)."""
    return jnp.concatenate([jnp.sum(h, axis=0, keepdims=True),
                            jnp.sum(h * h, axis=0, keepdims=True)], axis=0)


def _bn_fold(stats, gamma, beta, inv_m):
    """(T,2,C) partial stats -> folded per-channel scale/shift, each (1,C)."""
    tot = jnp.sum(stats, axis=0)                        # (2, C)
    mean = tot[0:1] * inv_m
    # NOTE: E[x^2] - E[x]^2 (clamped); fine for O(1)-scale activations.
    var = jnp.maximum(tot[1:2] * inv_m - mean * mean, 0.0)
    scale = gamma * jax.lax.rsqrt(var + BN_EPS)
    shift = beta - mean * scale
    return scale, shift


# --------------------------------------------------------------------------- #
# Kernels
# --------------------------------------------------------------------------- #

def _conv1_kernel(x_ref, w1_ref, h_ref, stats_ref):
    """1x1 conv (bf16 MXU matmul) + BN1 partial stats of the stored bf16 value."""
    h = jnp.dot(x_ref[...], w1_ref[...], preferred_element_type=F32)
    hb = h.astype(BF16)
    h_ref[...] = hb
    stats_ref[...] = _partial_stats(hb.astype(F32))


def _conv2_kernel(h1_ref, prev_ref, next_ref, st1_ref, g1_ref, b1_ref, w2_ref,
                  h2_ref, stats_ref, *, L, inv_m):
    """BN1+ReLU6, k=3 conv as ONE fused (TM,3P)x(3P,P) matmul, BN2 stats.

    The 1-position halo comes from boundary blocks of h1 (prev_ref last row /
    next_ref first row); Conv1d zero padding is reproduced by masking rows whose
    position within a batch element is 0 / L-1.
    """
    sc1, sh1 = _bn_fold(st1_ref[...], g1_ref[...], b1_ref[...], inv_m)
    a = _relu6(h1_ref[...].astype(F32) * sc1 + sh1)                  # (TM, P) f32
    TM = a.shape[0]

    ridx = jax.lax.broadcasted_iota(jnp.int32, (TM, 1), 0)           # row in tile
    pos = (ridx + pl.program_id(0) * TM) % L                         # pos in sequence

    prev_row = _relu6(prev_ref[prev_ref.shape[0] - 1:, :].astype(F32) * sc1 + sh1)
    next_row = _relu6(next_ref[0:1, :].astype(F32) * sc1 + sh1)

    a_prev = jnp.where(ridx == 0, prev_row, pltpu.roll(a, shift=1, axis=0))
    a_prev = jnp.where(pos != 0, a_prev, 0.0)
    a_next = jnp.where(ridx == TM - 1, next_row, pltpu.roll(a, shift=TM - 1, axis=0))
    a_next = jnp.where(pos != L - 1, a_next, 0.0)

    stacked = jnp.concatenate(
        [a_prev.astype(BF16), a.astype(BF16), a_next.astype(BF16)], axis=1)
    h2 = jnp.dot(stacked, w2_ref[...], preferred_element_type=F32)
    hb = h2.astype(BF16)
    h2_ref[...] = hb
    stats_ref[...] = _partial_stats(hb.astype(F32))


def _conv3_kernel(h2_ref, st2_ref, g2_ref, b2_ref, w3_ref, h3_ref, stats_ref,
                  *, inv_m):
    """BN2+ReLU6, conv3 (1x1), BN3 partial stats."""
    sc2, sh2 = _bn_fold(st2_ref[...], g2_ref[...], b2_ref[...], inv_m)
    a = _relu6(h2_ref[...].astype(F32) * sc2 + sh2)
    h3 = jnp.dot(a.astype(BF16), w3_ref[...], preferred_element_type=F32)
    hb = h3.astype(BF16)
    h3_ref[...] = hb
    stats_ref[...] = _partial_stats(hb.astype(F32))


def _gate_kernel(h3_ref, x_ref, st3_ref, g3_ref, b3_ref, watt_ref, batt_ref,
                 o_ref, *, inv_m):
    """BN3 + attention gate + residual add + ReLU6."""
    sc3, sh3 = _bn_fold(st3_ref[...], g3_ref[...], b3_ref[...], inv_m)
    o3 = h3_ref[...].astype(F32) * sc3 + sh3                         # (TM, C4) f32
    # Attention matvec as VPU multiply + lane reduce (width-1 MXU wastes lanes).
    z = jnp.sum(o3 * watt_ref[...], axis=-1, keepdims=True) + batt_ref[0, 0]
    att = pl.reciprocal(1.0 + jnp.exp(-z), approx=True)              # sigmoid via EUP
    out = o3 * att + x_ref[...].astype(F32)                          # downsample=None
    o_ref[...] = _relu6(out).astype(o_ref.dtype)


# --------------------------------------------------------------------------- #
# Wrapper helpers
# --------------------------------------------------------------------------- #

def _vmem_limit_bytes():
    """Generation-aware VMEM limit (~half of physical, conservative fallback)."""
    cap = 64 * 1024 * 1024            # conservative default == v7x physical VMEM/TC
    try:
        info = pltpu.get_tpu_info()
        cap = int(getattr(info, "vmem_capacity_bytes", cap)) or cap
    except Exception:                 # detection failed -> keep conservative default
        pass
    return max(min(cap // 2, 64 * 1024 * 1024), 16 * 1024 * 1024)


def _max_rows_from_vmem(vmem_limit, Cin_pad, P_pad, C4_pad):
    """Cap the row tile so the worst stage (double-buffered blocks + temps) fits."""
    s1 = 4 * Cin_pad + 14 * P_pad
    s2 = 40 * P_pad
    s3 = 10 * P_pad + 18 * C4_pad
    s4 = 28 * C4_pad
    per_row = max(s1, s2, s3, s4)
    weights = 2 * 2 * (Cin_pad * P_pad + 3 * P_pad * P_pad + P_pad * C4_pad)
    budget = int(vmem_limit * 0.8) - weights
    return max(16, (budget // per_row) // 16 * 16)


def _pick_row_tile(M, max_rows):
    """Largest TM with TM % 16 == 0, TM | M, TM <= max_rows; prefer >=2 (even) tiles
    so v7x can shard the grid over both TensorCores.  Fallback: one full tile."""
    max_rows = max(16, min(int(max_rows), M))
    cands = [d for d in range(16, max_rows + 1, 16) if M % d == 0]
    if not cands:
        return M                      # single full-extent tile (always legal)
    multi = [d for d in cands if M // d >= 2]
    if multi:
        even = [d for d in multi if (M // d) % 2 == 0]
        return max(even) if even else max(multi)
    return max(cands)


def _prepare_params(params, planes, inplanes):
    """Pad channel dims to lane multiples; matmul weights bf16, BN/att params f32."""
    P, C4 = planes, 4 * planes
    P_pad = _round_up(P, LANE)
    C4_pad = _round_up(C4, LANE)
    Cin_pad = _round_up(inplanes, LANE)

    def padw(w, r, c):
        w = w.astype(F32)
        return jnp.pad(w, ((0, r - w.shape[0]), (0, c - w.shape[1]))).astype(BF16)

    def padv(v, c):
        v = v.astype(F32).reshape(1, -1)
        return jnp.pad(v, ((0, 0), (0, c - v.shape[1])))

    w2 = jnp.concatenate([padw(params["w2"][k], P_pad, P_pad) for k in range(3)],
                         axis=0)                                     # (3*P_pad, P_pad)
    pp = dict(
        w1=padw(params["w1"], Cin_pad, P_pad),
        w2=w2,
        w3=padw(params["w3"], P_pad, C4_pad),
        watt=padv(params["watt"], C4_pad),                           # (1, C4_pad) f32
        batt=params["batt"].astype(F32).reshape(1, 1),
        g1=padv(params["g1"], P_pad), b1=padv(params["b1"], P_pad),
        g2=padv(params["g2"], P_pad), b2=padv(params["b2"], P_pad),
        g3=padv(params["g3"], C4_pad), b3=padv(params["b3"], C4_pad),
    )
    return pp, Cin_pad, P_pad, C4_pad


# --------------------------------------------------------------------------- #
# Forward
# --------------------------------------------------------------------------- #

def bottleneck_forward(x_ncl, params, *, planes, max_rows_per_tile=None):
    """x_ncl: (N, Cin, L) with Cin == 4*planes (stride=1, downsample=None)."""
    N, Cin, L = x_ncl.shape
    assert Cin == 4 * planes, "no downsample => inplanes must equal planes*expansion"
    C4 = 4 * planes
    M = N * L
    assert M >= 8, "need at least 8 (batch * length) rows"

    pp, Cin_pad, P_pad, C4_pad = _prepare_params(params, planes, Cin)
    assert Cin_pad == C4_pad

    vmem_limit = _vmem_limit_bytes()
    if max_rows_per_tile is None:
        max_rows_per_tile = _max_rows_from_vmem(vmem_limit, Cin_pad, P_pad, C4_pad)
    TM = _pick_row_tile(M, max_rows_per_tile)
    T = M // TM
    inv_m = 1.0 / float(M)

    # NCL -> channels-last bf16 slab (M, Cin_pad); one copy serves both the
    # stage-1 input and the stage-4 residual (half the bytes of f32).
    x2d = jnp.pad(
        jnp.transpose(x_ncl, (0, 2, 1)).reshape(M, Cin).astype(BF16),
        ((0, 0), (0, Cin_pad - Cin)))

    cp = pltpu.CompilerParams(dimension_semantics=("parallel",),
                              vmem_limit_bytes=int(vmem_limit))

    row_spec = lambda c: pl.BlockSpec((TM, c), lambda i: (i, 0))
    full_spec = lambda r, c: pl.BlockSpec((r, c), lambda i: (0, 0))
    vec_spec = lambda c: pl.BlockSpec((1, c), lambda i: (0, 0))
    stats_in_spec = lambda c: pl.BlockSpec((T, 2, c), lambda i: (0, 0, 0))
    stats_out_spec = lambda c: pl.BlockSpec((None, 2, c), lambda i: (i, 0, 0))
    stats_shape = lambda c: jax.ShapeDtypeStruct((T, 2, c), F32)

    # 1-row halo for the k=3 conv: 16-row boundary blocks of h1 (bf16-tile aligned),
    # clamped at the array edges -- the position masks discard clamped contents.
    if T > 1:
        nb = TM // 16
        last_blk = M // 16 - 1
        prev_spec = pl.BlockSpec((16, P_pad),
                                 lambda i: (jnp.maximum(i * nb - 1, 0), 0))
        next_spec = pl.BlockSpec((16, P_pad),
                                 lambda i: (jnp.minimum((i + 1) * nb, last_blk), 0))
    else:
        # Single-tile fallback: halo rows are never used (masked), reuse the center.
        prev_spec = row_spec(P_pad)
        next_spec = row_spec(P_pad)

    # --- stage 1: conv1 (1x1) + BN1 partial stats -----------------------------
    h1, st1 = pl.pallas_call(
        _conv1_kernel,
        grid=(T,),
        out_shape=(jax.ShapeDtypeStruct((M, P_pad), BF16), stats_shape(P_pad)),
        in_specs=[row_spec(Cin_pad), full_spec(Cin_pad, P_pad)],
        out_specs=(row_spec(P_pad), stats_out_spec(P_pad)),
        compiler_params=cp,
    )(x2d, pp["w1"])

    # --- stage 2: BN1 + ReLU6 + conv2 (k=3, fused matmul) + BN2 stats ---------
    h2, st2 = pl.pallas_call(
        functools.partial(_conv2_kernel, L=L, inv_m=inv_m),
        grid=(T,),
        out_shape=(jax.ShapeDtypeStruct((M, P_pad), BF16), stats_shape(P_pad)),
        in_specs=[row_spec(P_pad), prev_spec, next_spec,
                  stats_in_spec(P_pad), vec_spec(P_pad), vec_spec(P_pad),
                  full_spec(3 * P_pad, P_pad)],
        out_specs=(row_spec(P_pad), stats_out_spec(P_pad)),
        compiler_params=cp,
    )(h1, h1, h1, st1, pp["g1"], pp["b1"], pp["w2"])

    # --- stage 3: BN2 + ReLU6 + conv3 (1x1) + BN3 stats -----------------------
    h3, st3 = pl.pallas_call(
        functools.partial(_conv3_kernel, inv_m=inv_m),
        grid=(T,),
        out_shape=(jax.ShapeDtypeStruct((M, C4_pad), BF16), stats_shape(C4_pad)),
        in_specs=[row_spec(P_pad), stats_in_spec(P_pad),
                  vec_spec(P_pad), vec_spec(P_pad),
                  full_spec(P_pad, C4_pad)],
        out_specs=(row_spec(C4_pad), stats_out_spec(C4_pad)),
        compiler_params=cp,
    )(h2, st2, pp["g2"], pp["b2"], pp["w3"])

    # --- stage 4: BN3 + attention gate + residual + ReLU6 ---------------------
    out2d = pl.pallas_call(
        functools.partial(_gate_kernel, inv_m=inv_m),
        grid=(T,),
        out_shape=jax.ShapeDtypeStruct((M, C4_pad), F32),
        in_specs=[row_spec(C4_pad), row_spec(Cin_pad),
                  stats_in_spec(C4_pad), vec_spec(C4_pad), vec_spec(C4_pad),
                  vec_spec(C4_pad),
                  pl.BlockSpec(memory_space=pltpu.MemorySpace.SMEM)],
        out_specs=row_spec(C4_pad),
        compiler_params=cp,
    )(h3, x2d, st3, pp["g3"], pp["b3"], pp["watt"], pp["batt"])

    return out2d[:, :C4].reshape(N, L, C4).transpose(0, 2, 1)        # back to NCL


# --------------------------------------------------------------------------- #
# Params, pure-JAX reference, demo
# --------------------------------------------------------------------------- #

def init_params(key, planes, inplanes):
    p = planes
    k1, k2, k3, k4 = jax.random.split(key, 4)
    f32 = jnp.float32
    return {
        # conv weights in matmul layout (Cin, Cout); torch layout is (Cout, Cin, K).
        "w1": jax.random.normal(k1, (inplanes, p), f32) * 0.1,
        "w2": jax.random.normal(k2, (3, p, p), f32) * 0.1,
        "w3": jax.random.normal(k3, (p, 4 * p), f32) * 0.1,
        "watt": jax.random.normal(k4, (4 * p, 1), f32) * 0.1,
        "batt": jnp.full((1, 1), 0.05, f32),
        # BatchNorm affine params (PyTorch default init: gamma=1, beta=0).
        "g1": jnp.ones((1, p), f32), "b1": jnp.zeros((1, p), f32),
        "g2": jnp.ones((1, p), f32), "b2": jnp.zeros((1, p), f32),
        "g3": jnp.ones((1, 4 * p), f32), "b3": jnp.zeros((1, 4 * p), f32),
    }


def _reference_forward(x_ncl, params, planes):
    """Pure-JAX reference mirroring the kernels' bf16 storage/matmul convention."""
    N, Cin, L = x_ncl.shape
    P, C4 = planes, 4 * planes
    M = N * L
    rt = lambda t: t.astype(jnp.bfloat16).astype(jnp.float32)   # bf16 round-trip
    x2d = rt(jnp.transpose(x_ncl, (0, 2, 1)).reshape(M, Cin))

    def mm(a, b):
        return jnp.dot(a.astype(jnp.bfloat16), b.astype(jnp.bfloat16),
                       preferred_element_type=jnp.float32)

    def bn(h, g, b):
        mean = jnp.mean(h, axis=0, keepdims=True)
        var = jnp.mean((h - mean) ** 2, axis=0, keepdims=True)
        return (h - mean) * jax.lax.rsqrt(var + BN_EPS) * g + b

    relu6 = lambda v: jnp.clip(v, 0.0, 6.0)

    h1 = rt(mm(x2d, params["w1"]))
    a1 = relu6(bn(h1, params["g1"], params["b1"]))
    a1_3 = a1.reshape(N, L, P)
    a_prev = jnp.pad(a1_3, ((0, 0), (1, 0), (0, 0)))[:, :L, :].reshape(M, P)
    a_next = jnp.pad(a1_3, ((0, 0), (0, 1), (0, 0)))[:, 1:, :].reshape(M, P)
    h2 = rt(mm(a_prev, params["w2"][0]) + mm(a1, params["w2"][1])
            + mm(a_next, params["w2"][2]))
    a2 = relu6(bn(h2, params["g2"], params["b2"]))
    h3 = rt(mm(a2, params["w3"]))
    o3 = bn(h3, params["g3"], params["b3"])
    z = jnp.dot(o3, params["watt"].astype(jnp.float32)) + params["batt"]
    out = relu6(o3 * jax.nn.sigmoid(z) + x2d)
    return out.reshape(N, L, C4).transpose(0, 2, 1)


if __name__ == "__main__":
    planes = 8
    inplanes = planes * 4          # 32, required so the residual add is shape-consistent
    N, L = 4, 64                   # M = 256 rows -> auto-picked TM=128, grid of 2 tiles

    key = jax.random.PRNGKey(0)
    kx, kp = jax.random.split(key)
    x = jax.random.normal(kx, (N, inplanes, L), jnp.float32)     # NCL, like torch
    params = init_params(kp, planes, inplanes)

    fwd = jax.jit(functools.partial(bottleneck_forward, planes=planes))
    out = jax.block_until_ready(fwd(x, params))

    assert out.shape == (N, planes * 4, L), out.shape
    assert bool(jnp.all(jnp.isfinite(out)))
    assert bool(jnp.all(out >= 0.0)) and bool(jnp.all(out <= 6.0))   # ReLU6 range

    ref = _reference_forward(x, params, planes)
    max_diff = float(jnp.max(jnp.abs(out - ref)))
    assert max_diff < 5e-2, f"mismatch vs reference: {max_diff}"

    print("KERNEL_OK")
</pallas_src>

<mosaic_0001>
module attributes {stable_mosaic.version = 11 : i64} {
  func.func @_conv1_kernel(%arg0: i32, %arg1: memref<128x128xbf16, #tpu.memory_space<vmem>>, %arg2: memref<128x128xbf16, #tpu.memory_space<vmem>>, %arg3: memref<128x128xbf16, #tpu.memory_space<vmem>>, %arg4: memref<1x2x128xf32, #tpu.memory_space<vmem>>) attributes {dimension_semantics = [#tpu.dimension_semantics<parallel>], iteration_bounds = array<i64: 2>, scalar_prefetch = 0 : i64, scratch_operands = 0 : i64, tpu.core_type = #tpu.core_type<tc>, window_params = [{transform_indices = @transform_0, window_bounds = array<i64: 128, 128>}, {pipeline_mode = #tpu.pipeline_mode<synchronous>, transform_indices = @transform_1, window_bounds = array<i64: 128, 128>}, {transform_indices = @transform_2, window_bounds = array<i64: 128, 128>}, {transform_indices = @transform_3, window_bounds = array<i64: 1, 2, 128>}]} {
    %c0 = arith.constant 0 : index
    %c0_0 = arith.constant 0 : index
    %0 = vector.load %arg1[%c0, %c0_0] : memref<128x128xbf16, #tpu.memory_space<vmem>>, vector<128x128xbf16>
    %c0_1 = arith.constant 0 : index
    %c0_2 = arith.constant 0 : index
    %1 = vector.load %arg2[%c0_1, %c0_2] : memref<128x128xbf16, #tpu.memory_space<vmem>>, vector<128x128xbf16>
    %cst = arith.constant dense<0.000000e+00> : vector<128x128xf32>
    %2 = tpu.matmul %0, %1, %cst {dimension_numbers = #tpu.dot_dimension_numbers<[1], [0], [0], [1], [0, 0, 1, 1], [], []>} : vector<128x128xbf16>, vector<128x128xbf16>, vector<128x128xf32> -> vector<128x128xf32>
    %3 = arith.truncf %2 : vector<128x128xf32> to vector<128x128xbf16>
    %c0_3 = arith.constant 0 : index
    %c0_4 = arith.constant 0 : index
    %4 = vector.load %arg3[%c0_3, %c0_4] : memref<128x128xbf16, #tpu.memory_space<vmem>>, vector<128x128xbf16>
    tpu.vector_store %arg3[%c0_3, %c0_4], %3 {strides = array<i32>} : memref<128x128xbf16, #tpu.memory_space<vmem>>, vector<128x128xbf16>,
    %5 = arith.extf %3 : vector<128x128xbf16> to vector<128x128xf32>
    %cst_5 = arith.constant dense<0.000000e+00> : vector<128xf32>
    %6 = vector.multi_reduction <add>, %5, %cst_5 [0] : vector<128x128xf32> to vector<128xf32>
    %7 = vector.shape_cast %6 : vector<128xf32> to vector<1x128xf32>
    %8 = arith.mulf %5, %5 : vector<128x128xf32>
    %cst_6 = arith.constant dense<0.000000e+00> : vector<128xf32>
    %9 = vector.multi_reduction <add>, %8, %cst_6 [0] : vector<128x128xf32> to vector<128xf32>
    %10 = vector.shape_cast %9 : vector<128xf32> to vector<1x128xf32>
    %11 = tpu.concatenate %7, %10 in 0 : vector<1x128xf32>, vector<1x128xf32> -> vector<2x128xf32>
    %c0_7 = arith.constant 0 : index
    %c0_8 = arith.constant 0 : index
    %c0_9 = arith.constant 0 : index
    %12 = vector.load %arg4[%c0_7, %c0_8, %c0_9] : memref<1x2x128xf32, #tpu.memory_space<vmem>>, vector<1x2x128xf32>
    %13 = vector.shape_cast %12 : vector<1x2x128xf32> to vector<2x128xf32>
    %14 = vector.shape_cast %11 : vector<2x128xf32> to vector<1x2x128xf32>
    tpu.vector_store %arg4[%c0_7, %c0_8, %c0_9], %14 {strides = array<i32>} : memref<1x2x128xf32, #tpu.memory_space<vmem>>, vector<1x2x128xf32>,
    return
  }
  func.func @transform_0(%arg0: i32) -> (i32, i32) {
    %c0_i32 = arith.constant 0 : i32
    %c0_i32_0 = arith.constant 0 : i32
    return %arg0, %c0_i32 : i32, i32
  }
  func.func @transform_1(%arg0: i32) -> (i32, i32) {
    %c0_i32 = arith.constant 0 : i32
    %c0_i32_0 = arith.constant 0 : i32
    %c0_i32_1 = arith.constant 0 : i32
    return %c0_i32, %c0_i32_0 : i32, i32
  }
  func.func @transform_2(%arg0: i32) -> (i32, i32) {
    %c0_i32 = arith.constant 0 : i32
    %c0_i32_0 = arith.constant 0 : i32
    return %arg0, %c0_i32 : i32, i32
  }
  func.func @transform_3(%arg0: i32) -> (i32, i32, i32) {
    %c0_i32 = arith.constant 0 : i32
    %c0_i32_0 = arith.constant 0 : i32
    %c0_i32_1 = arith.constant 0 : i32
    return %arg0, %c0_i32, %c0_i32_0 : i32, i32, i32
  }
}

module attributes {stable_mosaic.version = 11 : i64} {
  func.func @_conv3_kernel(%arg0: i32, %arg1: memref<128x128xbf16, #tpu.memory_space<vmem>>, %arg2: memref<2x2x128xf32, #tpu.memory_space<vmem>>, %arg3: memref<1x128xf32, #tpu.memory_space<vmem>>, %arg4: memref<1x128xf32, #tpu.memory_space<vmem>>, %arg5: memref<128x128xbf16, #tpu.memory_space<vmem>>, %arg6: memref<128x128xbf16, #tpu.memory_space<vmem>>, %arg7: memref<1x2x128xf32, #tpu.memory_space<vmem>>) attributes {dimension_semantics = [#tpu.dimension_semantics<parallel>], iteration_bounds = array<i64: 2>, scalar_prefetch = 0 : i64, scratch_operands = 0 : i64, tpu.core_type = #tpu.core_type<tc>, window_params = [{transform_indices = @transform_0, window_bounds = array<i64: 128, 128>}, {pipeline_mode = #tpu.pipeline_mode<synchronous>, transform_indices = @transform_1, window_bounds = array<i64: 2, 2, 128>}, {pipeline_mode = #tpu.pipeline_mode<synchronous>, transform_indices = @transform_2, window_bounds = array<i64: 1, 128>}, {pipeline_mode = #tpu.pipeline_mode<synchronous>, transform_indices = @transform_3, window_bounds = array<i64: 1, 128>}, {pipeline_mode = #tpu.pipeline_mode<synchronous>, transform_indices = @transform_4, window_bounds = array<i64: 128, 128>}, {transform_indices = @transform_5, window_bounds = array<i64: 128, 128>}, {transform_indices = @transform_6, window_bounds = array<i64: 1, 2, 128>}]} {
    %c0 = arith.constant 0 : index
    %c0_0 = arith.constant 0 : index
    %c0_1 = arith.constant 0 : index
    %0 = vector.load %arg2[%c0, %c0_0, %c0_1] : memref<2x2x128xf32, #tpu.memory_space<vmem>>, vector<2x2x128xf32>
    %c0_2 = arith.constant 0 : index
    %c0_3 = arith.constant 0 : index
    %1 = vector.load %arg3[%c0_2, %c0_3] : memref<1x128xf32, #tpu.memory_space<vmem>>, vector<1x128xf32>
    %c0_4 = arith.constant 0 : index
    %c0_5 = arith.constant 0 : index
    %2 = vector.load %arg4[%c0_4, %c0_5] : memref<1x128xf32, #tpu.memory_space<vmem>>, vector<1x128xf32>
    %cst = arith.constant dense<0.000000e+00> : vector<2x128xf32>
    %3 = vector.multi_reduction <add>, %0, %cst [0] : vector<2x2x128xf32> to vector<2x128xf32>
    %4 = vector.extract_strided_slice %3 {offsets = [0, 0], sizes = [1, 128], strides = [1, 1]} : vector<2x128xf32> to vector<1x128xf32>
    %cst_6 = arith.constant 3.906250e-03 : f32
    %5 = vector.broadcast %cst_6 : f32 to vector<1x128xf32>
    %6 = arith.mulf %4, %5 : vector<1x128xf32>
    %7 = vector.extract_strided_slice %3 {offsets = [1, 0], sizes = [1, 128], strides = [1, 1]} : vector<2x128xf32> to vector<1x128xf32>
    %cst_7 = arith.constant 3.906250e-03 : f32
    %8 = vector.broadcast %cst_7 : f32 to vector<1x128xf32>
    %9 = arith.mulf %7, %8 : vector<1x128xf32>
    %10 = arith.mulf %6, %6 : vector<1x128xf32>
    %11 = arith.subf %9, %10 : vector<1x128xf32>
    %cst_8 = arith.constant 0.000000e+00 : f32
    %12 = vector.broadcast %cst_8 : f32 to vector<1x128xf32>
    %13 = arith.maximumf %11, %12 : vector<1x128xf32>
    %cst_9 = arith.constant 9.99999974E-6 : f32
    %14 = vector.broadcast %cst_9 : f32 to vector<1x128xf32>
    %15 = arith.addf %13, %14 : vector<1x128xf32>
    %16 = math.rsqrt %15 : vector<1x128xf32>
    %17 = arith.mulf %1, %16 : vector<1x128xf32>
    %18 = arith.mulf %6, %17 : vector<1x128xf32>
    %19 = arith.subf %2, %18 : vector<1x128xf32>
    %c0_10 = arith.constant 0 : index
    %c0_11 = arith.constant 0 : index
    %20 = vector.load %arg1[%c0_10, %c0_11] : memref<128x128xbf16, #tpu.memory_space<vmem>>, vector<128x128xbf16>
    %21 = arith.extf %20 : vector<128x128xbf16> to vector<128x128xf32>
    %22 = vector.broadcast %17 : vector<1x128xf32> to vector<128x128xf32>
    %23 = arith.mulf %21, %22 : vector<128x128xf32>
    %24 = vector.broadcast %19 : vector<1x128xf32> to vector<128x128xf32>
    %25 = arith.addf %23, %24 : vector<128x128xf32>
    %cst_12 = arith.constant 0.000000e+00 : f32
    %26 = vector.broadcast %cst_12 : f32 to vector<128x128xf32>
    %27 = arith.maximumf %25, %26 : vector<128x128xf32>
    %cst_13 = arith.constant 6.000000e+00 : f32
    %28 = vector.broadcast %cst_13 : f32 to vector<128x128xf32>
    %29 = arith.minimumf %27, %28 : vector<128x128xf32>
    %30 = arith.truncf %29 : vector<128x128xf32> to vector<128x128xbf16>
    %c0_14 = arith.constant 0 : index
    %c0_15 = arith.constant 0 : index
    %31 = vector.load %arg5[%c0_14, %c0_15] : memref<128x128xbf16, #tpu.memory_space<vmem>>, vector<128x128xbf16>
    %cst_16 = arith.constant dense<0.000000e+00> : vector<128x128xf32>
    %32 = tpu.matmul %30, %31, %cst_16 {dimension_numbers = #tpu.dot_dimension_numbers<[1], [0], [0], [1], [0, 0, 1, 1], [], []>} : vector<128x128xbf16>, vector<128x128xbf16>, vector<128x128xf32> -> vector<128x128xf32>
    %33 = arith.truncf %32 : vector<128x128xf32> to vector<128x128xbf16>
    %c0_17 = arith.constant 0 : index
    %c0_18 = arith.constant 0 : index
    %34 = vector.load %arg6[%c0_17, %c0_18] : memref<128x128xbf16, #tpu.memory_space<vmem>>, vector<128x128xbf16>
    tpu.vector_store %arg6[%c0_17, %c0_18], %33 {strides = array<i32>} : memref<128x128xbf16, #tpu.memory_space<vmem>>, vector<128x128xbf16>,
    %35 = arith.extf %33 : vector<128x128xbf16> to vector<128x128xf32>
    %cst_19 = arith.constant dense<0.000000e+00> : vector<128xf32>
    %36 = vector.multi_reduction <add>, %35, %cst_19 [0] : vector<128x128xf32> to vector<128xf32>
    %37 = vector.shape_cast %36 : vector<128xf32> to vector<1x128xf32>
    %38 = arith.mulf %35, %35 : vector<128x128xf32>
    %cst_20 = arith.constant dense<0.000000e+00> : vector<128xf32>
    %39 = vector.multi_reduction <add>, %38, %cst_20 [0] : vector<128x128xf32> to vector<128xf32>
    %40 = vector.shape_cast %39 : vector<128xf32> to vector<1x128xf32>
    %41 = tpu.concatenate %37, %40 in 0 : vector<1x128xf32>, vector<1x128xf32> -> vector<2x128xf32>
    %c0_21 = arith.constant 0 : index
    %c0_22 = arith.constant 0 : index
    %c0_23 = arith.constant 0 : index
    %42 = vector.load %arg7[%c0_21, %c0_22, %c0_23] : memref<1x2x128xf32, #tpu.memory_space<vmem>>, vector<1x2x128xf32>
    %43 = vector.shape_cast %42 : vector<1x2x128xf32> to vector<2x128xf32>
    %44 = vector.shape_cast %41 : vector<2x128xf32> to vector<1x2x128xf32>
    tpu.vector_store %arg7[%c0_21, %c0_22, %c0_23], %44 {strides = array<i32>} : memref<1x2x128xf32, #tpu.memory_space<vmem>>, vector<1x2x128xf32>,
    return
  }
  func.func @transform_0(%arg0: i32) -> (i32, i32) {
    %c0_i32 = arith.constant 0 : i32
    %c0_i32_0 = arith.constant 0 : i32
    return %arg0, %c0_i32 : i32, i32
  }
  func.func @transform_1(%arg0: i32) -> (i32, i32, i32) {
    %c0_i32 = arith.constant 0 : i32
    %c0_i32_0 = arith.constant 0 : i32
    %c0_i32_1 = arith.constant 0 : i32
    %c0_i32_2 = arith.constant 0 : i32
    return %c0_i32, %c0_i32_0, %c0_i32_1 : i32, i32, i32
  }
  func.func @transform_2(%arg0: i32) -> (i32, i32) {
    %c0_i32 = arith.constant 0 : i32
    %c0_i32_0 = arith.constant 0 : i32
    %c0_i32_1 = arith.constant 0 : i32
    return %c0_i32, %c0_i32_0 : i32, i32
  }
  func.func @transform_3(%arg0: i32) -> (i32, i32) {
    %c0_i32 = arith.constant 0 : i32
    %c0_i32_0 = arith.constant 0 : i32
    %c0_i32_1 = arith.constant 0 : i32
    return %c0_i32, %c0_i32_0 : i32, i32
  }
  func.func @transform_4(%arg0: i32) -> (i32, i32) {
    %c0_i32 = arith.constant 0 : i32
    %c0_i32_0 = arith.constant 0 : i32
    %c0_i32_1 = arith.constant 0 : i32
    return %c0_i32, %c0_i32_0 : i32, i32
  }
  func.func @transform_5(%arg0: i32) -> (i32, i32) {
    %c0_i32 = arith.constant 0 : i32
    %c0_i32_0 = arith.constant 0 : i32
    return %arg0, %c0_i32 : i32, i32
  }
  func.func @transform_6(%arg0: i32) -> (i32, i32, i32) {
    %c0_i32 = arith.constant 0 : i32
    %c0_i32_0 = arith.constant 0 : i32
    %c0_i32_1 = arith.constant 0 : i32
    return %arg0, %c0_i32, %c0_i32_0 : i32, i32, i32
  }
}

module attributes {stable_mosaic.version = 11 : i64} {
  func.func @_conv2_kernel(%arg0: i32, %arg1: memref<128x128xbf16, #tpu.memory_space<vmem>>, %arg2: memref<16x128xbf16, #tpu.memory_space<vmem>>, %arg3: memref<16x128xbf16, #tpu.memory_space<vmem>>, %arg4: memref<2x2x128xf32, #tpu.memory_space<vmem>>, %arg5: memref<1x128xf32, #tpu.memory_space<vmem>>, %arg6: memref<1x128xf32, #tpu.memory_space<vmem>>, %arg7: memref<384x128xbf16, #tpu.memory_space<vmem>>, %arg8: memref<128x128xbf16, #tpu.memory_space<vmem>>, %arg9: memref<1x2x128xf32, #tpu.memory_space<vmem>>) attributes {dimension_semantics = [#tpu.dimension_semantics<parallel>], iteration_bounds = array<i64: 2>, scalar_prefetch = 0 : i64, scratch_operands = 0 : i64, tpu.core_type = #tpu.core_type<tc>, window_params = [{transform_indices = @transform_0, window_bounds = array<i64: 128, 128>}, {transform_indices = @transform_1, window_bounds = array<i64: 16, 128>}, {transform_indices = @transform_2, window_bounds = array<i64: 16, 128>}, {pipeline_mode = #tpu.pipeline_mode<synchronous>, transform_indices = @transform_3, window_bounds = array<i64: 2, 2, 128>}, {pipeline_mode = #tpu.pipeline_mode<synchronous>, transform_indices = @transform_4, window_bounds = array<i64: 1, 128>}, {pipeline_mode = #tpu.pipeline_mode<synchronous>, transform_indices = @transform_5, window_bounds = array<i64: 1, 128>}, {pipeline_mode = #tpu.pipeline_mode<synchronous>, transform_indices = @transform_6, window_bounds = array<i64: 384, 128>}, {transform_indices = @transform_7, window_bounds = array<i64: 128, 128>}, {transform_indices = @transform_8, window_bounds = array<i64: 1, 2, 128>}]} {
    %c0 = arith.constant 0 : index
    %c0_0 = arith.constant 0 : index
    %c0_1 = arith.constant 0 : index
    %0 = vector.load %arg4[%c0, %c0_0, %c0_1] : memref<2x2x128xf32, #tpu.memory_space<vmem>>, vector<2x2x128xf32>
    %c0_2 = arith.constant 0 : index
    %c0_3 = arith.constant 0 : index
    %1 = vector.load %arg5[%c0_2, %c0_3] : memref<1x128xf32, #tpu.memory_space<vmem>>, vector<1x128xf32>
    %c0_4 = arith.constant 0 : index
    %c0_5 = arith.constant 0 : index
    %2 = vector.load %arg6[%c0_4, %c0_5] : memref<1x128xf32, #tpu.memory_space<vmem>>, vector<1x128xf32>
    %cst = arith.constant dense<0.000000e+00> : vector<2x128xf32>
    %3 = vector.multi_reduction <add>, %0, %cst [0] : vector<2x2x128xf32> to vector<2x128xf32>
    %4 = vector.extract_strided_slice %3 {offsets = [0, 0], sizes = [1, 128], strides = [1, 1]} : vector<2x128xf32> to vector<1x128xf32>
    %cst_6 = arith.constant 3.906250e-03 : f32
    %5 = vector.broadcast %cst_6 : f32 to vector<1x128xf32>
    %6 = arith.mulf %4, %5 : vector<1x128xf32>
    %7 = vector.extract_strided_slice %3 {offsets = [1, 0], sizes = [1, 128], strides = [1, 1]} : vector<2x128xf32> to vector<1x128xf32>
    %cst_7 = arith.constant 3.906250e-03 : f32
    %8 = vector.broadcast %cst_7 : f32 to vector<1x128xf32>
    %9 = arith.mulf %7, %8 : vector<1x128xf32>
    %10 = arith.mulf %6, %6 : vector<1x128xf32>
    %11 = arith.subf %9, %10 : vector<1x128xf32>
    %cst_8 = arith.constant 0.000000e+00 : f32
    %12 = vector.broadcast %cst_8 : f32 to vector<1x128xf32>
    %13 = arith.maximumf %11, %12 : vector<1x128xf32>
    %cst_9 = arith.constant 9.99999974E-6 : f32
    %14 = vector.broadcast %cst_9 : f32 to vector<1x128xf32>
    %15 = arith.addf %13, %14 : vector<1x128xf32>
    %16 = math.rsqrt %15 : vector<1x128xf32>
    %17 = arith.mulf %1, %16 : vector<1x128xf32>
    %18 = arith.mulf %6, %17 : vector<1x128xf32>
    %19 = arith.subf %2, %18 : vector<1x128xf32>
    %c0_10 = arith.constant 0 : index
    %c0_11 = arith.constant 0 : index
    %20 = vector.load %arg1[%c0_10, %c0_11] : memref<128x128xbf16, #tpu.memory_space<vmem>>, vector<128x128xbf16>
    %21 = arith.extf %20 : vector<128x128xbf16> to vector<128x128xf32>
    %22 = vector.broadcast %17 : vector<1x128xf32> to vector<128x128xf32>
    %23 = arith.mulf %21, %22 : vector<128x128xf32>
    %24 = vector.broadcast %19 : vector<1x128xf32> to vector<128x128xf32>
    %25 = arith.addf %23, %24 : vector<128x128xf32>
    %cst_12 = arith.constant 0.000000e+00 : f32
    %26 = vector.broadcast %cst_12 : f32 to vector<128x128xf32>
    %27 = arith.maximumf %25, %26 : vector<128x128xf32>
    %cst_13 = arith.constant 6.000000e+00 : f32
    %28 = vector.broadcast %cst_13 : f32 to vector<128x128xf32>
    %29 = arith.minimumf %27, %28 : vector<128x128xf32>
    %30 = tpu.iota {dimensions = array<i32: 0>} : vector<128x1xi32>
    %c128_i32 = arith.constant 128 : i32
    %31 = arith.muli %arg0, %c128_i32 : i32
    %32 = vector.broadcast %31 : i32 to vector<128x1xi32>
    %33 = arith.addi %30, %32 : vector<128x1xi32>
    %c64_i32 = arith.constant 64 : i32
    %c0_i32 = arith.constant 0 : i32
    %34 = arith.cmpi eq, %c64_i32, %c0_i32 : i32
    %c1_i32 = arith.constant 1 : i32
    %35 = arith.select %34, %c1_i32, %c64_i32 : i32
    %36 = vector.broadcast %35 : i32 to vector<128x1xi32>
    %37 = arith.remsi %33, %36 : vector<128x1xi32>
    %c0_i32_14 = arith.constant 0 : i32
    %38 = vector.broadcast %c0_i32_14 : i32 to vector<128x1xi32>
    %39 = arith.cmpi ne, %37, %38 : vector<128x1xi32>
    %c0_i32_15 = arith.constant 0 : i32
    %40 = vector.broadcast %c0_i32_15 : i32 to vector<128x1xi32>
    %41 = arith.cmpi slt, %37, %40 : vector<128x1xi32>
    %c0_i32_16 = arith.constant 0 : i32
    %42 = arith.cmpi slt, %35, %c0_i32_16 : i32
    %43 = vector.broadcast %42 : i1 to vector<128x1xi1>
    %44 = vector.broadcast %43 : vector<128x1xi1> to vector<128x1xi1>
    %45 = arith.xori %41, %44 : vector<128x1xi1>
    %46 = arith.andi %45, %39 : vector<128x1xi1>
    %47 = vector.broadcast %35 : i32 to vector<128x1xi32>
    %48 = arith.addi %37, %47 : vector<128x1xi32>
    %49 = arith.select %46, %48, %37 : vector<128x1xi1>, vector<128x1xi32>
    %c15 = arith.constant 15 : index
    %c0_17 = arith.constant 0 : index
    %50 = vector.load %arg2[%c15, %c0_17] : memref<16x128xbf16, #tpu.memory_space<vmem>>, vector<1x128xbf16>
    %51 = arith.extf %50 : vector<1x128xbf16> to vector<1x128xf32>
    %52 = arith.mulf %51, %17 : vector<1x128xf32>
    %53 = arith.addf %52, %19 : vector<1x128xf32>
    %cst_18 = arith.constant 0.000000e+00 : f32
    %54 = vector.broadcast %cst_18 : f32 to vector<1x128xf32>
    %55 = arith.maximumf %53, %54 : vector<1x128xf32>
    %cst_19 = arith.constant 6.000000e+00 : f32
    %56 = vector.broadcast %cst_19 : f32 to vector<1x128xf32>
    %57 = arith.minimumf %55, %56 : vector<1x128xf32>
    %c0_20 = arith.constant 0 : index
    %c0_21 = arith.constant 0 : index
    %58 = vector.load %arg3[%c0_20, %c0_21] : memref<16x128xbf16, #tpu.memory_space<vmem>>, vector<1x128xbf16>
    %59 = arith.extf %58 : vector<1x128xbf16> to vector<1x128xf32>
    %60 = arith.mulf %59, %17 : vector<1x128xf32>
    %61 = arith.addf %60, %19 : vector<1x128xf32>
    %cst_22 = arith.constant 0.000000e+00 : f32
    %62 = vector.broadcast %cst_22 : f32 to vector<1x128xf32>
    %63 = arith.maximumf %61, %62 : vector<1x128xf32>
    %cst_23 = arith.constant 6.000000e+00 : f32
    %64 = vector.broadcast %cst_23 : f32 to vector<1x128xf32>
    %65 = arith.minimumf %63, %64 : vector<1x128xf32>
    %c0_i32_24 = arith.constant 0 : i32
    %66 = vector.broadcast %c0_i32_24 : i32 to vector<128x1xi32>
    %67 = arith.cmpi eq, %30, %66 : vector<128x1xi32>
    %c1_i32_25 = arith.constant 1 : i32
    %68 = tpu.dynamic_rotate %29 by %c1_i32_25 dim 0 : vector<128x128xf32>, i32 -> vector<128x128xf32>
    %69 = vector.shape_cast %67 : vector<128x1xi1> to vector<128x1xi1>
    %70 = vector.broadcast %69 : vector<128x1xi1> to vector<128x128xi1>
    %71 = vector.shape_cast %57 : vector<1x128xf32> to vector<1x128xf32>
    %72 = vector.broadcast %71 : vector<1x128xf32> to vector<128x128xf32>
    %73 = arith.select %70, %72, %68 : vector<128x128xi1>, vector<128x128xf32>
    %c0_i32_26 = arith.constant 0 : i32
    %74 = vector.broadcast %c0_i32_26 : i32 to vector<128x1xi32>
    %75 = arith.cmpi ne, %49, %74 : vector<128x1xi32>
    %cst_27 = arith.constant 0.000000e+00 : f32
    %76 = vector.shape_cast %75 : vector<128x1xi1> to vector<128x1xi1>
    %77 = vector.broadcast %76 : vector<128x1xi1> to vector<128x128xi1>
    %78 = vector.broadcast %cst_27 : f32 to vector<128x128xf32>
    %79 = arith.select %77, %73, %78 : vector<128x128xi1>, vector<128x128xf32>
    %c127_i32 = arith.constant 127 : i32
    %80 = vector.broadcast %c127_i32 : i32 to vector<128x1xi32>
    %81 = arith.cmpi eq, %30, %80 : vector<128x1xi32>
    %c127_i32_28 = arith.constant 127 : i32
    %82 = tpu.dynamic_rotate %29 by %c127_i32_28 dim 0 : vector<128x128xf32>, i32 -> vector<128x128xf32>
    %83 = vector.shape_cast %81 : vector<128x1xi1> to vector<128x1xi1>
    %84 = vector.broadcast %83 : vector<128x1xi1> to vector<128x128xi1>
    %85 = vector.shape_cast %65 : vector<1x128xf32> to vector<1x128xf32>
    %86 = vector.broadcast %85 : vector<1x128xf32> to vector<128x128xf32>
    %87 = arith.select %84, %86, %82 : vector<128x128xi1>, vector<128x128xf32>
    %c63_i32 = arith.constant 63 : i32
    %88 = vector.broadcast %c63_i32 : i32 to vector<128x1xi32>
    %89 = arith.cmpi ne, %49, %88 : vector<128x1xi32>
    %cst_29 = arith.constant 0.000000e+00 : f32
    %90 = vector.shape_cast %89 : vector<128x1xi1> to vector<128x1xi1>
    %91 = vector.broadcast %90 : vector<128x1xi1> to vector<128x128xi1>
    %92 = vector.broadcast %cst_29 : f32 to vector<128x128xf32>
    %93 = arith.select %91, %87, %92 : vector<128x128xi1>, vector<128x128xf32>
    %94 = arith.truncf %79 : vector<128x128xf32> to vector<128x128xbf16>
    %95 = arith.truncf %29 : vector<128x128xf32> to vector<128x128xbf16>
    %96 = arith.truncf %93 : vector<128x128xf32> to vector<128x128xbf16>
    %97 = tpu.concatenate %94, %95, %96 in 1 : vector<128x128xbf16>, vector<128x128xbf16>, vector<128x128xbf16> -> vector<128x384xbf16>
    %c0_30 = arith.constant 0 : index
    %c0_31 = arith.constant 0 : index
    %98 = vector.load %arg7[%c0_30, %c0_31] : memref<384x128xbf16, #tpu.memory_space<vmem>>, vector<384x128xbf16>
    %cst_32 = arith.constant dense<0.000000e+00> : vector<128x128xf32>
    %99 = tpu.matmul %97, %98, %cst_32 {dimension_numbers = #tpu.dot_dimension_numbers<[1], [0], [0], [1], [0, 0, 1, 1], [], []>} : vector<128x384xbf16>, vector<384x128xbf16>, vector<128x128xf32> -> vector<128x128xf32>
    %100 = arith.truncf %99 : vector<128x128xf32> to vector<128x128xbf16>
    %c0_33 = arith.constant 0 : index
    %c0_34 = arith.constant 0 : index
    %101 = vector.load %arg8[%c0_33, %c0_34] : memref<128x128xbf16, #tpu.memory_space<vmem>>, vector<128x128xbf16>
    tpu.vector_store %arg8[%c0_33, %c0_34], %100 {strides = array<i32>} : memref<128x128xbf16, #tpu.memory_space<vmem>>, vector<128x128xbf16>,
    %102 = arith.extf %100 : vector<128x128xbf16> to vector<128x128xf32>
    %cst_35 = arith.constant dense<0.000000e+00> : vector<128xf32>
    %103 = vector.multi_reduction <add>, %102, %cst_35 [0] : vector<128x128xf32> to vector<128xf32>
    %104 = vector.shape_cast %103 : vector<128xf32> to vector<1x128xf32>
    %105 = arith.mulf %102, %102 : vector<128x128xf32>
    %cst_36 = arith.constant dense<0.000000e+00> : vector<128xf32>
    %106 = vector.multi_reduction <add>, %105, %cst_36 [0] : vector<128x128xf32> to vector<128xf32>
    %107 = vector.shape_cast %106 : vector<128xf32> to vector<1x128xf32>
    %108 = tpu.concatenate %104, %107 in 0 : vector<1x128xf32>, vector<1x128xf32> -> vector<2x128xf32>
    %c0_37 = arith.constant 0 : index
    %c0_38 = arith.constant 0 : index
    %c0_39 = arith.constant 0 : index
    %109 = vector.load %arg9[%c0_37, %c0_38, %c0_39] : memref<1x2x128xf32, #tpu.memory_space<vmem>>, vector<1x2x128xf32>
    %110 = vector.shape_cast %109 : vector<1x2x128xf32> to vector<2x128xf32>
    %111 = vector.shape_cast %108 : vector<2x128xf32> to vector<1x2x128xf32>
    tpu.vector_store %arg9[%c0_37, %c0_38, %c0_39], %111 {strides = array<i32>} : memref<1x2x128xf32, #tpu.memory_space<vmem>>, vector<1x2x128xf32>,
    return
  }
  func.func @transform_0(%arg0: i32) -> (i32, i32) {
    %c0_i32 = arith.constant 0 : i32
    %c0_i32_0 = arith.constant 0 : i32
    return %arg0, %c0_i32 : i32, i32
  }
  func.func @transform_1(%arg0: i32) -> (i32, i32) {
    %c8_i32 = arith.constant 8 : i32
    %0 = arith.muli %arg0, %c8_i32 : i32
    %c1_i32 = arith.constant 1 : i32
    %1 = arith.subi %0, %c1_i32 : i32
    %c0_i32 = arith.constant 0 : i32
    %2 = arith.maxsi %1, %c0_i32 : i32
    %c0_i32_0 = arith.constant 0 : i32
    %c0_i32_1 = arith.constant 0 : i32
    return %2, %c0_i32_0 : i32, i32
  }
  func.func @transform_2(%arg0: i32) -> (i32, i32) {
    %c1_i32 = arith.constant 1 : i32
    %0 = arith.addi %arg0, %c1_i32 : i32
    %c8_i32 = arith.constant 8 : i32
    %1 = arith.muli %0, %c8_i32 : i32
    %c15_i32 = arith.constant 15 : i32
    %2 = arith.minsi %1, %c15_i32 : i32
    %c0_i32 = arith.constant 0 : i32
    %c0_i32_0 = arith.constant 0 : i32
    return %2, %c0_i32 : i32, i32
  }
  func.func @transform_3(%arg0: i32) -> (i32, i32, i32) {
    %c0_i32 = arith.constant 0 : i32
    %c0_i32_0 = arith.constant 0 : i32
    %c0_i32_1 = arith.constant 0 : i32
    %c0_i32_2 = arith.constant 0 : i32
    return %c0_i32, %c0_i32_0, %c0_i32_1 : i32, i32, i32
  }
  func.func @transform_4(%arg0: i32) -> (i32, i32) {
    %c0_i32 = arith.constant 0 : i32
    %c0_i32_0 = arith.constant 0 : i32
    %c0_i32_1 = arith.constant 0 : i32
    return %c0_i32, %c0_i32_0 : i32, i32
  }
  func.func @transform_5(%arg0: i32) -> (i32, i32) {
    %c0_i32 = arith.constant 0 : i32
    %c0_i32_0 = arith.constant 0 : i32
    %c0_i32_1 = arith.constant 0 : i32
    return %c0_i32, %c0_i32_0 : i32, i32
  }
  func.func @transform_6(%arg0: i32) -> (i32, i32) {
    %c0_i32 = arith.constant 0 : i32
    %c0_i32_0 = arith.constant 0 : i32
    %c0_i32_1 = arith.constant 0 : i32
    return %c0_i32, %c0_i32_0 : i32, i32
  }
  func.func @transform_7(%arg0: i32) -> (i32, i32) {
    %c0_i32 = arith.constant 0 : i32
    %c0_i32_0 = arith.constant 0 : i32
    return %arg0, %c0_i32 : i32, i32
  }
  func.func @transform_8(%arg0: i32) -> (i32, i32, i32) {
    %c0_i32 = arith.constant 0 : i32
    %c0_i32_0 = arith.constant 0 : i32
    %c0_i32_1 = arith.constant 0 : i32
    return %arg0, %c0_i32, %c0_i32_0 : i32, i32, i32
  }
}

module attributes {stable_mosaic.version = 11 : i64} {
  func.func @_gate_kernel(%arg0: i32, %arg1: memref<128x128xbf16, #tpu.memory_space<vmem>>, %arg2: memref<128x128xbf16, #tpu.memory_space<vmem>>, %arg3: memref<2x2x128xf32, #tpu.memory_space<vmem>>, %arg4: memref<1x128xf32, #tpu.memory_space<vmem>>, %arg5: memref<1x128xf32, #tpu.memory_space<vmem>>, %arg6: memref<1x128xf32, #tpu.memory_space<vmem>>, %arg7: memref<1x1xf32, #tpu.memory_space<smem>>, %arg8: memref<128x128xf32, #tpu.memory_space<vmem>>) attributes {dimension_semantics = [#tpu.dimension_semantics<parallel>], iteration_bounds = array<i64: 2>, scalar_prefetch = 0 : i64, scratch_operands = 0 : i64, tpu.core_type = #tpu.core_type<tc>, window_params = [{transform_indices = @transform_0, window_bounds = array<i64: 128, 128>}, {transform_indices = @transform_1, window_bounds = array<i64: 128, 128>}, {pipeline_mode = #tpu.pipeline_mode<synchronous>, transform_indices = @transform_2, window_bounds = array<i64: 2, 2, 128>}, {pipeline_mode = #tpu.pipeline_mode<synchronous>, transform_indices = @transform_3, window_bounds = array<i64: 1, 128>}, {pipeline_mode = #tpu.pipeline_mode<synchronous>, transform_indices = @transform_4, window_bounds = array<i64: 1, 128>}, {pipeline_mode = #tpu.pipeline_mode<synchronous>, transform_indices = @transform_5, window_bounds = array<i64: 1, 128>}, {transform_indices = @transform_6, window_bounds = array<i64: 1, 1>}, {transform_indices = @transform_7, window_bounds = array<i64: 128, 128>}]} {
    %c0 = arith.constant 0 : index
    %c0_0 = arith.constant 0 : index
    %c0_1 = arith.constant 0 : index
    %0 = vector.load %arg3[%c0, %c0_0, %c0_1] : memref<2x2x128xf32, #tpu.memory_space<vmem>>, vector<2x2x128xf32>
    %c0_2 = arith.constant 0 : index
    %c0_3 = arith.constant 0 : index
    %1 = vector.load %arg4[%c0_2, %c0_3] : memref<1x128xf32, #tpu.memory_space<vmem>>, vector<1x128xf32>
    %c0_4 = arith.constant 0 : index
    %c0_5 = arith.constant 0 : index
    %2 = vector.load %arg5[%c0_4, %c0_5] : memref<1x128xf32, #tpu.memory_space<vmem>>, vector<1x128xf32>
    %cst = arith.constant dense<0.000000e+00> : vector<2x128xf32>
    %3 = vector.multi_reduction <add>, %0, %cst [0] : vector<2x2x128xf32> to vector<2x128xf32>
    %4 = vector.extract_strided_slice %3 {offsets = [0, 0], sizes = [1, 128], strides = [1, 1]} : vector<2x128xf32> to vector<1x128xf32>
    %cst_6 = arith.constant 3.906250e-03 : f32
    %5 = vector.broadcast %cst_6 : f32 to vector<1x128xf32>
    %6 = arith.mulf %4, %5 : vector<1x128xf32>
    %7 = vector.extract_strided_slice %3 {offsets = [1, 0], sizes = [1, 128], strides = [1, 1]} : vector<2x128xf32> to vector<1x128xf32>
    %cst_7 = arith.constant 3.906250e-03 : f32
    %8 = vector.broadcast %cst_7 : f32 to vector<1x128xf32>
    %9 = arith.mulf %7, %8 : vector<1x128xf32>
    %10 = arith.mulf %6, %6 : vector<1x128xf32>
    %11 = arith.subf %9, %10 : vector<1x128xf32>
    %cst_8 = arith.constant 0.000000e+00 : f32
    %12 = vector.broadcast %cst_8 : f32 to vector<1x128xf32>
    %13 = arith.maximumf %11, %12 : vector<1x128xf32>
    %cst_9 = arith.constant 9.99999974E-6 : f32
    %14 = vector.broadcast %cst_9 : f32 to vector<1x128xf32>
    %15 = arith.addf %13, %14 : vector<1x128xf32>
    %16 = math.rsqrt %15 : vector<1x128xf32>
    %17 = arith.mulf %1, %16 : vector<1x128xf32>
    %18 = arith.mulf %6, %17 : vector<1x128xf32>
    %19 = arith.subf %2, %18 : vector<1x128xf32>
    %c0_10 = arith.constant 0 : index
    %c0_11 = arith.constant 0 : index
    %20 = vector.load %arg1[%c0_10, %c0_11] : memref<128x128xbf16, #tpu.memory_space<vmem>>, vector<128x128xbf16>
    %21 = arith.extf %20 : vector<128x128xbf16> to vector<128x128xf32>
    %22 = vector.broadcast %17 : vector<1x128xf32> to vector<128x128xf32>
    %23 = arith.mulf %21, %22 : vector<128x128xf32>
    %24 = vector.broadcast %19 : vector<1x128xf32> to vector<128x128xf32>
    %25 = arith.addf %23, %24 : vector<128x128xf32>
    %c0_12 = arith.constant 0 : index
    %c0_13 = arith.constant 0 : index
    %26 = vector.load %arg6[%c0_12, %c0_13] : memref<1x128xf32, #tpu.memory_space<vmem>>, vector<1x128xf32>
    %27 = vector.broadcast %26 : vector<1x128xf32> to vector<128x128xf32>
    %28 = arith.mulf %25, %27 : vector<128x128xf32>
    %cst_14 = arith.constant dense<0.000000e+00> : vector<128xf32>
    %29 = vector.multi_reduction <add>, %28, %cst_14 [1] : vector<128x128xf32> to vector<128xf32>
    %30 = vector.shape_cast %29 : vector<128xf32> to vector<128x1xf32>
    %c0_15 = arith.constant 0 : index
    %c0_16 = arith.constant 0 : index
    %31 = memref.load %arg7[%c0_15, %c0_16] : memref<1x1xf32, #tpu.memory_space<smem>>
    %32 = vector.broadcast %31 : f32 to vector<128x1xf32>
    %33 = arith.addf %30, %32 : vector<128x1xf32>
    %cst_17 = arith.constant 0.000000e+00 : f32
    %34 = vector.broadcast %cst_17 : f32 to vector<128x1xf32>
    %35 = arith.subf %34, %33 : vector<128x1xf32>
    %36 = math.exp %35 : vector<128x1xf32>
    %cst_18 = arith.constant 1.000000e+00 : f32
    %37 = vector.broadcast %cst_18 : f32 to vector<128x1xf32>
    %38 = arith.addf %37, %36 : vector<128x1xf32>
    %39 = tpu.reciprocal %38 {approx = true} : vector<128x1xf32> -> vector<128x1xf32>
    %40 = vector.broadcast %39 : vector<128x1xf32> to vector<128x128xf32>
    %41 = arith.mulf %25, %40 : vector<128x128xf32>
    %c0_19 = arith.constant 0 : index
    %c0_20 = arith.constant 0 : index
    %42 = vector.load %arg2[%c0_19, %c0_20] : memref<128x128xbf16, #tpu.memory_space<vmem>>, vector<128x128xbf16>
    %43 = arith.extf %42 : vector<128x128xbf16> to vector<128x128xf32>
    %44 = arith.addf %41, %43 : vector<128x128xf32>
    %cst_21 = arith.constant 0.000000e+00 : f32
    %45 = vector.broadcast %cst_21 : f32 to vector<128x128xf32>
    %46 = arith.maximumf %44, %45 : vector<128x128xf32>
    %cst_22 = arith.constant 6.000000e+00 : f32
    %47 = vector.broadcast %cst_22 : f32 to vector<128x128xf32>
    %48 = arith.minimumf %46, %47 : vector<128x128xf32>
    %c0_23 = arith.constant 0 : index
    %c0_24 = arith.constant 0 : index
    %49 = vector.load %arg8[%c0_23, %c0_24] : memref<128x128xf32, #tpu.memory_space<vmem>>, vector<128x128xf32>
    tpu.vector_store %arg8[%c0_23, %c0_24], %48 {strides = array<i32>} : memref<128x128xf32, #tpu.memory_space<vmem>>, vector<128x128xf32>,
    return
  }
  func.func @transform_0(%arg0: i32) -> (i32, i32) {
    %c0_i32 = arith.constant 0 : i32
    %c0_i32_0 = arith.constant 0 : i32
    return %arg0, %c0_i32 : i32, i32
  }
  func.func @transform_1(%arg0: i32) -> (i32, i32) {
    %c0_i32 = arith.constant 0 : i32
    %c0_i32_0 = arith.constant 0 : i32
    return %arg0, %c0_i32 : i32, i32
  }
  func.func @transform_2(%arg0: i32) -> (i32, i32, i32) {
    %c0_i32 = arith.constant 0 : i32
    %c0_i32_0 = arith.constant 0 : i32
    %c0_i32_1 = arith.constant 0 : i32
    %c0_i32_2 = arith.constant 0 : i32
    return %c0_i32, %c0_i32_0, %c0_i32_1 : i32, i32, i32
  }
  func.func @transform_3(%arg0: i32) -> (i32, i32) {
    %c0_i32 = arith.constant 0 : i32
    %c0_i32_0 = arith.constant 0 : i32
    %c0_i32_1 = arith.constant 0 : i32
    return %c0_i32, %c0_i32_0 : i32, i32
  }
  func.func @transform_4(%arg0: i32) -> (i32, i32) {
    %c0_i32 = arith.constant 0 : i32
    %c0_i32_0 = arith.constant 0 : i32
    %c0_i32_1 = arith.constant 0 : i32
    return %c0_i32, %c0_i32_0 : i32, i32
  }
  func.func @transform_5(%arg0: i32) -> (i32, i32) {
    %c0_i32 = arith.constant 0 : i32
    %c0_i32_0 = arith.constant 0 : i32
    %c0_i32_1 = arith.constant 0 : i32
    return %c0_i32, %c0_i32_0 : i32, i32
  }
  func.func @transform_6(%arg0: i32) -> (i32, i32) {
    %c0_i32 = arith.constant 0 : i32
    %c0_i32_0 = arith.constant 0 : i32
    %c0_i32_1 = arith.constant 0 : i32
    return %c0_i32, %c0_i32_0 : i32, i32
  }
  func.func @transform_7(%arg0: i32) -> (i32, i32) {
    %c0_i32 = arith.constant 0 : i32
    %c0_i32_0 = arith.constant 0 : i32
    return %arg0, %c0_i32 : i32, i32
  }
}

</mosaic_0001>

<llo_original>
// kernel: bottleneck_forward.4
$region0: #{bottleneck_forward.4}
  #allocation0 [shape = 'u32[]', space=smem, size = 0x4, offset = 0x4, fixed_abs, tag = 'smem constant byte address 0x4 - core index']
  #allocation1 [shape = 'u32[144,128]{1,0:T(1,128)}', space=vmem, size = 0x12000, scoped, tag = 'internal scratch']
  %s0 = inlined_call_operand.vmem [shape: bf16[256,128], index: 0, kind: input, shape index: {}]
  %s1 = inlined_call_operand.vmem [shape: bf16[128,128], index: 1, kind: input, shape index: {}]
  %s2 = inlined_call_operand.vmem [shape: bf16[256,128], index: 2, kind: output, shape index: {0}]
  %s3 = inlined_call_operand.vmem [shape: f32[2,2,128], index: 3, kind: output, shape index: {1}]
  %4 = xla_tuple %s2, %s3
  %s5 = sld [smem:[#allocation0]]
  $region49: #{bottleneck_forward.4} parent=0
    _
  %s7 = ssub.s32 1, %s5
  %s8 = scalar_select 0, %s7, %s5
  loop: start=0, step=1, limit=4
  $region2: #{bottleneck_forward.4} parent=0 // loop_pre_header
    _
  $region3: #{bottleneck_forward.4} parent=0 // loop_header
    %s10 = sphi 0, %s14
    %p11 = scmp.ge.s32.totalorder %s10, 4
    %s20 = sphi 0, %s22
    %s23 = sphi 0, %s20
    %s24 = sphi 0, %s23
    %s40 = sphi 0, %s24
    %s44 = sphi 0, %s44
    %s46 = sphi 0, %s44
    %s47 = sphi 0, %s46
    %s61 = sphi 0, %s47
    %s67 = sphi 0, %s69
    %s70 = sphi 0, %s67
    %s71 = sphi 0, %s70
    %s87 = sphi 0, %s71
    %s93 = sphi 0, %s95
    %s96 = sphi 0, %s93
    %s97 = sphi 0, %s96
    %s113 = sphi 0, %s97
  $region4: #{bottleneck_forward.4} parent=0 // loop_header_branch
    %13 = sbr.rel (%p11) target = $region8
  $region5: #{bottleneck_forward.4} parent=0 // loop_body
    %s15 = ssub.s32 %s10, 1
    %s16 = ssub.s32 %s10, 2
    %s17 = sadd.s32 %s10, 1
    %s18 = ssub.s32 %s10, %s17
    %p19 = scmp.eq.s32.totalorder %s18, 0
    %s21 = sadd.s32 %s20, 1
    %s22 = scalar_select %p19, %s20, %s21
    %p25 = pneg %p19
    %p26 = scmp.eq.s32.totalorder %s10, 1
    %p27 = por %p25, %p26
    %p28 = scmp.ne.s32.totalorder %s20, %s23
    %p29 = scmp.eq.s32.totalorder %s10, 0
    %p30 = por %p28, %p29
    %p31 = scmp.ne.s32.totalorder %s20, %s23
    %p32 = scmp.eq.s32.totalorder %s15, 1
    %p33 = por %p31, %p32
    %p34 = scmp.ne.s32.totalorder %s23, %s24
    %p35 = scmp.eq.s32.totalorder %s15, 0
    %p36 = por %p34, %p35
    %p37 = scmp.ne.s32.totalorder %s23, %s24
    %p38 = scmp.eq.s32.totalorder %s16, 1
    %p39 = por %p37, %p38
    %p41 = scmp.ne.s32.totalorder %s24, %s40
    %p42 = scmp.eq.s32.totalorder %s16, 0
    %p43 = por %p41, %p42
    %s45 = sadd.s32 %s44, 1
    %p48 = scmp.eq.s32.totalorder %s10, 1
    %p49 = scmp.ne.s32.totalorder %s44, %s46
    %p50 = scmp.eq.s32.totalorder %s10, 0
    %p51 = por %p49, %p50
    %p52 = scmp.ne.s32.totalorder %s44, %s46
    %p53 = scmp.eq.s32.totalorder %s15, 1
    %p54 = por %p52, %p53
    %p55 = scmp.ne.s32.totalorder %s46, %s47
    %p56 = scmp.eq.s32.totalorder %s15, 0
    %p57 = por %p55, %p56
    %p58 = scmp.ne.s32.totalorder %s46, %s47
    %p59 = scmp.eq.s32.totalorder %s16, 1
    %p60 = por %p58, %p59
    %p62 = scmp.ne.s32.totalorder %s47, %s61
    %p63 = scmp.eq.s32.totalorder %s16, 0
    %p64 = por %p62, %p63
    %s65 = ssub.s32 %s10, %s17
    %p66 = scmp.eq.s32.totalorder %s65, 0
    %s68 = sadd.s32 %s67, 1
    %s69 = scalar_select %p66, %s67, %s68
    %p72 = pneg %p66
    %p73 = scmp.eq.s32.totalorder %s10, 1
    %p74 = por %p72, %p73
    %p75 = scmp.ne.s32.totalorder %s67, %s70
    %p76 = scmp.eq.s32.totalorder %s10, 0
    %p77 = por %p75, %p76
    %p78 = scmp.ne.s32.totalorder %s67, %s70
    %p79 = scmp.eq.s32.totalorder %s15, 1
    %p80 = por %p78, %p79
    %p81 = scmp.ne.s32.totalorder %s70, %s71
    %p82 = scmp.eq.s32.totalorder %s15, 0
    %p83 = por %p81, %p82
    %p84 = scmp.ne.s32.totalorder %s70, %s71
    %p85 = scmp.eq.s32.totalorder %s16, 1
    %p86 = por %p84, %p85
    %p88 = scmp.ne.s32.totalorder %s71, %s87
    %p89 = scmp.eq.s32.totalorder %s16, 0
    %p90 = por %p88, %p89
    %s91 = ssub.s32 %s10, %s17
    %p92 = scmp.eq.s32.totalorder %s91, 0
    %s94 = sadd.s32 %s93, 1
    %s95 = scalar_select %p92, %s93, %s94
    %p98 = pneg %p92
    %p99 = scmp.eq.s32.totalorder %s10, 1
    %p100 = por %p98, %p99
    %p101 = scmp.ne.s32.totalorder %s93, %s96
    %p102 = scmp.eq.s32.totalorder %s10, 0
    %p103 = por %p101, %p102
    %p104 = scmp.ne.s32.totalorder %s93, %s96
    %p105 = scmp.eq.s32.totalorder %s15, 1
    %p106 = por %p104, %p105
    %p107 = scmp.ne.s32.totalorder %s96, %s97
    %p108 = scmp.eq.s32.totalorder %s15, 0
    %p109 = por %p107, %p108
    %p110 = scmp.ne.s32.totalorder %s96, %s97
    %p111 = scmp.eq.s32.totalorder %s16, 1
    %p112 = por %p110, %p111
    %p114 = scmp.ne.s32.totalorder %s97, %s113
    %p115 = scmp.eq.s32.totalorder %s16, 0
    %p116 = por %p114, %p115
    %p117 = scmp.le.s32.totalorder 1, %s10
    %p118 = scmp.lt.s32.totalorder %s10, 3
    %p119 = pnand %p117, %p118
    %p120 = pneg %p119
    // Predicated region
    $region9: #{bottleneck_forward.4} parent=5 // pred_check
      _
    $region10: #{bottleneck_forward.4} parent=5 // pred_check_branch
      %122 = sbr.rel (%p119) target = $region12
    $region11: #{bottleneck_forward.4} parent=5 // pred_region
      %s123 = ssub.s32 %s10, 1
      // Predicated region
      $region13: #{bottleneck_forward.4} parent=11 // pred_check
        %p124 = pneg %p57
      $region14: #{bottleneck_forward.4} parent=11 // pred_check_branch
        %126 = sbr.rel (%p124) target = $region16
      $region15: #{bottleneck_forward.4} parent=11 // pred_region
        _
      $region16: #{bottleneck_forward.4} parent=11 // pred_fallthru
        _
    $region12: #{bottleneck_forward.4} parent=5 // pred_fallthru
      _
    %p127 = scmp.lt.s32.totalorder %s10, 2
    // Predicated region
    $region17: #{bottleneck_forward.4} parent=5 // pred_check
      %p128 = pneg %p127
    $region18: #{bottleneck_forward.4} parent=5 // pred_check_branch
      %130 = sbr.rel (%p128) target = $region20
    $region19: #{bottleneck_forward.4} parent=5 // pred_region
      // Predicated region
      $region21: #{bottleneck_forward.4} parent=19 // pred_check
        %p131 = pneg %p30
      $region22: #{bottleneck_forward.4} parent=19 // pred_check_branch
        %133 = sbr.rel (%p131) target = $region24
      $region23: #{bottleneck_forward.4} parent=19 // pred_region
        %s134 = smul.u32 16, %s10
        %p135 = scmp.lt.s32.totalorder %s134, 31
        %s136 = scalar_select %p135, %s134, 31
        %s137 = smul.addr %s136, 4
        %s138 = scalar_lea.vmem %s0, %s137
        %s139 = smul.u32 16, %s10
      $region24: #{bottleneck_forward.4} parent=19 // pred_fallthru
        _
    $region20: #{bottleneck_forward.4} parent=5 // pred_fallthru
      _
    %p140 = scmp.le.s32.totalorder 1, %s10
    %p141 = scmp.lt.s32.totalorder %s10, 3
    %p142 = pnand %p140, %p141
    %p143 = pneg %p142
    // Predicated region
    $region25: #{bottleneck_forward.4} parent=5 // pred_check
      _
    $region26: #{bottleneck_forward.4} parent=5 // pred_check_branch
      %145 = sbr.rel (%p142) target = $region28
    $region27: #{bottleneck_forward.4} parent=5 // pred_region
      %s146 = ssub.s32 %s10, 1
      %s147 = smul.u32 16, %s15
      %p148 = scmp.lt.s32.totalorder %s147, 31
      %s149 = scalar_select %p148, %s147, 31
      %s150 = smul.addr %s149, 4
      %s151 = scalar_lea.vmem %s0, %s150
      %p152 = pneg %p36
      %p153 = pneg %p33
      %p154 = pneg %p57
      %p155 = pneg %p54
      %p156 = pneg %p83
      %p157 = pneg %p80
      %s158 = smul.u32 16, %s15
      %p159 = scmp.lt.s32.totalorder %s158, 31
      %s160 = scalar_select %p159, %s158, 31
      %s161 = smul.addr %s160, 4
      %s162 = scalar_lea.vmem %s2, %s161
      %p163 = pneg %p109
      %p164 = pneg %p106
      %p165 = scmp.lt.s32.totalorder %s15, 1
      %s166 = scalar_select %p165, %s15, 1
      %s167 = smul.addr %s166, 2
      %s168 = scalar_lea.vmem %s3, %s167
      %s169 = smul.u32 16, %s15
      %p170 = scmp.lt.s32.totalorder %s169, 31
      %s171 = scalar_select %p170, %s169, 31
      %s172 = smul.addr %s171, 4
      %s173 = scalar_lea.vmem %s0, %s172
      %s174 = smul.u32 16, %s15
      %s175 = smul.u32 16, %s15
      %p176 = scmp.lt.s32.totalorder %s175, 31
      %s177 = scalar_select %p176, %s175, 31
      %s178 = smul.addr %s177, 4
      %s179 = scalar_lea.vmem %s2, %s178
      %s180 = smul.u32 16, %s15
      %p181 = scmp.lt.s32.totalorder %s15, 1
      %s182 = scalar_select %p181, %s15, 1
      %s183 = smul.addr %s182, 2
      %s184 = scalar_lea.vmem %s3, %s183
      %v186 = vld [vmem:[%s173] sm:$0xf]
      %v187 = vld [vmem:[%s173 + $0x4] sm:$0xf]
      %v188 = vld [vmem:[%s173 + $0x8] sm:$0xf]
      %v189 = vld [vmem:[%s173 + $0xc] sm:$0xf]
      %v190 = vld [vmem:[%s173 + $0x10] sm:$0xf]
      %v191 = vld [vmem:[%s173 + $0x14] sm:$0xf]
      %v192 = vld [vmem:[%s173 + $0x18] sm:$0xf]
      %v193 = vld [vmem:[%s173 + $0x1c] sm:$0xf]
      %v194 = vld [vmem:[%s173 + $0x20] sm:$0xf]
      %v195 = vld [vmem:[%s173 + $0x24] sm:$0xf]
      %v196 = vld [vmem:[%s173 + $0x28] sm:$0xf]
      %v197 = vld [vmem:[%s173 + $0x2c] sm:$0xf]
      %v198 = vld [vmem:[%s173 + $0x30] sm:$0xf]
      %v199 = vld [vmem:[%s173 + $0x34] sm:$0xf]
      %v200 = vld [vmem:[%s173 + $0x38] sm:$0xf]
      %v201 = vld [vmem:[%s173 + $0x3c] sm:$0xf]
      %v202 = vld [vmem:[%s1] sm:$0xf]
      %v203 = vld [vmem:[%s1 + $0x4] sm:$0xf]
      %v204 = vld [vmem:[%s1 + $0x8] sm:$0xf]
      %v205 = vld [vmem:[%s1 + $0xc] sm:$0xf]
      %v206 = vld [vmem:[%s1 + $0x10] sm:$0xf]
      %v207 = vld [vmem:[%s1 + $0x14] sm:$0xf]
      %v208 = vld [vmem:[%s1 + $0x18] sm:$0xf]
      %v209 = vld [vmem:[%s1 + $0x1c] sm:$0xf]
      %v210 = vld [vmem:[%s1 + $0x20] sm:$0xf]
      %v211 = vld [vmem:[%s1 + $0x24] sm:$0xf]
      %v212 = vld [vmem:[%s1 + $0x28] sm:$0xf]
      %v213 = vld [vmem:[%s1 + $0x2c] sm:$0xf]
      %v214 = vld [vmem:[%s1 + $0x30] sm:$0xf]
      %v215 = vld [vmem:[%s1 + $0x34] sm:$0xf]
      %v216 = vld [vmem:[%s1 + $0x38] sm:$0xf]
      %v217 = vld [vmem:[%s1 + $0x3c] sm:$0xf]
      %v234 = vunpack.c.l.b16 %v186
      %v235 = vunpack.c.l.b16 %v187
      %v236 = vunpack.c.l.b16 %v188
      %v237 = vunpack.c.l.b16 %v189
      %v238 = vunpack.c.l.b16 %v190
      %v239 = vunpack.c.l.b16 %v191
      %v240 = vunpack.c.l.b16 %v192
      %v241 = vunpack.c.l.b16 %v193
      %v242 = vunpack.c.l.b16 %v194
      %v243 = vunpack.c.l.b16 %v195
      %v244 = vunpack.c.l.b16 %v196
      %v245 = vunpack.c.l.b16 %v197
      %v246 = vunpack.c.l.b16 %v198
      %v247 = vunpack.c.l.b16 %v199
      %v248 = vunpack.c.l.b16 %v200
      %v249 = vunpack.c.l.b16 %v201
      %v250 = vpack.c.b16 %v235, %v234
      %v251 = vpack.c.b16 %v237, %v236
      %v252 = vpack.c.b16 %v239, %v238
      %v253 = vpack.c.b16 %v241, %v240
      %v254 = vpack.c.b16 %v243, %v242
      %v255 = vpack.c.b16 %v245, %v244
      %v256 = vpack.c.b16 %v247, %v246
      %v257 = vpack.c.b16 %v249, %v248
      %v282 = vunpack.c.l.b16 %v202
      %v283 = vunpack.c.l.b16 %v203
      %v284 = vunpack.c.l.b16 %v204
      %v285 = vunpack.c.l.b16 %v205
      %v286 = vunpack.c.l.b16 %v206
      %v287 = vunpack.c.l.b16 %v207
      %v288 = vunpack.c.l.b16 %v208
      %v289 = vunpack.c.l.b16 %v209
      %v290 = vunpack.c.l.b16 %v210
      %v291 = vunpack.c.l.b16 %v211
      %v292 = vunpack.c.l.b16 %v212
      %v293 = vunpack.c.l.b16 %v213
      %v294 = vunpack.c.l.b16 %v214
      %v295 = vunpack.c.l.b16 %v215
      %v296 = vunpack.c.l.b16 %v216
      %v297 = vunpack.c.l.b16 %v217
      %v298 = vpack.c.b16 %v283, %v282
      %v299 = vpack.c.b16 %v285, %v284
      %v300 = vpack.c.b16 %v287, %v286
      %v301 = vpack.c.b16 %v289, %v288
      %v302 = vpack.c.b16 %v291, %v290
      %v303 = vpack.c.b16 %v293, %v292
      %v304 = vpack.c.b16 %v295, %v294
      %v305 = vpack.c.b16 %v297, %v296
      %314 = vmatprep.subr.bf16.mxu0 0
      %315 = vmatpush1.bf16.msra.mxu0 %v298
      %316 = vmatprep.subr.bf16.mxu0 0
      %317 = vmatpush1.bf16.msra.mxu0 %v299
      %318 = vmatprep.subr.bf16.mxu0 0
      %319 = vmatpush1.bf16.msra.mxu0 %v300
      %320 = vmatprep.subr.bf16.mxu0 0
      %321 = vmatpush1.bf16.msra.mxu0 %v301
      %322 = vmatprep.subr.bf16.mxu0 0
      %323 = vmatpush1.bf16.msra.mxu0 %v302
      %324 = vmatprep.subr.bf16.mxu0 0
      %325 = vmatpush1.bf16.msra.mxu0 %v303
      %326 = vmatprep.subr.bf16.mxu0 0
      %327 = vmatpush1.bf16.msra.mxu0 %v304
      %328 = vmatprep.subr.bf16.mxu0 0
      %329 = vmatpush1.bf16.msra.mxu0 %v305
      %330 = vmatprep.subr.bf16.mxu0 0
      %331 = vmatpush1.bf16.msra.mxu0 0
      %332 = vmatprep.subr.bf16.mxu0 0
      %333 = vmatpush1.bf16.msra.mxu0 0
      %334 = vmatprep.subr.bf16.mxu0 0
      %335 = vmatpush1.bf16.msra.mxu0 0
      %336 = vmatprep.subr.bf16.mxu0 0
      %337 = vmatpush1.bf16.msra.mxu0 0
      %338 = vmatprep.subr.bf16.mxu0 0
      %339 = vmatpush1.bf16.msra.mxu0 0
      %340 = vmatprep.subr.bf16.mxu0 0
      %341 = vmatpush1.bf16.msra.mxu0 0
      %342 = vmatprep.subr.bf16.mxu0 0
      %343 = vmatpush1.bf16.msra.mxu0 0
      %344 = vmatprep.subr.bf16.mxu0 0
      %345 = vmatpush1.bf16.msra.mxu0 0
      %346 = vmatprep.mubr.bf16.mxu0 0
      %347 = vmatmul.mubr.bf16.gmra.mrb[0].mxu0 %v250
      %v348 = vpop.f32.mrb[0].mxu0
      %v349 = vadd.f32 0.0, %v348
      %v350 = vpop.f32.mrb[0].mxu0
      %v351 = vpop.f32.mrb[0].mxu0
      %v352 = vadd.f32 0.0, %v351
      %v353 = vpop.f32.mrb[0].mxu0
      %354 = vmatprep.mubr.bf16.mxu0 0
      %355 = vmatmul.mubr.bf16.gmra.mrb[0].mxu0 %v251
      %v356 = vpop.f32.mrb[0].mxu0
      %v357 = vadd.f32 0.0, %v356
      %v358 = vpop.f32.mrb[0].mxu0
      %v359 = vpop.f32.mrb[0].mxu0
      %v360 = vadd.f32 0.0, %v359
      %v361 = vpop.f32.mrb[0].mxu0
      %362 = vmatprep.mubr.bf16.mxu0 0
      %363 = vmatmul.mubr.bf16.gmra.mrb[0].mxu0 %v252
      %v364 = vpop.f32.mrb[0].mxu0
      %v365 = vadd.f32 0.0, %v364
      %v366 = vpop.f32.mrb[0].mxu0
      %v367 = vpop.f32.mrb[0].mxu0
      %v368 = vadd.f32 0.0, %v367
      %v369 = vpop.f32.mrb[0].mxu0
      %370 = vmatprep.mubr.bf16.mxu0 0
      %371 = vmatmul.mubr.bf16.gmra.mrb[0].mxu0 %v253
      %v372 = vpop.f32.mrb[0].mxu0
      %v373 = vadd.f32 0.0, %v372
      %v374 = vpop.f32.mrb[0].mxu0
      %v375 = vpop.f32.mrb[0].mxu0
      %v376 = vadd.f32 0.0, %v375
      %v377 = vpop.f32.mrb[0].mxu0
      %378 = vmatprep.mubr.bf16.mxu0 0
      %379 = vmatmul.mubr.bf16.gmra.mrb[0].mxu0 %v254
      %v380 = vpop.f32.mrb[0].mxu0
      %v381 = vadd.f32 0.0, %v380
      %v382 = vpop.f32.mrb[0].mxu0
      %v383 = vpop.f32.mrb[0].mxu0
      %v384 = vadd.f32 0.0, %v383
      %v385 = vpop.f32.mrb[0].mxu0
      %386 = vmatprep.mubr.bf16.mxu0 0
      %387 = vmatmul.mubr.bf16.gmra.mrb[0].mxu0 %v255
      %v388 = vpop.f32.mrb[0].mxu0
      %v389 = vadd.f32 0.0, %v388
      %v390 = vpop.f32.mrb[0].mxu0
      %v391 = vpop.f32.mrb[0].mxu0
      %v392 = vadd.f32 0.0, %v391
      %v393 = vpop.f32.mrb[0].mxu0
      %394 = vmatprep.mubr.bf16.mxu0 0
      %395 = vmatmul.mubr.bf16.gmra.mrb[0].mxu0 %v256
      %v396 = vpop.f32.mrb[0].mxu0
      %v397 = vadd.f32 0.0, %v396
      %v398 = vpop.f32.mrb[0].mxu0
      %v399 = vpop.f32.mrb[0].mxu0
      %v400 = vadd.f32 0.0, %v399
      %v401 = vpop.f32.mrb[0].mxu0
      %402 = vmatprep.mubr.bf16.mxu0 0
      %403 = vmatmul.mubr.bf16.gmra.mrb[0].mxu0 %v257
      %v404 = vpop.f32.mrb[0].mxu0
      %v405 = vadd.f32 0.0, %v404
      %v406 = vpop.f32.mrb[0].mxu0
      %v407 = vpop.f32.mrb[0].mxu0
      %v408 = vadd.f32 0.0, %v407
      %v409 = vpop.f32.mrb[0].mxu0
      %410 = vdwg.mxu0
      %v411 = vpack.c.bf16 %v352, %v349
      %v412 = vpack.c.bf16 %v360, %v357
      %v413 = vpack.c.bf16 %v368, %v365
      %v414 = vpack.c.bf16 %v376, %v373
      %v415 = vpack.c.bf16 %v384, %v381
      %v416 = vpack.c.bf16 %v392, %v389
      %v417 = vpack.c.bf16 %v400, %v397
      %v418 = vpack.c.bf16 %v408, %v405
      %v427 = vunpack.c.l.b16 %v411
      %v428 = vunpack.c.h.b16 %v411
      %v429 = vunpack.c.l.b16 %v412
      %v430 = vunpack.c.h.b16 %v412
      %v431 = vunpack.c.l.b16 %v413
      %v432 = vunpack.c.h.b16 %v413
      %v433 = vunpack.c.l.b16 %v414
      %v434 = vunpack.c.h.b16 %v414
      %v435 = vunpack.c.l.b16 %v415
      %v436 = vunpack.c.h.b16 %v415
      %v437 = vunpack.c.l.b16 %v416
      %v438 = vunpack.c.h.b16 %v416
      %v439 = vunpack.c.l.b16 %v417
      %v440 = vunpack.c.h.b16 %v417
      %v441 = vunpack.c.l.b16 %v418
      %v442 = vunpack.c.h.b16 %v418
      %v443 = vpack.c.b16 %v427, %v427
      %v444 = vpack.c.b16 %v428, %v428
      %v445 = vpack.c.b16 %v429, %v429
      %v446 = vpack.c.b16 %v430, %v430
      %v447 = vpack.c.b16 %v431, %v431
      %v448 = vpack.c.b16 %v432, %v432
      %v449 = vpack.c.b16 %v433, %v433
      %v450 = vpack.c.b16 %v434, %v434
      %v451 = vpack.c.b16 %v435, %v435
      %v452 = vpack.c.b16 %v436, %v436
      %v453 = vpack.c.b16 %v437, %v437
      %v454 = vpack.c.b16 %v438, %v438
      %v455 = vpack.c.b16 %v439, %v439
      %v456 = vpack.c.b16 %v440, %v440
      %v457 = vpack.c.b16 %v441, %v441
      %v458 = vpack.c.b16 %v442, %v442
      %475 = vst [vmem:[%s179] sm:$0xf] %v443
      %476 = vst [vmem:[%s179 + $0x4] sm:$0xf] %v444
      %477 = vst [vmem:[%s179 + $0x8] sm:$0xf] %v445
      %478 = vst [vmem:[%s179 + $0xc] sm:$0xf] %v446
      %479 = vst [vmem:[%s179 + $0x10] sm:$0xf] %v447
      %480 = vst [vmem:[%s179 + $0x14] sm:$0xf] %v448
      %481 = vst [vmem:[%s179 + $0x18] sm:$0xf] %v449
      %482 = vst [vmem:[%s179 + $0x1c] sm:$0xf] %v450
      %483 = vst [vmem:[%s179 + $0x20] sm:$0xf] %v451
      %484 = vst [vmem:[%s179 + $0x24] sm:$0xf] %v452
      %485 = vst [vmem:[%s179 + $0x28] sm:$0xf] %v453
      %486 = vst [vmem:[%s179 + $0x2c] sm:$0xf] %v454
      %487 = vst [vmem:[%s179 + $0x30] sm:$0xf] %v455
      %488 = vst [vmem:[%s179 + $0x34] sm:$0xf] %v456
      %489 = vst [vmem:[%s179 + $0x38] sm:$0xf] %v457
      %490 = vst [vmem:[%s179 + $0x3c] sm:$0xf] %v458
      %v491 = vunpack.c.l.bf16 %v411
      %v492 = vunpack.c.h.bf16 %v411
      %v493 = vunpack.c.l.bf16 %v412
      %v494 = vunpack.c.h.bf16 %v412
      %v495 = vunpack.c.l.bf16 %v413
      %v496 = vunpack.c.h.bf16 %v413
      %v497 = vunpack.c.l.bf16 %v414
      %v498 = vunpack.c.h.bf16 %v414
      %v499 = vunpack.c.l.bf16 %v415
      %v500 = vunpack.c.h.bf16 %v415
      %v501 = vunpack.c.l.bf16 %v416
      %v502 = vunpack.c.h.bf16 %v416
      %v503 = vunpack.c.l.bf16 %v417
      %v504 = vunpack.c.h.bf16 %v417
      %v505 = vunpack.c.l.bf16 %v418
      %v506 = vunpack.c.h.bf16 %v418
      %v507 = vadd.f32 %v491, %v492
      %v508 = vadd.f32 %v507, %v493
      %v509 = vadd.f32 %v508, %v494
      %v510 = vadd.f32 %v509, %v495
      %v511 = vadd.f32 %v510, %v496
      %v512 = vadd.f32 %v511, %v497
      %v513 = vadd.f32 %v512, %v498
      %v514 = vadd.f32 %v513, %v499
      %v515 = vadd.f32 %v514, %v500
      %v516 = vadd.f32 %v515, %v501
      %v517 = vadd.f32 %v516, %v502
      %v518 = vadd.f32 %v517, %v503
      %v519 = vadd.f32 %v518, %v504
      %v520 = vadd.f32 %v519, %v505
      %v521 = vadd.f32 %v520, %v506
      %v522 = vrot.slane %v521, 4
      %v523 = vadd.f32 %v521, %v522
      %v524 = vrot.slane %v523, 2
      %v525 = vadd.f32 %v523, %v524
      %v526 = vrot.slane %v525, 1
      %v527 = vadd.f32 %v525, %v526
      %v528 = vmul.f32 %v491, %v491
      %v529 = vmul.f32 %v492, %v492
      %v530 = vmul.f32 %v493, %v493
      %v531 = vmul.f32 %v494, %v494
      %v532 = vmul.f32 %v495, %v495
      %v533 = vmul.f32 %v496, %v496
      %v534 = vmul.f32 %v497, %v497
      %v535 = vmul.f32 %v498, %v498
      %v536 = vmul.f32 %v499, %v499
      %v537 = vmul.f32 %v500, %v500
      %v538 = vmul.f32 %v501, %v501
      %v539 = vmul.f32 %v502, %v502
      %v540 = vmul.f32 %v503, %v503
      %v541 = vmul.f32 %v504, %v504
      %v542 = vmul.f32 %v505, %v505
      %v543 = vmul.f32 %v506, %v506
      %v544 = vadd.f32 %v528, %v529
      %v545 = vadd.f32 %v544, %v530
      %v546 = vadd.f32 %v545, %v531
      %v547 = vadd.f32 %v546, %v532
      %v548 = vadd.f32 %v547, %v533
      %v549 = vadd.f32 %v548, %v534
      %v550 = vadd.f32 %v549, %v535
      %v551 = vadd.f32 %v550, %v536
      %v552 = vadd.f32 %v551, %v537
      %v553 = vadd.f32 %v552, %v538
      %v554 = vadd.f32 %v553, %v539
      %v555 = vadd.f32 %v554, %v540
      %v556 = vadd.f32 %v555, %v541
      %v557 = vadd.f32 %v556, %v542
      %v558 = vadd.f32 %v557, %v543
      %v559 = vrot.slane %v558, 4
      %v560 = vadd.f32 %v558, %v559
      %v561 = vrot.slane %v560, 2
      %v562 = vadd.f32 %v560, %v561
      %v563 = vrot.slane %v562, 1
      %v564 = vadd.f32 %v562, %v563
      %vm565 = vcmask 1040384
      %v566 = vsel %vm565, %v527, %v564
      %567 = vst [vmem:[%s184] sm:$0x3] %v566
      %s568 = smul.u32 16, %s15
      %p569 = scmp.lt.s32.totalorder %s568, 31
      %s570 = scalar_select %p569, %s568, 31
      %s571 = smul.addr %s570, 4
      %s572 = scalar_lea.vmem %s2, %s571
      %p573 = scmp.lt.s32.totalorder %s15, 1
      %s574 = scalar_select %p573, %s15, 1
      %s575 = smul.addr %s574, 2
      %s576 = scalar_lea.vmem %s3, %s575
      // Predicated region
      $region29: #{bottleneck_forward.4} parent=27 // pred_check
        %p577 = pneg %p80
      $region30: #{bottleneck_forward.4} parent=27 // pred_check_branch
        %579 = sbr.rel (%p577) target = $region32
      $region31: #{bottleneck_forward.4} parent=27 // pred_region
        %s580 = smul.u32 16, %s15
      $region32: #{bottleneck_forward.4} parent=27 // pred_fallthru
        _
      // Predicated region
      $region33: #{bottleneck_forward.4} parent=27 // pred_check
        %p581 = pneg %p106
      $region34: #{bottleneck_forward.4} parent=27 // pred_check_branch
        %583 = sbr.rel (%p581) target = $region36
      $region35: #{bottleneck_forward.4} parent=27 // pred_region
        _
      $region36: #{bottleneck_forward.4} parent=27 // pred_fallthru
        _
    $region28: #{bottleneck_forward.4} parent=5 // pred_fallthru
      _
    %p584 = scmp.le.s32.totalorder 2, %s10
    // Predicated region
    $region37: #{bottleneck_forward.4} parent=5 // pred_check
      %p585 = pneg %p584
    $region38: #{bottleneck_forward.4} parent=5 // pred_check_branch
      %587 = sbr.rel (%p585) target = $region40
    $region39: #{bottleneck_forward.4} parent=5 // pred_region
      %s588 = ssub.s32 %s10, 2
      // Predicated region
      $region41: #{bottleneck_forward.4} parent=39 // pred_check
        %p589 = pneg %p86
      $region42: #{bottleneck_forward.4} parent=39 // pred_check_branch
        %591 = sbr.rel (%p589) target = $region44
      $region43: #{bottleneck_forward.4} parent=39 // pred_region
        %s592 = smul.u32 16, %s16
        %p593 = scmp.lt.s32.totalorder %s592, 31
        %s594 = scalar_select %p593, %s592, 31
        %s595 = smul.addr %s594, 4
        %s596 = scalar_lea.vmem %s2, %s595
      $region44: #{bottleneck_forward.4} parent=39 // pred_fallthru
        _
      // Predicated region
      $region45: #{bottleneck_forward.4} parent=39 // pred_check
        %p597 = pneg %p112
      $region46: #{bottleneck_forward.4} parent=39 // pred_check_branch
        %599 = sbr.rel (%p597) target = $region48
      $region47: #{bottleneck_forward.4} parent=39 // pred_region
        %p600 = scmp.lt.s32.totalorder %s16, 1
        %s601 = scalar_select %p600, %s16, 1
        %s602 = smul.addr %s601, 2
        %s603 = scalar_lea.vmem %s3, %s602
      $region48: #{bottleneck_forward.4} parent=39 // pred_fallthru
        _
    $region40: #{bottleneck_forward.4} parent=5 // pred_fallthru
      _
  $region6: #{bottleneck_forward.4} parent=0 // loop_footer
    %s14 = sadd.s32 1, %s10
  $region7: #{bottleneck_forward.4} parent=0 // loop_footer_branch
    %9 = sbr.rel target = $region3
  $region8: #{bottleneck_forward.4} parent=0 // loop_exit
    _

// kernel: bottleneck_forward.6
$region0: #{bottleneck_forward.6}
  #allocation0 [shape = 'u32[]', space=smem, size = 0x4, offset = 0x4, fixed_abs, tag = 'smem constant byte address 0x4 - core index']
  #allocation1 [shape = 'u32[144,128]{1,0:T(1,128)}', space=vmem, size = 0x12000, scoped, tag = 'internal scratch']
  %s0 = inlined_call_operand.vmem [shape: bf16[256,128], index: 0, kind: input, shape index: {}]
  %s1 = inlined_call_operand.vmem [shape: f32[2,2,128], index: 1, kind: input, shape index: {}]
  %s2 = inlined_call_operand.vmem [shape: f32[1,128], index: 2, kind: input, shape index: {}]
  %s3 = inlined_call_operand.vmem [shape: f32[1,128], index: 3, kind: input, shape index: {}]
  %s4 = inlined_call_operand.vmem [shape: bf16[128,128], index: 4, kind: input, shape index: {}]
  %s5 = inlined_call_operand.vmem [shape: bf16[256,128], index: 5, kind: output, shape index: {0}]
  %s6 = inlined_call_operand.vmem [shape: f32[2,2,128], index: 6, kind: output, shape index: {1}]
  %7 = xla_tuple %s5, %s6
  %s8 = sld [smem:[#allocation0]]
  $region61: #{bottleneck_forward.6} parent=0
    _
  %s10 = ssub.s32 1, %s8
  %s11 = scalar_select 0, %s10, %s8
  loop: start=0, step=1, limit=4
  $region2: #{bottleneck_forward.6} parent=0 // loop_pre_header
    _
  $region3: #{bottleneck_forward.6} parent=0 // loop_header
    %s13 = sphi 0, %s17
    %p14 = scmp.ge.s32.totalorder %s13, 4
    %s23 = sphi 0, %s25
    %s26 = sphi 0, %s23
    %s27 = sphi 0, %s26
    %s43 = sphi 0, %s27
    %s47 = sphi 0, %s47
    %s49 = sphi 0, %s47
    %s50 = sphi 0, %s49
    %s64 = sphi 0, %s50
    %s68 = sphi 0, %s68
    %s70 = sphi 0, %s68
    %s71 = sphi 0, %s70
    %s85 = sphi 0, %s71
    %s89 = sphi 0, %s89
    %s91 = sphi 0, %s89
    %s92 = sphi 0, %s91
    %s106 = sphi 0, %s92
    %s110 = sphi 0, %s110
    %s112 = sphi 0, %s110
    %s113 = sphi 0, %s112
    %s127 = sphi 0, %s113
    %s133 = sphi 0, %s135
    %s136 = sphi 0, %s133
    %s137 = sphi 0, %s136
    %s153 = sphi 0, %s137
    %s159 = sphi 0, %s161
    %s162 = sphi 0, %s159
    %s163 = sphi 0, %s162
    %s179 = sphi 0, %s163
  $region4: #{bottleneck_forward.6} parent=0 // loop_header_branch
    %16 = sbr.rel (%p14) target = $region8
  $region5: #{bottleneck_forward.6} parent=0 // loop_body
    %s18 = ssub.s32 %s13, 1
    %s19 = ssub.s32 %s13, 2
    %s20 = sadd.s32 %s13, 1
    %s21 = ssub.s32 %s13, %s20
    %p22 = scmp.eq.s32.totalorder %s21, 0
    %s24 = sadd.s32 %s23, 1
    %s25 = scalar_select %p22, %s23, %s24
    %p28 = pneg %p22
    %p29 = scmp.eq.s32.totalorder %s13, 1
    %p30 = por %p28, %p29
    %p31 = scmp.ne.s32.totalorder %s23, %s26
    %p32 = scmp.eq.s32.totalorder %s13, 0
    %p33 = por %p31, %p32
    %p34 = scmp.ne.s32.totalorder %s23, %s26
    %p35 = scmp.eq.s32.totalorder %s18, 1
    %p36 = por %p34, %p35
    %p37 = scmp.ne.s32.totalorder %s26, %s27
    %p38 = scmp.eq.s32.totalorder %s18, 0
    %p39 = por %p37, %p38
    %p40 = scmp.ne.s32.totalorder %s26, %s27
    %p41 = scmp.eq.s32.totalorder %s19, 1
    %p42 = por %p40, %p41
    %p44 = scmp.ne.s32.totalorder %s27, %s43
    %p45 = scmp.eq.s32.totalorder %s19, 0
    %p46 = por %p44, %p45
    %s48 = sadd.s32 %s47, 1
    %p51 = scmp.eq.s32.totalorder %s13, 1
    %p52 = scmp.ne.s32.totalorder %s47, %s49
    %p53 = scmp.eq.s32.totalorder %s13, 0
    %p54 = por %p52, %p53
    %p55 = scmp.ne.s32.totalorder %s47, %s49
    %p56 = scmp.eq.s32.totalorder %s18, 1
    %p57 = por %p55, %p56
    %p58 = scmp.ne.s32.totalorder %s49, %s50
    %p59 = scmp.eq.s32.totalorder %s18, 0
    %p60 = por %p58, %p59
    %p61 = scmp.ne.s32.totalorder %s49, %s50
    %p62 = scmp.eq.s32.totalorder %s19, 1
    %p63 = por %p61, %p62
    %p65 = scmp.ne.s32.totalorder %s50, %s64
    %p66 = scmp.eq.s32.totalorder %s19, 0
    %p67 = por %p65, %p66
    %s69 = sadd.s32 %s68, 1
    %p72 = scmp.eq.s32.totalorder %s13, 1
    %p73 = scmp.ne.s32.totalorder %s68, %s70
    %p74 = scmp.eq.s32.totalorder %s13, 0
    %p75 = por %p73, %p74
    %p76 = scmp.ne.s32.totalorder %s68, %s70
    %p77 = scmp.eq.s32.totalorder %s18, 1
    %p78 = por %p76, %p77
    %p79 = scmp.ne.s32.totalorder %s70, %s71
    %p80 = scmp.eq.s32.totalorder %s18, 0
    %p81 = por %p79, %p80
    %p82 = scmp.ne.s32.totalorder %s70, %s71
    %p83 = scmp.eq.s32.totalorder %s19, 1
    %p84 = por %p82, %p83
    %p86 = scmp.ne.s32.totalorder %s71, %s85
    %p87 = scmp.eq.s32.totalorder %s19, 0
    %p88 = por %p86, %p87
    %s90 = sadd.s32 %s89, 1
    %p93 = scmp.eq.s32.totalorder %s13, 1
    %p94 = scmp.ne.s32.totalorder %s89, %s91
    %p95 = scmp.eq.s32.totalorder %s13, 0
    %p96 = por %p94, %p95
    %p97 = scmp.ne.s32.totalorder %s89, %s91
    %p98 = scmp.eq.s32.totalorder %s18, 1
    %p99 = por %p97, %p98
    %p100 = scmp.ne.s32.totalorder %s91, %s92
    %p101 = scmp.eq.s32.totalorder %s18, 0
    %p102 = por %p100, %p101
    %p103 = scmp.ne.s32.totalorder %s91, %s92
    %p104 = scmp.eq.s32.totalorder %s19, 1
    %p105 = por %p103, %p104
    %p107 = scmp.ne.s32.totalorder %s92, %s106
    %p108 = scmp.eq.s32.totalorder %s19, 0
    %p109 = por %p107, %p108
    %s111 = sadd.s32 %s110, 1
    %p114 = scmp.eq.s32.totalorder %s13, 1
    %p115 = scmp.ne.s32.totalorder %s110, %s112
    %p116 = scmp.eq.s32.totalorder %s13, 0
    %p117 = por %p115, %p116
    %p118 = scmp.ne.s32.totalorder %s110, %s112
    %p119 = scmp.eq.s32.totalorder %s18, 1
    %p120 = por %p118, %p119
    %p121 = scmp.ne.s32.totalorder %s112, %s113
    %p122 = scmp.eq.s32.totalorder %s18, 0
    %p123 = por %p121, %p122
    %p124 = scmp.ne.s32.totalorder %s112, %s113
    %p125 = scmp.eq.s32.totalorder %s19, 1
    %p126 = por %p124, %p125
    %p128 = scmp.ne.s32.totalorder %s113, %s127
    %p129 = scmp.eq.s32.totalorder %s19, 0
    %p130 = por %p128, %p129
    %s131 = ssub.s32 %s13, %s20
    %p132 = scmp.eq.s32.totalorder %s131, 0
    %s134 = sadd.s32 %s133, 1
    %s135 = scalar_select %p132, %s133, %s134
    %p138 = pneg %p132
    %p139 = scmp.eq.s32.totalorder %s13, 1
    %p140 = por %p138, %p139
    %p141 = scmp.ne.s32.totalorder %s133, %s136
    %p142 = scmp.eq.s32.totalorder %s13, 0
    %p143 = por %p141, %p142
    %p144 = scmp.ne.s32.totalorder %s133, %s136
    %p145 = scmp.eq.s32.totalorder %s18, 1
    %p146 = por %p144, %p145
    %p147 = scmp.ne.s32.totalorder %s136, %s137
    %p148 = scmp.eq.s32.totalorder %s18, 0
    %p149 = por %p147, %p148
    %p150 = scmp.ne.s32.totalorder %s136, %s137
    %p151 = scmp.eq.s32.totalorder %s19, 1
    %p152 = por %p150, %p151
    %p154 = scmp.ne.s32.totalorder %s137, %s153
    %p155 = scmp.eq.s32.totalorder %s19, 0
    %p156 = por %p154, %p155
    %s157 = ssub.s32 %s13, %s20
    %p158 = scmp.eq.s32.totalorder %s157, 0
    %s160 = sadd.s32 %s159, 1
    %s161 = scalar_select %p158, %s159, %s160
    %p164 = pneg %p158
    %p165 = scmp.eq.s32.totalorder %s13, 1
    %p166 = por %p164, %p165
    %p167 = scmp.ne.s32.totalorder %s159, %s162
    %p168 = scmp.eq.s32.totalorder %s13, 0
    %p169 = por %p167, %p168
    %p170 = scmp.ne.s32.totalorder %s159, %s162
    %p171 = scmp.eq.s32.totalorder %s18, 1
    %p172 = por %p170, %p171
    %p173 = scmp.ne.s32.totalorder %s162, %s163
    %p174 = scmp.eq.s32.totalorder %s18, 0
    %p175 = por %p173, %p174
    %p176 = scmp.ne.s32.totalorder %s162, %s163
    %p177 = scmp.eq.s32.totalorder %s19, 1
    %p178 = por %p176, %p177
    %p180 = scmp.ne.s32.totalorder %s163, %s179
    %p181 = scmp.eq.s32.totalorder %s19, 0
    %p182 = por %p180, %p181
    %p183 = scmp.le.s32.totalorder 1, %s13
    %p184 = scmp.lt.s32.totalorder %s13, 3
    %p185 = pnand %p183, %p184
    %p186 = pneg %p185
    // Predicated region
    $region9: #{bottleneck_forward.6} parent=5 // pred_check
      _
    $region10: #{bottleneck_forward.6} parent=5 // pred_check_branch
      %188 = sbr.rel (%p185) target = $region12
    $region11: #{bottleneck_forward.6} parent=5 // pred_region
      %s189 = ssub.s32 %s13, 1
      // Predicated region
      $region13: #{bottleneck_forward.6} parent=11 // pred_check
        %p190 = pneg %p60
      $region14: #{bottleneck_forward.6} parent=11 // pred_check_branch
        %192 = sbr.rel (%p190) target = $region16
      $region15: #{bottleneck_forward.6} parent=11 // pred_region
        _
      $region16: #{bottleneck_forward.6} parent=11 // pred_fallthru
        _
      // Predicated region
      $region17: #{bottleneck_forward.6} parent=11 // pred_check
        %p193 = pneg %p81
      $region18: #{bottleneck_forward.6} parent=11 // pred_check_branch
        %195 = sbr.rel (%p193) target = $region20
      $region19: #{bottleneck_forward.6} parent=11 // pred_region
        _
      $region20: #{bottleneck_forward.6} parent=11 // pred_fallthru
        _
      // Predicated region
      $region21: #{bottleneck_forward.6} parent=11 // pred_check
        %p196 = pneg %p102
      $region22: #{bottleneck_forward.6} parent=11 // pred_check_branch
        %198 = sbr.rel (%p196) target = $region24
      $region23: #{bottleneck_forward.6} parent=11 // pred_region
        _
      $region24: #{bottleneck_forward.6} parent=11 // pred_fallthru
        _
      // Predicated region
      $region25: #{bottleneck_forward.6} parent=11 // pred_check
        %p199 = pneg %p123
      $region26: #{bottleneck_forward.6} parent=11 // pred_check_branch
        %201 = sbr.rel (%p199) target = $region28
      $region27: #{bottleneck_forward.6} parent=11 // pred_region
        _
      $region28: #{bottleneck_forward.6} parent=11 // pred_fallthru
        _
    $region12: #{bottleneck_forward.6} parent=5 // pred_fallthru
      _
    %p202 = scmp.lt.s32.totalorder %s13, 2
    // Predicated region
    $region29: #{bottleneck_forward.6} parent=5 // pred_check
      %p203 = pneg %p202
    $region30: #{bottleneck_forward.6} parent=5 // pred_check_branch
      %205 = sbr.rel (%p203) target = $region32
    $region31: #{bottleneck_forward.6} parent=5 // pred_region
      // Predicated region
      $region33: #{bottleneck_forward.6} parent=31 // pred_check
        %p206 = pneg %p33
      $region34: #{bottleneck_forward.6} parent=31 // pred_check_branch
        %208 = sbr.rel (%p206) target = $region36
      $region35: #{bottleneck_forward.6} parent=31 // pred_region
        %s209 = smul.u32 16, %s13
        %p210 = scmp.lt.s32.totalorder %s209, 31
        %s211 = scalar_select %p210, %s209, 31
        %s212 = smul.addr %s211, 4
        %s213 = scalar_lea.vmem %s0, %s212
        %s214 = smul.u32 16, %s13
      $region36: #{bottleneck_forward.6} parent=31 // pred_fallthru
        _
    $region32: #{bottleneck_forward.6} parent=5 // pred_fallthru
      _
    %p215 = scmp.le.s32.totalorder 1, %s13
    %p216 = scmp.lt.s32.totalorder %s13, 3
    %p217 = pnand %p215, %p216
    %p218 = pneg %p217
    // Predicated region
    $region37: #{bottleneck_forward.6} parent=5 // pred_check
      _
    $region38: #{bottleneck_forward.6} parent=5 // pred_check_branch
      %220 = sbr.rel (%p217) target = $region40
    $region39: #{bottleneck_forward.6} parent=5 // pred_region
      %s221 = ssub.s32 %s13, 1
      %s222 = smul.u32 16, %s18
      %p223 = scmp.lt.s32.totalorder %s222, 31
      %s224 = scalar_select %p223, %s222, 31
      %s225 = smul.addr %s224, 4
      %s226 = scalar_lea.vmem %s0, %s225
      %p227 = pneg %p39
      %p228 = pneg %p36
      %p229 = pneg %p60
      %p230 = pneg %p57
      %p231 = pneg %p81
      %p232 = pneg %p78
      %p233 = pneg %p102
      %p234 = pneg %p99
      %p235 = pneg %p123
      %p236 = pneg %p120
      %p237 = pneg %p149
      %p238 = pneg %p146
      %s239 = smul.u32 16, %s18
      %p240 = scmp.lt.s32.totalorder %s239, 31
      %s241 = scalar_select %p240, %s239, 31
      %s242 = smul.addr %s241, 4
      %s243 = scalar_lea.vmem %s5, %s242
      %p244 = pneg %p175
      %p245 = pneg %p172
      %p246 = scmp.lt.s32.totalorder %s18, 1
      %s247 = scalar_select %p246, %s18, 1
      %s248 = smul.addr %s247, 2
      %s249 = scalar_lea.vmem %s6, %s248
      %s250 = smul.u32 16, %s18
      %p251 = scmp.lt.s32.totalorder %s250, 31
      %s252 = scalar_select %p251, %s250, 31
      %s253 = smul.addr %s252, 4
      %s254 = scalar_lea.vmem %s0, %s253
      %s255 = smul.u32 16, %s18
      %s256 = smul.u32 16, %s18
      %p257 = scmp.lt.s32.totalorder %s256, 31
      %s258 = scalar_select %p257, %s256, 31
      %s259 = smul.addr %s258, 4
      %s260 = scalar_lea.vmem %s5, %s259
      %s261 = smul.u32 16, %s18
      %p262 = scmp.lt.s32.totalorder %s18, 1
      %s263 = scalar_select %p262, %s18, 1
      %s264 = smul.addr %s263, 2
      %s265 = scalar_lea.vmem %s6, %s264
      %v267 = vld [vmem:[%s1] sm:$0x3]
      %v268 = vld [vmem:[%s1 + $0x2] sm:$0x3]
      %v269 = vld [vmem:[%s2] sm:$0x1]
      %v270 = vld [vmem:[%s3] sm:$0x1]
      %vm271 = vcmask 1041408
      %v272 = vsel %vm271, %v267, 0.0
      %v273 = vsel %vm271, %v268, 0.0
      %v274 = vadd.f32 %v272, %v273
      %v275 = vmul.f32 %v274, 0.00390625
      %v276 = vmul.f32 %v275, %v275
      %v278 = vrot.slane %v276, 7
      %v280 = vsub.f32 %v275, %v278
      %v281 = vmax.f32 %v280, 0.0
      %v282 = vadd.f32 %v281, 1e-05
      %v283 = vrsqrt.pop %v282
      %v286 = vunpack.c.l.s4 1966171168
      %v287 = vunpack.c.0.s8 %v286
      %v288 = vlaneseq
      %v289 = vshrl.u32 %v288, 7
      %v290 = vsub.s32 %v287, %v289
      %v291 = vrot.slane %v283, %v290
      %v292 = vcombine.high %v291, %v291
      %v294 = vunpack.c.l.s4 1966171168
      %v295 = vunpack.c.0.s8 %v294
      %v296 = vlaneseq
      %v297 = vshrl.u32 %v296, 7
      %v298 = vsub.s32 %v295, %v297
      %v299 = vrot.slane %v292, %v298
      %v301 = vmul.f32 %v269, %v299
      %v302 = vmul.f32 %v275, %v301
      %v303 = vsub.f32 %v270, %v302
      %v304 = vld [vmem:[%s254] sm:$0xf]
      %v305 = vld [vmem:[%s254 + $0x4] sm:$0xf]
      %v306 = vld [vmem:[%s254 + $0x8] sm:$0xf]
      %v307 = vld [vmem:[%s254 + $0xc] sm:$0xf]
      %v308 = vld [vmem:[%s254 + $0x10] sm:$0xf]
      %v309 = vld [vmem:[%s254 + $0x14] sm:$0xf]
      %v310 = vld [vmem:[%s254 + $0x18] sm:$0xf]
      %v311 = vld [vmem:[%s254 + $0x1c] sm:$0xf]
      %v312 = vld [vmem:[%s254 + $0x20] sm:$0xf]
      %v313 = vld [vmem:[%s254 + $0x24] sm:$0xf]
      %v314 = vld [vmem:[%s254 + $0x28] sm:$0xf]
      %v315 = vld [vmem:[%s254 + $0x2c] sm:$0xf]
      %v316 = vld [vmem:[%s254 + $0x30] sm:$0xf]
      %v317 = vld [vmem:[%s254 + $0x34] sm:$0xf]
      %v318 = vld [vmem:[%s254 + $0x38] sm:$0xf]
      %v319 = vld [vmem:[%s254 + $0x3c] sm:$0xf]
      %v320 = vunpack.c.l.bf16 %v304
      %v321 = vunpack.c.l.bf16 %v305
      %v322 = vunpack.c.l.bf16 %v306
      %v323 = vunpack.c.l.bf16 %v307
      %v324 = vunpack.c.l.bf16 %v308
      %v325 = vunpack.c.l.bf16 %v309
      %v326 = vunpack.c.l.bf16 %v310
      %v327 = vunpack.c.l.bf16 %v311
      %v328 = vunpack.c.l.bf16 %v312
      %v329 = vunpack.c.l.bf16 %v313
      %v330 = vunpack.c.l.bf16 %v314
      %v331 = vunpack.c.l.bf16 %v315
      %v332 = vunpack.c.l.bf16 %v316
      %v333 = vunpack.c.l.bf16 %v317
      %v334 = vunpack.c.l.bf16 %v318
      %v335 = vunpack.c.l.bf16 %v319
      %v337 = vlaneseq
      %v338 = vshrl.u32 %v337, 7
      %v339 = vsub.s32 0, %v338
      %v340 = vrot.slane %v301, %v339
      %v342 = vmul.f32 %v320, %v340
      %v343 = vmul.f32 %v321, %v340
      %v344 = vmul.f32 %v322, %v340
      %v345 = vmul.f32 %v323, %v340
      %v346 = vmul.f32 %v324, %v340
      %v347 = vmul.f32 %v325, %v340
      %v348 = vmul.f32 %v326, %v340
      %v349 = vmul.f32 %v327, %v340
      %v350 = vmul.f32 %v328, %v340
      %v351 = vmul.f32 %v329, %v340
      %v352 = vmul.f32 %v330, %v340
      %v353 = vmul.f32 %v331, %v340
      %v354 = vmul.f32 %v332, %v340
      %v355 = vmul.f32 %v333, %v340
      %v356 = vmul.f32 %v334, %v340
      %v357 = vmul.f32 %v335, %v340
      %v359 = vlaneseq
      %v360 = vshrl.u32 %v359, 7
      %v361 = vsub.s32 0, %v360
      %v362 = vrot.slane %v303, %v361
      %v364 = vadd.f32 %v342, %v362
      %v365 = vadd.f32 %v343, %v362
      %v366 = vadd.f32 %v344, %v362
      %v367 = vadd.f32 %v345, %v362
      %v368 = vadd.f32 %v346, %v362
      %v369 = vadd.f32 %v347, %v362
      %v370 = vadd.f32 %v348, %v362
      %v371 = vadd.f32 %v349, %v362
      %v372 = vadd.f32 %v350, %v362
      %v373 = vadd.f32 %v351, %v362
      %v374 = vadd.f32 %v352, %v362
      %v375 = vadd.f32 %v353, %v362
      %v376 = vadd.f32 %v354, %v362
      %v377 = vadd.f32 %v355, %v362
      %v378 = vadd.f32 %v356, %v362
      %v379 = vadd.f32 %v357, %v362
      %v380 = vmax.f32 %v364, 0.0
      %v381 = vmax.f32 %v365, 0.0
      %v382 = vmax.f32 %v366, 0.0
      %v383 = vmax.f32 %v367, 0.0
      %v384 = vmax.f32 %v368, 0.0
      %v385 = vmax.f32 %v369, 0.0
      %v386 = vmax.f32 %v370, 0.0
      %v387 = vmax.f32 %v371, 0.0
      %v388 = vmax.f32 %v372, 0.0
      %v389 = vmax.f32 %v373, 0.0
      %v390 = vmax.f32 %v374, 0.0
      %v391 = vmax.f32 %v375, 0.0
      %v392 = vmax.f32 %v376, 0.0
      %v393 = vmax.f32 %v377, 0.0
      %v394 = vmax.f32 %v378, 0.0
      %v395 = vmax.f32 %v379, 0.0
      %v396 = vmin.f32 %v380, 6.0
      %v397 = vmin.f32 %v381, 6.0
      %v398 = vmin.f32 %v382, 6.0
      %v399 = vmin.f32 %v383, 6.0
      %v400 = vmin.f32 %v384, 6.0
      %v401 = vmin.f32 %v385, 6.0
      %v402 = vmin.f32 %v386, 6.0
      %v403 = vmin.f32 %v387, 6.0
      %v404 = vmin.f32 %v388, 6.0
      %v405 = vmin.f32 %v389, 6.0
      %v406 = vmin.f32 %v390, 6.0
      %v407 = vmin.f32 %v391, 6.0
      %v408 = vmin.f32 %v392, 6.0
      %v409 = vmin.f32 %v393, 6.0
      %v410 = vmin.f32 %v394, 6.0
      %v411 = vmin.f32 %v395, 6.0
      %v412 = vpack.c.bf16 %v397, %v396
      %v413 = vpack.c.bf16 %v399, %v398
      %v414 = vpack.c.bf16 %v401, %v400
      %v415 = vpack.c.bf16 %v403, %v402
      %v416 = vpack.c.bf16 %v405, %v404
      %v417 = vpack.c.bf16 %v407, %v406
      %v418 = vpack.c.bf16 %v409, %v408
      %v419 = vpack.c.bf16 %v411, %v410
      %v420 = vld [vmem:[%s4] sm:$0xf]
      %v421 = vld [vmem:[%s4 + $0x4] sm:$0xf]
      %v422 = vld [vmem:[%s4 + $0x8] sm:$0xf]
      %v423 = vld [vmem:[%s4 + $0xc] sm:$0xf]
      %v424 = vld [vmem:[%s4 + $0x10] sm:$0xf]
      %v425 = vld [vmem:[%s4 + $0x14] sm:$0xf]
      %v426 = vld [vmem:[%s4 + $0x18] sm:$0xf]
      %v427 = vld [vmem:[%s4 + $0x1c] sm:$0xf]
      %v428 = vld [vmem:[%s4 + $0x20] sm:$0xf]
      %v429 = vld [vmem:[%s4 + $0x24] sm:$0xf]
      %v430 = vld [vmem:[%s4 + $0x28] sm:$0xf]
      %v431 = vld [vmem:[%s4 + $0x2c] sm:$0xf]
      %v432 = vld [vmem:[%s4 + $0x30] sm:$0xf]
      %v433 = vld [vmem:[%s4 + $0x34] sm:$0xf]
      %v434 = vld [vmem:[%s4 + $0x38] sm:$0xf]
      %v435 = vld [vmem:[%s4 + $0x3c] sm:$0xf]
      %v452 = vunpack.c.l.b16 %v420
      %v453 = vunpack.c.l.b16 %v421
      %v454 = vunpack.c.l.b16 %v422
      %v455 = vunpack.c.l.b16 %v423
      %v456 = vunpack.c.l.b16 %v424
      %v457 = vunpack.c.l.b16 %v425
      %v458 = vunpack.c.l.b16 %v426
      %v459 = vunpack.c.l.b16 %v427
      %v460 = vunpack.c.l.b16 %v428
      %v461 = vunpack.c.l.b16 %v429
      %v462 = vunpack.c.l.b16 %v430
      %v463 = vunpack.c.l.b16 %v431
      %v464 = vunpack.c.l.b16 %v432
      %v465 = vunpack.c.l.b16 %v433
      %v466 = vunpack.c.l.b16 %v434
      %v467 = vunpack.c.l.b16 %v435
      %v468 = vpack.c.b16 %v453, %v452
      %v469 = vpack.c.b16 %v455, %v454
      %v470 = vpack.c.b16 %v457, %v456
      %v471 = vpack.c.b16 %v459, %v458
      %v472 = vpack.c.b16 %v461, %v460
      %v473 = vpack.c.b16 %v463, %v462
      %v474 = vpack.c.b16 %v465, %v464
      %v475 = vpack.c.b16 %v467, %v466
      %484 = vmatprep.subr.bf16.mxu0 0
      %485 = vmatpush1.bf16.msra.mxu0 %v468
      %486 = vmatprep.subr.bf16.mxu0 0
      %487 = vmatpush1.bf16.msra.mxu0 %v469
      %488 = vmatprep.subr.bf16.mxu0 0
      %489 = vmatpush1.bf16.msra.mxu0 %v470
      %490 = vmatprep.subr.bf16.mxu0 0
      %491 = vmatpush1.bf16.msra.mxu0 %v471
      %492 = vmatprep.subr.bf16.mxu0 0
      %493 = vmatpush1.bf16.msra.mxu0 %v472
      %494 = vmatprep.subr.bf16.mxu0 0
      %495 = vmatpush1.bf16.msra.mxu0 %v473
      %496 = vmatprep.subr.bf16.mxu0 0
      %497 = vmatpush1.bf16.msra.mxu0 %v474
      %498 = vmatprep.subr.bf16.mxu0 0
      %499 = vmatpush1.bf16.msra.mxu0 %v475
      %500 = vmatprep.subr.bf16.mxu0 0
      %501 = vmatpush1.bf16.msra.mxu0 0
      %502 = vmatprep.subr.bf16.mxu0 0
      %503 = vmatpush1.bf16.msra.mxu0 0
      %504 = vmatprep.subr.bf16.mxu0 0
      %505 = vmatpush1.bf16.msra.mxu0 0
      %506 = vmatprep.subr.bf16.mxu0 0
      %507 = vmatpush1.bf16.msra.mxu0 0
      %508 = vmatprep.subr.bf16.mxu0 0
      %509 = vmatpush1.bf16.msra.mxu0 0
      %510 = vmatprep.subr.bf16.mxu0 0
      %511 = vmatpush1.bf16.msra.mxu0 0
      %512 = vmatprep.subr.bf16.mxu0 0
      %513 = vmatpush1.bf16.msra.mxu0 0
      %514 = vmatprep.subr.bf16.mxu0 0
      %515 = vmatpush1.bf16.msra.mxu0 0
      %516 = vmatprep.mubr.bf16.mxu0 0
      %517 = vmatmul.mubr.bf16.gmra.mrb[0].mxu0 %v412
      %v518 = vpop.f32.mrb[0].mxu0
      %v519 = vadd.f32 0.0, %v518
      %v520 = vpop.f32.mrb[0].mxu0
      %v521 = vpop.f32.mrb[0].mxu0
      %v522 = vadd.f32 0.0, %v521
      %v523 = vpop.f32.mrb[0].mxu0
      %524 = vmatprep.mubr.bf16.mxu0 0
      %525 = vmatmul.mubr.bf16.gmra.mrb[0].mxu0 %v413
      %v526 = vpop.f32.mrb[0].mxu0
      %v527 = vadd.f32 0.0, %v526
      %v528 = vpop.f32.mrb[0].mxu0
      %v529 = vpop.f32.mrb[0].mxu0
      %v530 = vadd.f32 0.0, %v529
      %v531 = vpop.f32.mrb[0].mxu0
      %532 = vmatprep.mubr.bf16.mxu0 0
      %533 = vmatmul.mubr.bf16.gmra.mrb[0].mxu0 %v414
      %v534 = vpop.f32.mrb[0].mxu0
      %v535 = vadd.f32 0.0, %v534
      %v536 = vpop.f32.mrb[0].mxu0
      %v537 = vpop.f32.mrb[0].mxu0
      %v538 = vadd.f32 0.0, %v537
      %v539 = vpop.f32.mrb[0].mxu0
      %540 = vmatprep.mubr.bf16.mxu0 0
      %541 = vmatmul.mubr.bf16.gmra.mrb[0].mxu0 %v415
      %v542 = vpop.f32.mrb[0].mxu0
      %v543 = vadd.f32 0.0, %v542
      %v544 = vpop.f32.mrb[0].mxu0
      %v545 = vpop.f32.mrb[0].mxu0
      %v546 = vadd.f32 0.0, %v545
      %v547 = vpop.f32.mrb[0].mxu0
      %548 = vmatprep.mubr.bf16.mxu0 0
      %549 = vmatmul.mubr.bf16.gmra.mrb[0].mxu0 %v416
      %v550 = vpop.f32.mrb[0].mxu0
      %v551 = vadd.f32 0.0, %v550
      %v552 = vpop.f32.mrb[0].mxu0
      %v553 = vpop.f32.mrb[0].mxu0
      %v554 = vadd.f32 0.0, %v553
      %v555 = vpop.f32.mrb[0].mxu0
      %556 = vmatprep.mubr.bf16.mxu0 0
      %557 = vmatmul.mubr.bf16.gmra.mrb[0].mxu0 %v417
      %v558 = vpop.f32.mrb[0].mxu0
      %v559 = vadd.f32 0.0, %v558
      %v560 = vpop.f32.mrb[0].mxu0
      %v561 = vpop.f32.mrb[0].mxu0
      %v562 = vadd.f32 0.0, %v561
      %v563 = vpop.f32.mrb[0].mxu0
      %564 = vmatprep.mubr.bf16.mxu0 0
      %565 = vmatmul.mubr.bf16.gmra.mrb[0].mxu0 %v418
      %v566 = vpop.f32.mrb[0].mxu0
      %v567 = vadd.f32 0.0, %v566
      %v568 = vpop.f32.mrb[0].mxu0
      %v569 = vpop.f32.mrb[0].mxu0
      %v570 = vadd.f32 0.0, %v569
      %v571 = vpop.f32.mrb[0].mxu0
      %572 = vmatprep.mubr.bf16.mxu0 0
      %573 = vmatmul.mubr.bf16.gmra.mrb[0].mxu0 %v419
      %v574 = vpop.f32.mrb[0].mxu0
      %v575 = vadd.f32 0.0, %v574
      %v576 = vpop.f32.mrb[0].mxu0
      %v577 = vpop.f32.mrb[0].mxu0
      %v578 = vadd.f32 0.0, %v577
      %v579 = vpop.f32.mrb[0].mxu0
      %580 = vdwg.mxu0
      %v581 = vpack.c.bf16 %v522, %v519
      %v582 = vpack.c.bf16 %v530, %v527
      %v583 = vpack.c.bf16 %v538, %v535
      %v584 = vpack.c.bf16 %v546, %v543
      %v585 = vpack.c.bf16 %v554, %v551
      %v586 = vpack.c.bf16 %v562, %v559
      %v587 = vpack.c.bf16 %v570, %v567
      %v588 = vpack.c.bf16 %v578, %v575
      %v597 = vunpack.c.l.b16 %v581
      %v598 = vunpack.c.h.b16 %v581
      %v599 = vunpack.c.l.b16 %v582
      %v600 = vunpack.c.h.b16 %v582
      %v601 = vunpack.c.l.b16 %v583
      %v602 = vunpack.c.h.b16 %v583
      %v603 = vunpack.c.l.b16 %v584
      %v604 = vunpack.c.h.b16 %v584
      %v605 = vunpack.c.l.b16 %v585
      %v606 = vunpack.c.h.b16 %v585
      %v607 = vunpack.c.l.b16 %v586
      %v608 = vunpack.c.h.b16 %v586
      %v609 = vunpack.c.l.b16 %v587
      %v610 = vunpack.c.h.b16 %v587
      %v611 = vunpack.c.l.b16 %v588
      %v612 = vunpack.c.h.b16 %v588
      %v613 = vpack.c.b16 %v597, %v597
      %v614 = vpack.c.b16 %v598, %v598
      %v615 = vpack.c.b16 %v599, %v599
      %v616 = vpack.c.b16 %v600, %v600
      %v617 = vpack.c.b16 %v601, %v601
      %v618 = vpack.c.b16 %v602, %v602
      %v619 = vpack.c.b16 %v603, %v603
      %v620 = vpack.c.b16 %v604, %v604
      %v621 = vpack.c.b16 %v605, %v605
      %v622 = vpack.c.b16 %v606, %v606
      %v623 = vpack.c.b16 %v607, %v607
      %v624 = vpack.c.b16 %v608, %v608
      %v625 = vpack.c.b16 %v609, %v609
      %v626 = vpack.c.b16 %v610, %v610
      %v627 = vpack.c.b16 %v611, %v611
      %v628 = vpack.c.b16 %v612, %v612
      %645 = vst [vmem:[%s260] sm:$0xf] %v613
      %646 = vst [vmem:[%s260 + $0x4] sm:$0xf] %v614
      %647 = vst [vmem:[%s260 + $0x8] sm:$0xf] %v615
      %648 = vst [vmem:[%s260 + $0xc] sm:$0xf] %v616
      %649 = vst [vmem:[%s260 + $0x10] sm:$0xf] %v617
      %650 = vst [vmem:[%s260 + $0x14] sm:$0xf] %v618
      %651 = vst [vmem:[%s260 + $0x18] sm:$0xf] %v619
      %652 = vst [vmem:[%s260 + $0x1c] sm:$0xf] %v620
      %653 = vst [vmem:[%s260 + $0x20] sm:$0xf] %v621
      %654 = vst [vmem:[%s260 + $0x24] sm:$0xf] %v622
      %655 = vst [vmem:[%s260 + $0x28] sm:$0xf] %v623
      %656 = vst [vmem:[%s260 + $0x2c] sm:$0xf] %v624
      %657 = vst [vmem:[%s260 + $0x30] sm:$0xf] %v625
      %658 = vst [vmem:[%s260 + $0x34] sm:$0xf] %v626
      %659 = vst [vmem:[%s260 + $0x38] sm:$0xf] %v627
      %660 = vst [vmem:[%s260 + $0x3c] sm:$0xf] %v628
      %v661 = vunpack.c.l.bf16 %v581
      %v662 = vunpack.c.h.bf16 %v581
      %v663 = vunpack.c.l.bf16 %v582
      %v664 = vunpack.c.h.bf16 %v582
      %v665 = vunpack.c.l.bf16 %v583
      %v666 = vunpack.c.h.bf16 %v583
      %v667 = vunpack.c.l.bf16 %v584
      %v668 = vunpack.c.h.bf16 %v584
      %v669 = vunpack.c.l.bf16 %v585
      %v670 = vunpack.c.h.bf16 %v585
      %v671 = vunpack.c.l.bf16 %v586
      %v672 = vunpack.c.h.bf16 %v586
      %v673 = vunpack.c.l.bf16 %v587
      %v674 = vunpack.c.h.bf16 %v587
      %v675 = vunpack.c.l.bf16 %v588
      %v676 = vunpack.c.h.bf16 %v588
      %v677 = vadd.f32 %v661, %v662
      %v678 = vadd.f32 %v677, %v663
      %v679 = vadd.f32 %v678, %v664
      %v680 = vadd.f32 %v679, %v665
      %v681 = vadd.f32 %v680, %v666
      %v682 = vadd.f32 %v681, %v667
      %v683 = vadd.f32 %v682, %v668
      %v684 = vadd.f32 %v683, %v669
      %v685 = vadd.f32 %v684, %v670
      %v686 = vadd.f32 %v685, %v671
      %v687 = vadd.f32 %v686, %v672
      %v688 = vadd.f32 %v687, %v673
      %v689 = vadd.f32 %v688, %v674
      %v690 = vadd.f32 %v689, %v675
      %v691 = vadd.f32 %v690, %v676
      %v692 = vrot.slane %v691, 4
      %v693 = vadd.f32 %v691, %v692
      %v694 = vrot.slane %v693, 2
      %v695 = vadd.f32 %v693, %v694
      %v696 = vrot.slane %v695, 1
      %v697 = vadd.f32 %v695, %v696
      %v698 = vmul.f32 %v661, %v661
      %v699 = vmul.f32 %v662, %v662
      %v700 = vmul.f32 %v663, %v663
      %v701 = vmul.f32 %v664, %v664
      %v702 = vmul.f32 %v665, %v665
      %v703 = vmul.f32 %v666, %v666
      %v704 = vmul.f32 %v667, %v667
      %v705 = vmul.f32 %v668, %v668
      %v706 = vmul.f32 %v669, %v669
      %v707 = vmul.f32 %v670, %v670
      %v708 = vmul.f32 %v671, %v671
      %v709 = vmul.f32 %v672, %v672
      %v710 = vmul.f32 %v673, %v673
      %v711 = vmul.f32 %v674, %v674
      %v712 = vmul.f32 %v675, %v675
      %v713 = vmul.f32 %v676, %v676
      %v714 = vadd.f32 %v698, %v699
      %v715 = vadd.f32 %v714, %v700
      %v716 = vadd.f32 %v715, %v701
      %v717 = vadd.f32 %v716, %v702
      %v718 = vadd.f32 %v717, %v703
      %v719 = vadd.f32 %v718, %v704
      %v720 = vadd.f32 %v719, %v705
      %v721 = vadd.f32 %v720, %v706
      %v722 = vadd.f32 %v721, %v707
      %v723 = vadd.f32 %v722, %v708
      %v724 = vadd.f32 %v723, %v709
      %v725 = vadd.f32 %v724, %v710
      %v726 = vadd.f32 %v725, %v711
      %v727 = vadd.f32 %v726, %v712
      %v728 = vadd.f32 %v727, %v713
      %v729 = vrot.slane %v728, 4
      %v730 = vadd.f32 %v728, %v729
      %v731 = vrot.slane %v730, 2
      %v732 = vadd.f32 %v730, %v731
      %v733 = vrot.slane %v732, 1
      %v734 = vadd.f32 %v732, %v733
      %vm735 = vcmask 1040384
      %v736 = vsel %vm735, %v697, %v734
      %737 = vst [vmem:[%s265] sm:$0x3] %v736
      %s738 = smul.u32 16, %s18
      %p739 = scmp.lt.s32.totalorder %s738, 31
      %s740 = scalar_select %p739, %s738, 31
      %s741 = smul.addr %s740, 4
      %s742 = scalar_lea.vmem %s5, %s741
      %p743 = scmp.lt.s32.totalorder %s18, 1
      %s744 = scalar_select %p743, %s18, 1
      %s745 = smul.addr %s744, 2
      %s746 = scalar_lea.vmem %s6, %s745
      // Predicated region
      $region41: #{bottleneck_forward.6} parent=39 // pred_check
        %p747 = pneg %p146
      $region42: #{bottleneck_forward.6} parent=39 // pred_check_branch
        %749 = sbr.rel (%p747) target = $region44
      $region43: #{bottleneck_forward.6} parent=39 // pred_region
        %s750 = smul.u32 16, %s18
      $region44: #{bottleneck_forward.6} parent=39 // pred_fallthru
        _
      // Predicated region
      $region45: #{bottleneck_forward.6} parent=39 // pred_check
        %p751 = pneg %p172
      $region46: #{bottleneck_forward.6} parent=39 // pred_check_branch
        %753 = sbr.rel (%p751) target = $region48
      $region47: #{bottleneck_forward.6} parent=39 // pred_region
        _
      $region48: #{bottleneck_forward.6} parent=39 // pred_fallthru
        _
    $region40: #{bottleneck_forward.6} parent=5 // pred_fallthru
      _
    %p754 = scmp.le.s32.totalorder 2, %s13
    // Predicated region
    $region49: #{bottleneck_forward.6} parent=5 // pred_check
      %p755 = pneg %p754
    $region50: #{bottleneck_forward.6} parent=5 // pred_check_branch
      %757 = sbr.rel (%p755) target = $region52
    $region51: #{bottleneck_forward.6} parent=5 // pred_region
      %s758 = ssub.s32 %s13, 2
      // Predicated region
      $region53: #{bottleneck_forward.6} parent=51 // pred_check
        %p759 = pneg %p152
      $region54: #{bottleneck_forward.6} parent=51 // pred_check_branch
        %761 = sbr.rel (%p759) target = $region56
      $region55: #{bottleneck_forward.6} parent=51 // pred_region
        %s762 = smul.u32 16, %s19
        %p763 = scmp.lt.s32.totalorder %s762, 31
        %s764 = scalar_select %p763, %s762, 31
        %s765 = smul.addr %s764, 4
        %s766 = scalar_lea.vmem %s5, %s765
      $region56: #{bottleneck_forward.6} parent=51 // pred_fallthru
        _
      // Predicated region
      $region57: #{bottleneck_forward.6} parent=51 // pred_check
        %p767 = pneg %p178
      $region58: #{bottleneck_forward.6} parent=51 // pred_check_branch
        %769 = sbr.rel (%p767) target = $region60
      $region59: #{bottleneck_forward.6} parent=51 // pred_region
        %p770 = scmp.lt.s32.totalorder %s19, 1
        %s771 = scalar_select %p770, %s19, 1
        %s772 = smul.addr %s771, 2
        %s773 = scalar_lea.vmem %s6, %s772
      $region60: #{bottleneck_forward.6} parent=51 // pred_fallthru
        _
    $region52: #{bottleneck_forward.6} parent=5 // pred_fallthru
      _
  $region6: #{bottleneck_forward.6} parent=0 // loop_footer
    %s17 = sadd.s32 1, %s13
  $region7: #{bottleneck_forward.6} parent=0 // loop_footer_branch
    %12 = sbr.rel target = $region3
  $region8: #{bottleneck_forward.6} parent=0 // loop_exit
    _

// kernel: bottleneck_forward.7
$region0: #{bottleneck_forward.7}
  #allocation0 [shape = 'u32[]', space=smem, size = 0x4, offset = 0x4, fixed_abs, tag = 'smem constant byte address 0x4 - core index']
  #allocation1 [shape = 'u32[144,128]{1,0:T(1,128)}', space=vmem, size = 0x12000, scoped, tag = 'internal scratch']
  #allocation2 [shape = 'f32[1,1]{1,0:T(1,128)S(6)}', space=smem, size = 0x200, scoped, tag = 'scoped memory for bottleneck_forward.7']
  %s0 = inlined_call_operand.vmem [shape: bf16[256,128], index: 0, kind: input, shape index: {}]
  %s1 = inlined_call_operand.vmem [shape: bf16[256,128], index: 1, kind: input, shape index: {}]
  %s2 = inlined_call_operand.vmem [shape: f32[2,2,128], index: 2, kind: input, shape index: {}]
  %s3 = inlined_call_operand.vmem [shape: f32[1,128], index: 3, kind: input, shape index: {}]
  %s4 = inlined_call_operand.vmem [shape: f32[1,128], index: 4, kind: input, shape index: {}]
  %s5 = inlined_call_operand.vmem [shape: f32[1,128], index: 5, kind: input, shape index: {}]
  %s6 = inlined_call_operand.<no memory space> [shape: f32[1,1], index: 6, kind: input, shape index: {}]
  %s7 = inlined_call_operand.vmem [shape: f32[256,128], index: 7, kind: output, shape index: {}]
  %s8 = sld [smem:[#allocation0]]
  $region61: #{bottleneck_forward.7} parent=0
    _
  %s10 = ssub.s32 1, %s8
  %s11 = scalar_select 0, %s10, %s8
  %12 = sst [smem:[#allocation2]] %s6
  loop: start=0, step=1, limit=4
  $region2: #{bottleneck_forward.7} parent=0 // loop_pre_header
    _
  $region3: #{bottleneck_forward.7} parent=0 // loop_header
    %s14 = sphi 0, %s18
    %p15 = scmp.ge.s32.totalorder %s14, 4
    %s24 = sphi 0, %s26
    %s27 = sphi 0, %s24
    %s28 = sphi 0, %s27
    %s44 = sphi 0, %s28
    %s50 = sphi 0, %s52
    %s53 = sphi 0, %s50
    %s54 = sphi 0, %s53
    %s70 = sphi 0, %s54
    %s74 = sphi 0, %s74
    %s76 = sphi 0, %s74
    %s77 = sphi 0, %s76
    %s91 = sphi 0, %s77
    %s95 = sphi 0, %s95
    %s97 = sphi 0, %s95
    %s98 = sphi 0, %s97
    %s112 = sphi 0, %s98
    %s116 = sphi 0, %s116
    %s118 = sphi 0, %s116
    %s119 = sphi 0, %s118
    %s133 = sphi 0, %s119
    %s137 = sphi 0, %s137
    %s139 = sphi 0, %s137
    %s140 = sphi 0, %s139
    %s154 = sphi 0, %s140
    %s158 = sphi 0, %s158
    %s160 = sphi 0, %s158
    %s161 = sphi 0, %s160
    %s175 = sphi 0, %s161
    %s181 = sphi 0, %s183
    %s184 = sphi 0, %s181
    %s185 = sphi 0, %s184
    %s201 = sphi 0, %s185
  $region4: #{bottleneck_forward.7} parent=0 // loop_header_branch
    %17 = sbr.rel (%p15) target = $region8
  $region5: #{bottleneck_forward.7} parent=0 // loop_body
    %s19 = ssub.s32 %s14, 1
    %s20 = ssub.s32 %s14, 2
    %s21 = sadd.s32 %s14, 1
    %s22 = ssub.s32 %s14, %s21
    %p23 = scmp.eq.s32.totalorder %s22, 0
    %s25 = sadd.s32 %s24, 1
    %s26 = scalar_select %p23, %s24, %s25
    %p29 = pneg %p23
    %p30 = scmp.eq.s32.totalorder %s14, 1
    %p31 = por %p29, %p30
    %p32 = scmp.ne.s32.totalorder %s24, %s27
    %p33 = scmp.eq.s32.totalorder %s14, 0
    %p34 = por %p32, %p33
    %p35 = scmp.ne.s32.totalorder %s24, %s27
    %p36 = scmp.eq.s32.totalorder %s19, 1
    %p37 = por %p35, %p36
    %p38 = scmp.ne.s32.totalorder %s27, %s28
    %p39 = scmp.eq.s32.totalorder %s19, 0
    %p40 = por %p38, %p39
    %p41 = scmp.ne.s32.totalorder %s27, %s28
    %p42 = scmp.eq.s32.totalorder %s20, 1
    %p43 = por %p41, %p42
    %p45 = scmp.ne.s32.totalorder %s28, %s44
    %p46 = scmp.eq.s32.totalorder %s20, 0
    %p47 = por %p45, %p46
    %s48 = ssub.s32 %s14, %s21
    %p49 = scmp.eq.s32.totalorder %s48, 0
    %s51 = sadd.s32 %s50, 1
    %s52 = scalar_select %p49, %s50, %s51
    %p55 = pneg %p49
    %p56 = scmp.eq.s32.totalorder %s14, 1
    %p57 = por %p55, %p56
    %p58 = scmp.ne.s32.totalorder %s50, %s53
    %p59 = scmp.eq.s32.totalorder %s14, 0
    %p60 = por %p58, %p59
    %p61 = scmp.ne.s32.totalorder %s50, %s53
    %p62 = scmp.eq.s32.totalorder %s19, 1
    %p63 = por %p61, %p62
    %p64 = scmp.ne.s32.totalorder %s53, %s54
    %p65 = scmp.eq.s32.totalorder %s19, 0
    %p66 = por %p64, %p65
    %p67 = scmp.ne.s32.totalorder %s53, %s54
    %p68 = scmp.eq.s32.totalorder %s20, 1
    %p69 = por %p67, %p68
    %p71 = scmp.ne.s32.totalorder %s54, %s70
    %p72 = scmp.eq.s32.totalorder %s20, 0
    %p73 = por %p71, %p72
    %s75 = sadd.s32 %s74, 1
    %p78 = scmp.eq.s32.totalorder %s14, 1
    %p79 = scmp.ne.s32.totalorder %s74, %s76
    %p80 = scmp.eq.s32.totalorder %s14, 0
    %p81 = por %p79, %p80
    %p82 = scmp.ne.s32.totalorder %s74, %s76
    %p83 = scmp.eq.s32.totalorder %s19, 1
    %p84 = por %p82, %p83
    %p85 = scmp.ne.s32.totalorder %s76, %s77
    %p86 = scmp.eq.s32.totalorder %s19, 0
    %p87 = por %p85, %p86
    %p88 = scmp.ne.s32.totalorder %s76, %s77
    %p89 = scmp.eq.s32.totalorder %s20, 1
    %p90 = por %p88, %p89
    %p92 = scmp.ne.s32.totalorder %s77, %s91
    %p93 = scmp.eq.s32.totalorder %s20, 0
    %p94 = por %p92, %p93
    %s96 = sadd.s32 %s95, 1
    %p99 = scmp.eq.s32.totalorder %s14, 1
    %p100 = scmp.ne.s32.totalorder %s95, %s97
    %p101 = scmp.eq.s32.totalorder %s14, 0
    %p102 = por %p100, %p101
    %p103 = scmp.ne.s32.totalorder %s95, %s97
    %p104 = scmp.eq.s32.totalorder %s19, 1
    %p105 = por %p103, %p104
    %p106 = scmp.ne.s32.totalorder %s97, %s98
    %p107 = scmp.eq.s32.totalorder %s19, 0
    %p108 = por %p106, %p107
    %p109 = scmp.ne.s32.totalorder %s97, %s98
    %p110 = scmp.eq.s32.totalorder %s20, 1
    %p111 = por %p109, %p110
    %p113 = scmp.ne.s32.totalorder %s98, %s112
    %p114 = scmp.eq.s32.totalorder %s20, 0
    %p115 = por %p113, %p114
    %s117 = sadd.s32 %s116, 1
    %p120 = scmp.eq.s32.totalorder %s14, 1
    %p121 = scmp.ne.s32.totalorder %s116, %s118
    %p122 = scmp.eq.s32.totalorder %s14, 0
    %p123 = por %p121, %p122
    %p124 = scmp.ne.s32.totalorder %s116, %s118
    %p125 = scmp.eq.s32.totalorder %s19, 1
    %p126 = por %p124, %p125
    %p127 = scmp.ne.s32.totalorder %s118, %s119
    %p128 = scmp.eq.s32.totalorder %s19, 0
    %p129 = por %p127, %p128
    %p130 = scmp.ne.s32.totalorder %s118, %s119
    %p131 = scmp.eq.s32.totalorder %s20, 1
    %p132 = por %p130, %p131
    %p134 = scmp.ne.s32.totalorder %s119, %s133
    %p135 = scmp.eq.s32.totalorder %s20, 0
    %p136 = por %p134, %p135
    %s138 = sadd.s32 %s137, 1
    %p141 = scmp.eq.s32.totalorder %s14, 1
    %p142 = scmp.ne.s32.totalorder %s137, %s139
    %p143 = scmp.eq.s32.totalorder %s14, 0
    %p144 = por %p142, %p143
    %p145 = scmp.ne.s32.totalorder %s137, %s139
    %p146 = scmp.eq.s32.totalorder %s19, 1
    %p147 = por %p145, %p146
    %p148 = scmp.ne.s32.totalorder %s139, %s140
    %p149 = scmp.eq.s32.totalorder %s19, 0
    %p150 = por %p148, %p149
    %p151 = scmp.ne.s32.totalorder %s139, %s140
    %p152 = scmp.eq.s32.totalorder %s20, 1
    %p153 = por %p151, %p152
    %p155 = scmp.ne.s32.totalorder %s140, %s154
    %p156 = scmp.eq.s32.totalorder %s20, 0
    %p157 = por %p155, %p156
    %s159 = sadd.s32 %s158, 1
    %p162 = scmp.eq.s32.totalorder %s14, 1
    %p163 = scmp.ne.s32.totalorder %s158, %s160
    %p164 = scmp.eq.s32.totalorder %s14, 0
    %p165 = por %p163, %p164
    %p166 = scmp.ne.s32.totalorder %s158, %s160
    %p167 = scmp.eq.s32.totalorder %s19, 1
    %p168 = por %p166, %p167
    %p169 = scmp.ne.s32.totalorder %s160, %s161
    %p170 = scmp.eq.s32.totalorder %s19, 0
    %p171 = por %p169, %p170
    %p172 = scmp.ne.s32.totalorder %s160, %s161
    %p173 = scmp.eq.s32.totalorder %s20, 1
    %p174 = por %p172, %p173
    %p176 = scmp.ne.s32.totalorder %s161, %s175
    %p177 = scmp.eq.s32.totalorder %s20, 0
    %p178 = por %p176, %p177
    %s179 = ssub.s32 %s14, %s21
    %p180 = scmp.eq.s32.totalorder %s179, 0
    %s182 = sadd.s32 %s181, 1
    %s183 = scalar_select %p180, %s181, %s182
    %p186 = pneg %p180
    %p187 = scmp.eq.s32.totalorder %s14, 1
    %p188 = por %p186, %p187
    %p189 = scmp.ne.s32.totalorder %s181, %s184
    %p190 = scmp.eq.s32.totalorder %s14, 0
    %p191 = por %p189, %p190
    %p192 = scmp.ne.s32.totalorder %s181, %s184
    %p193 = scmp.eq.s32.totalorder %s19, 1
    %p194 = por %p192, %p193
    %p195 = scmp.ne.s32.totalorder %s184, %s185
    %p196 = scmp.eq.s32.totalorder %s19, 0
    %p197 = por %p195, %p196
    %p198 = scmp.ne.s32.totalorder %s184, %s185
    %p199 = scmp.eq.s32.totalorder %s20, 1
    %p200 = por %p198, %p199
    %p202 = scmp.ne.s32.totalorder %s185, %s201
    %p203 = scmp.eq.s32.totalorder %s20, 0
    %p204 = por %p202, %p203
    %p205 = scmp.le.s32.totalorder 1, %s14
    %p206 = scmp.lt.s32.totalorder %s14, 3
    %p207 = pnand %p205, %p206
    %p208 = pneg %p207
    // Predicated region
    $region9: #{bottleneck_forward.7} parent=5 // pred_check
      _
    $region10: #{bottleneck_forward.7} parent=5 // pred_check_branch
      %210 = sbr.rel (%p207) target = $region12
    $region11: #{bottleneck_forward.7} parent=5 // pred_region
      %s211 = ssub.s32 %s14, 1
      // Predicated region
      $region13: #{bottleneck_forward.7} parent=11 // pred_check
        %p212 = pneg %p87
      $region14: #{bottleneck_forward.7} parent=11 // pred_check_branch
        %214 = sbr.rel (%p212) target = $region16
      $region15: #{bottleneck_forward.7} parent=11 // pred_region
        _
      $region16: #{bottleneck_forward.7} parent=11 // pred_fallthru
        _
      // Predicated region
      $region17: #{bottleneck_forward.7} parent=11 // pred_check
        %p215 = pneg %p108
      $region18: #{bottleneck_forward.7} parent=11 // pred_check_branch
        %217 = sbr.rel (%p215) target = $region20
      $region19: #{bottleneck_forward.7} parent=11 // pred_region
        _
      $region20: #{bottleneck_forward.7} parent=11 // pred_fallthru
        _
      // Predicated region
      $region21: #{bottleneck_forward.7} parent=11 // pred_check
        %p218 = pneg %p129
      $region22: #{bottleneck_forward.7} parent=11 // pred_check_branch
        %220 = sbr.rel (%p218) target = $region24
      $region23: #{bottleneck_forward.7} parent=11 // pred_region
        _
      $region24: #{bottleneck_forward.7} parent=11 // pred_fallthru
        _
      // Predicated region
      $region25: #{bottleneck_forward.7} parent=11 // pred_check
        %p221 = pneg %p150
      $region26: #{bottleneck_forward.7} parent=11 // pred_check_branch
        %223 = sbr.rel (%p221) target = $region28
      $region27: #{bottleneck_forward.7} parent=11 // pred_region
        _
      $region28: #{bottleneck_forward.7} parent=11 // pred_fallthru
        _
      // Predicated region
      $region29: #{bottleneck_forward.7} parent=11 // pred_check
        %p224 = pneg %p171
      $region30: #{bottleneck_forward.7} parent=11 // pred_check_branch
        %226 = sbr.rel (%p224) target = $region32
      $region31: #{bottleneck_forward.7} parent=11 // pred_region
        _
      $region32: #{bottleneck_forward.7} parent=11 // pred_fallthru
        _
    $region12: #{bottleneck_forward.7} parent=5 // pred_fallthru
      _
    %p227 = scmp.lt.s32.totalorder %s14, 2
    // Predicated region
    $region33: #{bottleneck_forward.7} parent=5 // pred_check
      %p228 = pneg %p227
    $region34: #{bottleneck_forward.7} parent=5 // pred_check_branch
      %230 = sbr.rel (%p228) target = $region36
    $region35: #{bottleneck_forward.7} parent=5 // pred_region
      // Predicated region
      $region37: #{bottleneck_forward.7} parent=35 // pred_check
        %p231 = pneg %p34
      $region38: #{bottleneck_forward.7} parent=35 // pred_check_branch
        %233 = sbr.rel (%p231) target = $region40
      $region39: #{bottleneck_forward.7} parent=35 // pred_region
        %s234 = smul.u32 16, %s14
        %p235 = scmp.lt.s32.totalorder %s234, 31
        %s236 = scalar_select %p235, %s234, 31
        %s237 = smul.addr %s236, 4
        %s238 = scalar_lea.vmem %s0, %s237
        %s239 = smul.u32 16, %s14
      $region40: #{bottleneck_forward.7} parent=35 // pred_fallthru
        _
      // Predicated region
      $region41: #{bottleneck_forward.7} parent=35 // pred_check
        %p240 = pneg %p60
      $region42: #{bottleneck_forward.7} parent=35 // pred_check_branch
        %242 = sbr.rel (%p240) target = $region44
      $region43: #{bottleneck_forward.7} parent=35 // pred_region
        %s243 = smul.u32 16, %s14
        %p244 = scmp.lt.s32.totalorder %s243, 31
        %s245 = scalar_select %p244, %s243, 31
        %s246 = smul.addr %s245, 4
        %s247 = scalar_lea.vmem %s1, %s246
        %s248 = smul.u32 16, %s14
      $region44: #{bottleneck_forward.7} parent=35 // pred_fallthru
        _
    $region36: #{bottleneck_forward.7} parent=5 // pred_fallthru
      _
    %p249 = scmp.le.s32.totalorder 1, %s14
    %p250 = scmp.lt.s32.totalorder %s14, 3
    %p251 = pnand %p249, %p250
    %p252 = pneg %p251
    // Predicated region
    $region45: #{bottleneck_forward.7} parent=5 // pred_check
      _
    $region46: #{bottleneck_forward.7} parent=5 // pred_check_branch
      %254 = sbr.rel (%p251) target = $region48
    $region47: #{bottleneck_forward.7} parent=5 // pred_region
      %s255 = ssub.s32 %s14, 1
      %s256 = smul.u32 16, %s19
      %p257 = scmp.lt.s32.totalorder %s256, 31
      %s258 = scalar_select %p257, %s256, 31
      %s259 = smul.addr %s258, 4
      %s260 = scalar_lea.vmem %s0, %s259
      %p261 = pneg %p40
      %p262 = pneg %p37
      %s263 = smul.u32 16, %s19
      %p264 = scmp.lt.s32.totalorder %s263, 31
      %s265 = scalar_select %p264, %s263, 31
      %s266 = smul.addr %s265, 4
      %s267 = scalar_lea.vmem %s1, %s266
      %p268 = pneg %p66
      %p269 = pneg %p63
      %p270 = pneg %p87
      %p271 = pneg %p84
      %p272 = pneg %p108
      %p273 = pneg %p105
      %p274 = pneg %p129
      %p275 = pneg %p126
      %p276 = pneg %p150
      %p277 = pneg %p147
      %p278 = pneg %p171
      %p279 = pneg %p168
      %p280 = pneg %p197
      %p281 = pneg %p194
      %s282 = smul.u32 16, %s19
      %p283 = scmp.lt.s32.totalorder %s282, 31
      %s284 = scalar_select %p283, %s282, 31
      %s285 = smul.addr %s284, 8
      %s286 = scalar_lea.vmem %s7, %s285
      %s287 = smul.u32 16, %s19
      %p288 = scmp.lt.s32.totalorder %s287, 31
      %s289 = scalar_select %p288, %s287, 31
      %s290 = smul.addr %s289, 4
      %s291 = scalar_lea.vmem %s0, %s290
      %s292 = smul.u32 16, %s19
      %s293 = smul.u32 16, %s19
      %p294 = scmp.lt.s32.totalorder %s293, 31
      %s295 = scalar_select %p294, %s293, 31
      %s296 = smul.addr %s295, 4
      %s297 = scalar_lea.vmem %s1, %s296
      %s298 = smul.u32 16, %s19
      %s299 = smul.u32 16, %s19
      %p300 = scmp.lt.s32.totalorder %s299, 31
      %s301 = scalar_select %p300, %s299, 31
      %s302 = smul.addr %s301, 8
      %s303 = scalar_lea.vmem %s7, %s302
      %s304 = smul.u32 16, %s19
      %v305 = vld [vmem:[%s2] sm:$0x3]
      %v306 = vld [vmem:[%s2 + $0x2] sm:$0x3]
      %v307 = vld [vmem:[%s3] sm:$0x1]
      %v308 = vld [vmem:[%s4] sm:$0x1]
      %vm309 = vcmask 1041408
      %v310 = vsel %vm309, %v305, 0.0
      %v311 = vsel %vm309, %v306, 0.0
      %v312 = vadd.f32 %v310, %v311
      %v313 = vmul.f32 %v312, 0.00390625
      %v314 = vmul.f32 %v313, %v313
      %v316 = vrot.slane %v314, 7
      %v318 = vsub.f32 %v313, %v316
      %v319 = vmax.f32 %v318, 0.0
      %v320 = vadd.f32 %v319, 1e-05
      %v321 = vrsqrt.pop %v320
      %v324 = vunpack.c.l.s4 1966171168
      %v325 = vunpack.c.0.s8 %v324
      %v326 = vlaneseq
      %v327 = vshrl.u32 %v326, 7
      %v328 = vsub.s32 %v325, %v327
      %v329 = vrot.slane %v321, %v328
      %v330 = vcombine.high %v329, %v329
      %v332 = vunpack.c.l.s4 1966171168
      %v333 = vunpack.c.0.s8 %v332
      %v334 = vlaneseq
      %v335 = vshrl.u32 %v334, 7
      %v336 = vsub.s32 %v333, %v335
      %v337 = vrot.slane %v330, %v336
      %v339 = vmul.f32 %v307, %v337
      %v340 = vmul.f32 %v313, %v339
      %v341 = vsub.f32 %v308, %v340
      %v342 = vld [vmem:[%s291] sm:$0xf]
      %v343 = vld [vmem:[%s291 + $0x4] sm:$0xf]
      %v344 = vld [vmem:[%s291 + $0x8] sm:$0xf]
      %v345 = vld [vmem:[%s291 + $0xc] sm:$0xf]
      %v346 = vld [vmem:[%s291 + $0x10] sm:$0xf]
      %v347 = vld [vmem:[%s291 + $0x14] sm:$0xf]
      %v348 = vld [vmem:[%s291 + $0x18] sm:$0xf]
      %v349 = vld [vmem:[%s291 + $0x1c] sm:$0xf]
      %v350 = vld [vmem:[%s291 + $0x20] sm:$0xf]
      %v351 = vld [vmem:[%s291 + $0x24] sm:$0xf]
      %v352 = vld [vmem:[%s291 + $0x28] sm:$0xf]
      %v353 = vld [vmem:[%s291 + $0x2c] sm:$0xf]
      %v354 = vld [vmem:[%s291 + $0x30] sm:$0xf]
      %v355 = vld [vmem:[%s291 + $0x34] sm:$0xf]
      %v356 = vld [vmem:[%s291 + $0x38] sm:$0xf]
      %v357 = vld [vmem:[%s291 + $0x3c] sm:$0xf]
      %v358 = vunpack.c.l.bf16 %v342
      %v359 = vunpack.c.l.bf16 %v343
      %v360 = vunpack.c.l.bf16 %v344
      %v361 = vunpack.c.l.bf16 %v345
      %v362 = vunpack.c.l.bf16 %v346
      %v363 = vunpack.c.l.bf16 %v347
      %v364 = vunpack.c.l.bf16 %v348
      %v365 = vunpack.c.l.bf16 %v349
      %v366 = vunpack.c.l.bf16 %v350
      %v367 = vunpack.c.l.bf16 %v351
      %v368 = vunpack.c.l.bf16 %v352
      %v369 = vunpack.c.l.bf16 %v353
      %v370 = vunpack.c.l.bf16 %v354
      %v371 = vunpack.c.l.bf16 %v355
      %v372 = vunpack.c.l.bf16 %v356
      %v373 = vunpack.c.l.bf16 %v357
      %v375 = vlaneseq
      %v376 = vshrl.u32 %v375, 7
      %v377 = vsub.s32 0, %v376
      %v378 = vrot.slane %v339, %v377
      %v380 = vmul.f32 %v358, %v378
      %v381 = vmul.f32 %v359, %v378
      %v382 = vmul.f32 %v360, %v378
      %v383 = vmul.f32 %v361, %v378
      %v384 = vmul.f32 %v362, %v378
      %v385 = vmul.f32 %v363, %v378
      %v386 = vmul.f32 %v364, %v378
      %v387 = vmul.f32 %v365, %v378
      %v388 = vmul.f32 %v366, %v378
      %v389 = vmul.f32 %v367, %v378
      %v390 = vmul.f32 %v368, %v378
      %v391 = vmul.f32 %v369, %v378
      %v392 = vmul.f32 %v370, %v378
      %v393 = vmul.f32 %v371, %v378
      %v394 = vmul.f32 %v372, %v378
      %v395 = vmul.f32 %v373, %v378
      %v397 = vlaneseq
      %v398 = vshrl.u32 %v397, 7
      %v399 = vsub.s32 0, %v398
      %v400 = vrot.slane %v341, %v399
      %v402 = vadd.f32 %v380, %v400
      %v403 = vadd.f32 %v381, %v400
      %v404 = vadd.f32 %v382, %v400
      %v405 = vadd.f32 %v383, %v400
      %v406 = vadd.f32 %v384, %v400
      %v407 = vadd.f32 %v385, %v400
      %v408 = vadd.f32 %v386, %v400
      %v409 = vadd.f32 %v387, %v400
      %v410 = vadd.f32 %v388, %v400
      %v411 = vadd.f32 %v389, %v400
      %v412 = vadd.f32 %v390, %v400
      %v413 = vadd.f32 %v391, %v400
      %v414 = vadd.f32 %v392, %v400
      %v415 = vadd.f32 %v393, %v400
      %v416 = vadd.f32 %v394, %v400
      %v417 = vadd.f32 %v395, %v400
      %v418 = vld [vmem:[%s5] sm:$0x1]
      %v420 = vlaneseq
      %v421 = vshrl.u32 %v420, 7
      %v422 = vsub.s32 0, %v421
      %v423 = vrot.slane %v418, %v422
      %v425 = vmul.f32 %v402, %v423
      %v426 = vmul.f32 %v403, %v423
      %v427 = vmul.f32 %v404, %v423
      %v428 = vmul.f32 %v405, %v423
      %v429 = vmul.f32 %v406, %v423
      %v430 = vmul.f32 %v407, %v423
      %v431 = vmul.f32 %v408, %v423
      %v432 = vmul.f32 %v409, %v423
      %v433 = vmul.f32 %v410, %v423
      %v434 = vmul.f32 %v411, %v423
      %v435 = vmul.f32 %v412, %v423
      %v436 = vmul.f32 %v413, %v423
      %v437 = vmul.f32 %v414, %v423
      %v438 = vmul.f32 %v415, %v423
      %v439 = vmul.f32 %v416, %v423
      %v440 = vmul.f32 %v417, %v423
      %441 = vadd.xlane.f32.xlu0 %v425
      %v442 = vpop.xlane.xlu0 %441
      %443 = vadd.xlane.f32.xlu0 %v426
      %v444 = vpop.xlane.xlu0 %443
      %445 = vadd.xlane.f32.xlu0 %v427
      %v446 = vpop.xlane.xlu0 %445
      %447 = vadd.xlane.f32.xlu0 %v428
      %v448 = vpop.xlane.xlu0 %447
      %449 = vadd.xlane.f32.xlu0 %v429
      %v450 = vpop.xlane.xlu0 %449
      %451 = vadd.xlane.f32.xlu0 %v430
      %v452 = vpop.xlane.xlu0 %451
      %453 = vadd.xlane.f32.xlu0 %v431
      %v454 = vpop.xlane.xlu0 %453
      %455 = vadd.xlane.f32.xlu0 %v432
      %v456 = vpop.xlane.xlu0 %455
      %457 = vadd.xlane.f32.xlu0 %v433
      %v458 = vpop.xlane.xlu0 %457
      %459 = vadd.xlane.f32.xlu0 %v434
      %v460 = vpop.xlane.xlu0 %459
      %461 = vadd.xlane.f32.xlu0 %v435
      %v462 = vpop.xlane.xlu0 %461
      %463 = vadd.xlane.f32.xlu0 %v436
      %v464 = vpop.xlane.xlu0 %463
      %465 = vadd.xlane.f32.xlu0 %v437
      %v466 = vpop.xlane.xlu0 %465
      %467 = vadd.xlane.f32.xlu0 %v438
      %v468 = vpop.xlane.xlu0 %467
      %469 = vadd.xlane.f32.xlu0 %v439
      %v470 = vpop.xlane.xlu0 %469
      %471 = vadd.xlane.f32.xlu0 %v440
      %v472 = vpop.xlane.xlu0 %471
      %s473 = sld [smem:[#allocation2]]
      %v474 = vstv %s473
      %v475 = vadd.f32 %v442, %v474
      %v476 = vadd.f32 %v444, %v474
      %v477 = vadd.f32 %v446, %v474
      %v478 = vadd.f32 %v448, %v474
      %v479 = vadd.f32 %v450, %v474
      %v480 = vadd.f32 %v452, %v474
      %v481 = vadd.f32 %v454, %v474
      %v482 = vadd.f32 %v456, %v474
      %v483 = vadd.f32 %v458, %v474
      %v484 = vadd.f32 %v460, %v474
      %v485 = vadd.f32 %v462, %v474
      %v486 = vadd.f32 %v464, %v474
      %v487 = vadd.f32 %v466, %v474
      %v488 = vadd.f32 %v468, %v474
      %v489 = vadd.f32 %v470, %v474
      %v490 = vadd.f32 %v472, %v474
      %v491 = vsub.f32 0.0, %v475
      %v492 = vsub.f32 0.0, %v476
      %v493 = vsub.f32 0.0, %v477
      %v494 = vsub.f32 0.0, %v478
      %v495 = vsub.f32 0.0, %v479
      %v496 = vsub.f32 0.0, %v480
      %v497 = vsub.f32 0.0, %v481
      %v498 = vsub.f32 0.0, %v482
      %v499 = vsub.f32 0.0, %v483
      %v500 = vsub.f32 0.0, %v484
      %v501 = vsub.f32 0.0, %v485
      %v502 = vsub.f32 0.0, %v486
      %v503 = vsub.f32 0.0, %v487
      %v504 = vsub.f32 0.0, %v488
      %v505 = vsub.f32 0.0, %v489
      %v506 = vsub.f32 0.0, %v490
      %v507 = vmul.f32 %v491, 1.442695
      %v508 = vpow.pop %v507
      %v509 = vmul.f32 %v492, 1.442695
      %v510 = vpow.pop %v509
      %v511 = vmul.f32 %v493, 1.442695
      %v512 = vpow.pop %v511
      %v513 = vmul.f32 %v494, 1.442695
      %v514 = vpow.pop %v513
      %v515 = vmul.f32 %v495, 1.442695
      %v516 = vpow.pop %v515
      %v517 = vmul.f32 %v496, 1.442695
      %v518 = vpow.pop %v517
      %v519 = vmul.f32 %v497, 1.442695
      %v520 = vpow.pop %v519
      %v521 = vmul.f32 %v498, 1.442695
      %v522 = vpow.pop %v521
      %v523 = vmul.f32 %v499, 1.442695
      %v524 = vpow.pop %v523
      %v525 = vmul.f32 %v500, 1.442695
      %v526 = vpow.pop %v525
      %v527 = vmul.f32 %v501, 1.442695
      %v528 = vpow.pop %v527
      %v529 = vmul.f32 %v502, 1.442695
      %v530 = vpow.pop %v529
      %v531 = vmul.f32 %v503, 1.442695
      %v532 = vpow.pop %v531
      %v533 = vmul.f32 %v504, 1.442695
      %v534 = vpow.pop %v533
      %v535 = vmul.f32 %v505, 1.442695
      %v536 = vpow.pop %v535
      %v537 = vmul.f32 %v506, 1.442695
      %v538 = vpow.pop %v537
      %v539 = vadd.f32 %v508, 1.0
      %v540 = vadd.f32 %v510, 1.0
      %v541 = vadd.f32 %v512, 1.0
      %v542 = vadd.f32 %v514, 1.0
      %v543 = vadd.f32 %v516, 1.0
      %v544 = vadd.f32 %v518, 1.0
      %v545 = vadd.f32 %v520, 1.0
      %v546 = vadd.f32 %v522, 1.0
      %v547 = vadd.f32 %v524, 1.0
      %v548 = vadd.f32 %v526, 1.0
      %v549 = vadd.f32 %v528, 1.0
      %v550 = vadd.f32 %v530, 1.0
      %v551 = vadd.f32 %v532, 1.0
      %v552 = vadd.f32 %v534, 1.0
      %v553 = vadd.f32 %v536, 1.0
      %v554 = vadd.f32 %v538, 1.0
      %v555 = vrcp.pop %v539
      %v556 = vrcp.pop %v540
      %v557 = vrcp.pop %v541
      %v558 = vrcp.pop %v542
      %v559 = vrcp.pop %v543
      %v560 = vrcp.pop %v544
      %v561 = vrcp.pop %v545
      %v562 = vrcp.pop %v546
      %v563 = vrcp.pop %v547
      %v564 = vrcp.pop %v548
      %v565 = vrcp.pop %v549
      %v566 = vrcp.pop %v550
      %v567 = vrcp.pop %v551
      %v568 = vrcp.pop %v552
      %v569 = vrcp.pop %v553
      %v570 = vrcp.pop %v554
      %v571 = vmul.f32 %v402, %v555
      %v572 = vmul.f32 %v403, %v556
      %v573 = vmul.f32 %v404, %v557
      %v574 = vmul.f32 %v405, %v558
      %v575 = vmul.f32 %v406, %v559
      %v576 = vmul.f32 %v407, %v560
      %v577 = vmul.f32 %v408, %v561
      %v578 = vmul.f32 %v409, %v562
      %v579 = vmul.f32 %v410, %v563
      %v580 = vmul.f32 %v411, %v564
      %v581 = vmul.f32 %v412, %v565
      %v582 = vmul.f32 %v413, %v566
      %v583 = vmul.f32 %v414, %v567
      %v584 = vmul.f32 %v415, %v568
      %v585 = vmul.f32 %v416, %v569
      %v586 = vmul.f32 %v417, %v570
      %v587 = vld [vmem:[%s297] sm:$0xf]
      %v588 = vld [vmem:[%s297 + $0x4] sm:$0xf]
      %v589 = vld [vmem:[%s297 + $0x8] sm:$0xf]
      %v590 = vld [vmem:[%s297 + $0xc] sm:$0xf]
      %v591 = vld [vmem:[%s297 + $0x10] sm:$0xf]
      %v592 = vld [vmem:[%s297 + $0x14] sm:$0xf]
      %v593 = vld [vmem:[%s297 + $0x18] sm:$0xf]
      %v594 = vld [vmem:[%s297 + $0x1c] sm:$0xf]
      %v595 = vld [vmem:[%s297 + $0x20] sm:$0xf]
      %v596 = vld [vmem:[%s297 + $0x24] sm:$0xf]
      %v597 = vld [vmem:[%s297 + $0x28] sm:$0xf]
      %v598 = vld [vmem:[%s297 + $0x2c] sm:$0xf]
      %v599 = vld [vmem:[%s297 + $0x30] sm:$0xf]
      %v600 = vld [vmem:[%s297 + $0x34] sm:$0xf]
      %v601 = vld [vmem:[%s297 + $0x38] sm:$0xf]
      %v602 = vld [vmem:[%s297 + $0x3c] sm:$0xf]
      %v603 = vunpack.c.l.bf16 %v587
      %v604 = vunpack.c.l.bf16 %v588
      %v605 = vunpack.c.l.bf16 %v589
      %v606 = vunpack.c.l.bf16 %v590
      %v607 = vunpack.c.l.bf16 %v591
      %v608 = vunpack.c.l.bf16 %v592
      %v609 = vunpack.c.l.bf16 %v593
      %v610 = vunpack.c.l.bf16 %v594
      %v611 = vunpack.c.l.bf16 %v595
      %v612 = vunpack.c.l.bf16 %v596
      %v613 = vunpack.c.l.bf16 %v597
      %v614 = vunpack.c.l.bf16 %v598
      %v615 = vunpack.c.l.bf16 %v599
      %v616 = vunpack.c.l.bf16 %v600
      %v617 = vunpack.c.l.bf16 %v601
      %v618 = vunpack.c.l.bf16 %v602
      %v619 = vadd.f32 %v571, %v603
      %v620 = vadd.f32 %v572, %v604
      %v621 = vadd.f32 %v573, %v605
      %v622 = vadd.f32 %v574, %v606
      %v623 = vadd.f32 %v575, %v607
      %v624 = vadd.f32 %v576, %v608
      %v625 = vadd.f32 %v577, %v609
      %v626 = vadd.f32 %v578, %v610
      %v627 = vadd.f32 %v579, %v611
      %v628 = vadd.f32 %v580, %v612
      %v629 = vadd.f32 %v581, %v613
      %v630 = vadd.f32 %v582, %v614
      %v631 = vadd.f32 %v583, %v615
      %v632 = vadd.f32 %v584, %v616
      %v633 = vadd.f32 %v585, %v617
      %v634 = vadd.f32 %v586, %v618
      %v635 = vmax.f32 %v619, 0.0
      %v636 = vmax.f32 %v620, 0.0
      %v637 = vmax.f32 %v621, 0.0
      %v638 = vmax.f32 %v622, 0.0
      %v639 = vmax.f32 %v623, 0.0
      %v640 = vmax.f32 %v624, 0.0
      %v641 = vmax.f32 %v625, 0.0
      %v642 = vmax.f32 %v626, 0.0
      %v643 = vmax.f32 %v627, 0.0
      %v644 = vmax.f32 %v628, 0.0
      %v645 = vmax.f32 %v629, 0.0
      %v646 = vmax.f32 %v630, 0.0
      %v647 = vmax.f32 %v631, 0.0
      %v648 = vmax.f32 %v632, 0.0
      %v649 = vmax.f32 %v633, 0.0
      %v650 = vmax.f32 %v634, 0.0
      %v651 = vmin.f32 %v635, 6.0
      %v652 = vmin.f32 %v636, 6.0
      %v653 = vmin.f32 %v637, 6.0
      %v654 = vmin.f32 %v638, 6.0
      %v655 = vmin.f32 %v639, 6.0
      %v656 = vmin.f32 %v640, 6.0
      %v657 = vmin.f32 %v641, 6.0
      %v658 = vmin.f32 %v642, 6.0
      %v659 = vmin.f32 %v643, 6.0
      %v660 = vmin.f32 %v644, 6.0
      %v661 = vmin.f32 %v645, 6.0
      %v662 = vmin.f32 %v646, 6.0
      %v663 = vmin.f32 %v647, 6.0
      %v664 = vmin.f32 %v648, 6.0
      %v665 = vmin.f32 %v649, 6.0
      %v666 = vmin.f32 %v650, 6.0
      %667 = vst [vmem:[%s303] sm:$0xff] %v651
      %668 = vst [vmem:[%s303 + $0x8] sm:$0xff] %v652
      %669 = vst [vmem:[%s303 + $0x10] sm:$0xff] %v653
      %670 = vst [vmem:[%s303 + $0x18] sm:$0xff] %v654
      %671 = vst [vmem:[%s303 + $0x20] sm:$0xff] %v655
      %672 = vst [vmem:[%s303 + $0x28] sm:$0xff] %v656
      %673 = vst [vmem:[%s303 + $0x30] sm:$0xff] %v657
      %674 = vst [vmem:[%s303 + $0x38] sm:$0xff] %v658
      %675 = vst [vmem:[%s303 + $0x40] sm:$0xff] %v659
      %676 = vst [vmem:[%s303 + $0x48] sm:$0xff] %v660
      %677 = vst [vmem:[%s303 + $0x50] sm:$0xff] %v661
      %678 = vst [vmem:[%s303 + $0x58] sm:$0xff] %v662
      %679 = vst [vmem:[%s303 + $0x60] sm:$0xff] %v663
      %680 = vst [vmem:[%s303 + $0x68] sm:$0xff] %v664
      %681 = vst [vmem:[%s303 + $0x70] sm:$0xff] %v665
      %682 = vst [vmem:[%s303 + $0x78] sm:$0xff] %v666
      %s683 = smul.u32 16, %s19
      %p684 = scmp.lt.s32.totalorder %s683, 31
      %s685 = scalar_select %p684, %s683, 31
      %s686 = smul.addr %s685, 8
      %s687 = scalar_lea.vmem %s7, %s686
      // Predicated region
      $region49: #{bottleneck_forward.7} parent=47 // pred_check
        %p688 = pneg %p194
      $region50: #{bottleneck_forward.7} parent=47 // pred_check_branch
        %690 = sbr.rel (%p688) target = $region52
      $region51: #{bottleneck_forward.7} parent=47 // pred_region
        %s691 = smul.u32 16, %s19
      $region52: #{bottleneck_forward.7} parent=47 // pred_fallthru
        _
    $region48: #{bottleneck_forward.7} parent=5 // pred_fallthru
      _
    %p692 = scmp.le.s32.totalorder 2, %s14
    // Predicated region
    $region53: #{bottleneck_forward.7} parent=5 // pred_check
      %p693 = pneg %p692
    $region54: #{bottleneck_forward.7} parent=5 // pred_check_branch
      %695 = sbr.rel (%p693) target = $region56
    $region55: #{bottleneck_forward.7} parent=5 // pred_region
      %s696 = ssub.s32 %s14, 2
      // Predicated region
      $region57: #{bottleneck_forward.7} parent=55 // pred_check
        %p697 = pneg %p200
      $region58: #{bottleneck_forward.7} parent=55 // pred_check_branch
        %699 = sbr.rel (%p697) target = $region60
      $region59: #{bottleneck_forward.7} parent=55 // pred_region
        %s700 = smul.u32 16, %s20
        %p701 = scmp.lt.s32.totalorder %s700, 31
        %s702 = scalar_select %p701, %s700, 31
        %s703 = smul.addr %s702, 8
        %s704 = scalar_lea.vmem %s7, %s703
      $region60: #{bottleneck_forward.7} parent=55 // pred_fallthru
        _
    $region56: #{bottleneck_forward.7} parent=5 // pred_fallthru
      _
  $region6: #{bottleneck_forward.7} parent=0 // loop_footer
    %s18 = sadd.s32 1, %s14
  $region7: #{bottleneck_forward.7} parent=0 // loop_footer_branch
    %13 = sbr.rel target = $region3
  $region8: #{bottleneck_forward.7} parent=0 // loop_exit
    _

// kernel: bottleneck_forward.5
$region0: #{bottleneck_forward.5}
  #allocation0 [shape = 'u32[]', space=smem, size = 0x4, offset = 0x4, fixed_abs, tag = 'smem constant byte address 0x4 - core index']
  #allocation1 [shape = 'u32[144,128]{1,0:T(1,128)}', space=vmem, size = 0x12000, scoped, tag = 'internal scratch']
  %s0 = inlined_call_operand.vmem [shape: bf16[256,128], index: 0, kind: input, shape index: {}, may-alias: {0,1,2}]
  %s1 = inlined_call_operand.vmem [shape: bf16[256,128], index: 1, kind: input, shape index: {}, may-alias: {0,1,2}]
  %s2 = inlined_call_operand.vmem [shape: bf16[256,128], index: 2, kind: input, shape index: {}, may-alias: {0,1,2}]
  %s3 = inlined_call_operand.vmem [shape: f32[2,2,128], index: 3, kind: input, shape index: {}]
  %s4 = inlined_call_operand.vmem [shape: f32[1,128], index: 4, kind: input, shape index: {}]
  %s5 = inlined_call_operand.vmem [shape: f32[1,128], index: 5, kind: input, shape index: {}]
  %s6 = inlined_call_operand.vmem [shape: bf16[384,128], index: 6, kind: input, shape index: {}]
  %s7 = inlined_call_operand.vmem [shape: bf16[256,128], index: 7, kind: output, shape index: {0}]
  %s8 = inlined_call_operand.vmem [shape: f32[2,2,128], index: 8, kind: output, shape index: {1}]
  %9 = xla_tuple %s7, %s8
  %s10 = sld [smem:[#allocation0]]
  $region69: #{bottleneck_forward.5} parent=0
    _
  %s12 = ssub.s32 1, %s10
  %s13 = scalar_select 0, %s12, %s10
  loop: start=0, step=1, limit=4
  $region2: #{bottleneck_forward.5} parent=0 // loop_pre_header
    _
  $region3: #{bottleneck_forward.5} parent=0 // loop_header
    %s15 = sphi 0, %s19
    %p16 = scmp.ge.s32.totalorder %s15, 4
    %s25 = sphi 0, %s27
    %s28 = sphi 0, %s25
    %s29 = sphi 0, %s28
    %s45 = sphi 0, %s29
    %s59 = sphi 0, %s61
    %s62 = sphi 0, %s59
    %s63 = sphi 0, %s62
    %s79 = sphi 0, %s63
    %s93 = sphi 0, %s95
    %s96 = sphi 0, %s93
    %s97 = sphi 0, %s96
    %s113 = sphi 0, %s97
    %s117 = sphi 0, %s117
    %s119 = sphi 0, %s117
    %s120 = sphi 0, %s119
    %s134 = sphi 0, %s120
    %s138 = sphi 0, %s138
    %s140 = sphi 0, %s138
    %s141 = sphi 0, %s140
    %s155 = sphi 0, %s141
    %s159 = sphi 0, %s159
    %s161 = sphi 0, %s159
    %s162 = sphi 0, %s161
    %s176 = sphi 0, %s162
    %s180 = sphi 0, %s180
    %s182 = sphi 0, %s180
    %s183 = sphi 0, %s182
    %s197 = sphi 0, %s183
    %s203 = sphi 0, %s205
    %s206 = sphi 0, %s203
    %s207 = sphi 0, %s206
    %s223 = sphi 0, %s207
    %s229 = sphi 0, %s231
    %s232 = sphi 0, %s229
    %s233 = sphi 0, %s232
    %s249 = sphi 0, %s233
  $region4: #{bottleneck_forward.5} parent=0 // loop_header_branch
    %18 = sbr.rel (%p16) target = $region8
  $region5: #{bottleneck_forward.5} parent=0 // loop_body
    %s20 = ssub.s32 %s15, 1
    %s21 = ssub.s32 %s15, 2
    %s22 = sadd.s32 %s15, 1
    %s23 = ssub.s32 %s15, %s22
    %p24 = scmp.eq.s32.totalorder %s23, 0
    %s26 = sadd.s32 %s25, 1
    %s27 = scalar_select %p24, %s25, %s26
    %p30 = pneg %p24
    %p31 = scmp.eq.s32.totalorder %s15, 1
    %p32 = por %p30, %p31
    %p33 = scmp.ne.s32.totalorder %s25, %s28
    %p34 = scmp.eq.s32.totalorder %s15, 0
    %p35 = por %p33, %p34
    %p36 = scmp.ne.s32.totalorder %s25, %s28
    %p37 = scmp.eq.s32.totalorder %s20, 1
    %p38 = por %p36, %p37
    %p39 = scmp.ne.s32.totalorder %s28, %s29
    %p40 = scmp.eq.s32.totalorder %s20, 0
    %p41 = por %p39, %p40
    %p42 = scmp.ne.s32.totalorder %s28, %s29
    %p43 = scmp.eq.s32.totalorder %s21, 1
    %p44 = por %p42, %p43
    %p46 = scmp.ne.s32.totalorder %s29, %s45
    %p47 = scmp.eq.s32.totalorder %s21, 0
    %p48 = por %p46, %p47
    %s49 = smul.u32 %s15, 8
    %s50 = ssub.s32 %s49, 1
    %p51 = scmp.gt.s32.totalorder %s50, 0
    %s52 = scalar_select %p51, %s50, 0
    %s53 = smul.u32 %s22, 8
    %s54 = ssub.s32 %s53, 1
    %p55 = scmp.gt.s32.totalorder %s54, 0
    %s56 = scalar_select %p55, %s54, 0
    %s57 = ssub.s32 %s52, %s56
    %p58 = scmp.eq.s32.totalorder %s57, 0
    %s60 = sadd.s32 %s59, 1
    %s61 = scalar_select %p58, %s59, %s60
    %p64 = pneg %p58
    %p65 = scmp.eq.s32.totalorder %s15, 1
    %p66 = por %p64, %p65
    %p67 = scmp.ne.s32.totalorder %s59, %s62
    %p68 = scmp.eq.s32.totalorder %s15, 0
    %p69 = por %p67, %p68
    %p70 = scmp.ne.s32.totalorder %s59, %s62
    %p71 = scmp.eq.s32.totalorder %s20, 1
    %p72 = por %p70, %p71
    %p73 = scmp.ne.s32.totalorder %s62, %s63
    %p74 = scmp.eq.s32.totalorder %s20, 0
    %p75 = por %p73, %p74
    %p76 = scmp.ne.s32.totalorder %s62, %s63
    %p77 = scmp.eq.s32.totalorder %s21, 1
    %p78 = por %p76, %p77
    %p80 = scmp.ne.s32.totalorder %s63, %s79
    %p81 = scmp.eq.s32.totalorder %s21, 0
    %p82 = por %p80, %p81
    %s83 = sadd.s32 %s15, 1
    %s84 = smul.u32 %s83, 8
    %p85 = scmp.lt.s32.totalorder %s84, 15
    %s86 = scalar_select %p85, %s84, 15
    %s87 = sadd.s32 %s22, 1
    %s88 = smul.u32 %s87, 8
    %p89 = scmp.lt.s32.totalorder %s88, 15
    %s90 = scalar_select %p89, %s88, 15
    %s91 = ssub.s32 %s86, %s90
    %p92 = scmp.eq.s32.totalorder %s91, 0
    %s94 = sadd.s32 %s93, 1
    %s95 = scalar_select %p92, %s93, %s94
    %p98 = pneg %p92
    %p99 = scmp.eq.s32.totalorder %s15, 1
    %p100 = por %p98, %p99
    %p101 = scmp.ne.s32.totalorder %s93, %s96
    %p102 = scmp.eq.s32.totalorder %s15, 0
    %p103 = por %p101, %p102
    %p104 = scmp.ne.s32.totalorder %s93, %s96
    %p105 = scmp.eq.s32.totalorder %s20, 1
    %p106 = por %p104, %p105
    %p107 = scmp.ne.s32.totalorder %s96, %s97
    %p108 = scmp.eq.s32.totalorder %s20, 0
    %p109 = por %p107, %p108
    %p110 = scmp.ne.s32.totalorder %s96, %s97
    %p111 = scmp.eq.s32.totalorder %s21, 1
    %p112 = por %p110, %p111
    %p114 = scmp.ne.s32.totalorder %s97, %s113
    %p115 = scmp.eq.s32.totalorder %s21, 0
    %p116 = por %p114, %p115
    %s118 = sadd.s32 %s117, 1
    %p121 = scmp.eq.s32.totalorder %s15, 1
    %p122 = scmp.ne.s32.totalorder %s117, %s119
    %p123 = scmp.eq.s32.totalorder %s15, 0
    %p124 = por %p122, %p123
    %p125 = scmp.ne.s32.totalorder %s117, %s119
    %p126 = scmp.eq.s32.totalorder %s20, 1
    %p127 = por %p125, %p126
    %p128 = scmp.ne.s32.totalorder %s119, %s120
    %p129 = scmp.eq.s32.totalorder %s20, 0
    %p130 = por %p128, %p129
    %p131 = scmp.ne.s32.totalorder %s119, %s120
    %p132 = scmp.eq.s32.totalorder %s21, 1
    %p133 = por %p131, %p132
    %p135 = scmp.ne.s32.totalorder %s120, %s134
    %p136 = scmp.eq.s32.totalorder %s21, 0
    %p137 = por %p135, %p136
    %s139 = sadd.s32 %s138, 1
    %p142 = scmp.eq.s32.totalorder %s15, 1
    %p143 = scmp.ne.s32.totalorder %s138, %s140
    %p144 = scmp.eq.s32.totalorder %s15, 0
    %p145 = por %p143, %p144
    %p146 = scmp.ne.s32.totalorder %s138, %s140
    %p147 = scmp.eq.s32.totalorder %s20, 1
    %p148 = por %p146, %p147
    %p149 = scmp.ne.s32.totalorder %s140, %s141
    %p150 = scmp.eq.s32.totalorder %s20, 0
    %p151 = por %p149, %p150
    %p152 = scmp.ne.s32.totalorder %s140, %s141
    %p153 = scmp.eq.s32.totalorder %s21, 1
    %p154 = por %p152, %p153
    %p156 = scmp.ne.s32.totalorder %s141, %s155
    %p157 = scmp.eq.s32.totalorder %s21, 0
    %p158 = por %p156, %p157
    %s160 = sadd.s32 %s159, 1
    %p163 = scmp.eq.s32.totalorder %s15, 1
    %p164 = scmp.ne.s32.totalorder %s159, %s161
    %p165 = scmp.eq.s32.totalorder %s15, 0
    %p166 = por %p164, %p165
    %p167 = scmp.ne.s32.totalorder %s159, %s161
    %p168 = scmp.eq.s32.totalorder %s20, 1
    %p169 = por %p167, %p168
    %p170 = scmp.ne.s32.totalorder %s161, %s162
    %p171 = scmp.eq.s32.totalorder %s20, 0
    %p172 = por %p170, %p171
    %p173 = scmp.ne.s32.totalorder %s161, %s162
    %p174 = scmp.eq.s32.totalorder %s21, 1
    %p175 = por %p173, %p174
    %p177 = scmp.ne.s32.totalorder %s162, %s176
    %p178 = scmp.eq.s32.totalorder %s21, 0
    %p179 = por %p177, %p178
    %s181 = sadd.s32 %s180, 1
    %p184 = scmp.eq.s32.totalorder %s15, 1
    %p185 = scmp.ne.s32.totalorder %s180, %s182
    %p186 = scmp.eq.s32.totalorder %s15, 0
    %p187 = por %p185, %p186
    %p188 = scmp.ne.s32.totalorder %s180, %s182
    %p189 = scmp.eq.s32.totalorder %s20, 1
    %p190 = por %p188, %p189
    %p191 = scmp.ne.s32.totalorder %s182, %s183
    %p192 = scmp.eq.s32.totalorder %s20, 0
    %p193 = por %p191, %p192
    %p194 = scmp.ne.s32.totalorder %s182, %s183
    %p195 = scmp.eq.s32.totalorder %s21, 1
    %p196 = por %p194, %p195
    %p198 = scmp.ne.s32.totalorder %s183, %s197
    %p199 = scmp.eq.s32.totalorder %s21, 0
    %p200 = por %p198, %p199
    %s201 = ssub.s32 %s15, %s22
    %p202 = scmp.eq.s32.totalorder %s201, 0
    %s204 = sadd.s32 %s203, 1
    %s205 = scalar_select %p202, %s203, %s204
    %p208 = pneg %p202
    %p209 = scmp.eq.s32.totalorder %s15, 1
    %p210 = por %p208, %p209
    %p211 = scmp.ne.s32.totalorder %s203, %s206
    %p212 = scmp.eq.s32.totalorder %s15, 0
    %p213 = por %p211, %p212
    %p214 = scmp.ne.s32.totalorder %s203, %s206
    %p215 = scmp.eq.s32.totalorder %s20, 1
    %p216 = por %p214, %p215
    %p217 = scmp.ne.s32.totalorder %s206, %s207
    %p218 = scmp.eq.s32.totalorder %s20, 0
    %p219 = por %p217, %p218
    %p220 = scmp.ne.s32.totalorder %s206, %s207
    %p221 = scmp.eq.s32.totalorder %s21, 1
    %p222 = por %p220, %p221
    %p224 = scmp.ne.s32.totalorder %s207, %s223
    %p225 = scmp.eq.s32.totalorder %s21, 0
    %p226 = por %p224, %p225
    %s227 = ssub.s32 %s15, %s22
    %p228 = scmp.eq.s32.totalorder %s227, 0
    %s230 = sadd.s32 %s229, 1
    %s231 = scalar_select %p228, %s229, %s230
    %p234 = pneg %p228
    %p235 = scmp.eq.s32.totalorder %s15, 1
    %p236 = por %p234, %p235
    %p237 = scmp.ne.s32.totalorder %s229, %s232
    %p238 = scmp.eq.s32.totalorder %s15, 0
    %p239 = por %p237, %p238
    %p240 = scmp.ne.s32.totalorder %s229, %s232
    %p241 = scmp.eq.s32.totalorder %s20, 1
    %p242 = por %p240, %p241
    %p243 = scmp.ne.s32.totalorder %s232, %s233
    %p244 = scmp.eq.s32.totalorder %s20, 0
    %p245 = por %p243, %p244
    %p246 = scmp.ne.s32.totalorder %s232, %s233
    %p247 = scmp.eq.s32.totalorder %s21, 1
    %p248 = por %p246, %p247
    %p250 = scmp.ne.s32.totalorder %s233, %s249
    %p251 = scmp.eq.s32.totalorder %s21, 0
    %p252 = por %p250, %p251
    %p253 = scmp.le.s32.totalorder 1, %s15
    %p254 = scmp.lt.s32.totalorder %s15, 3
    %p255 = pnand %p253, %p254
    %p256 = pneg %p255
    // Predicated region
    $region9: #{bottleneck_forward.5} parent=5 // pred_check
      _
    $region10: #{bottleneck_forward.5} parent=5 // pred_check_branch
      %258 = sbr.rel (%p255) target = $region12
    $region11: #{bottleneck_forward.5} parent=5 // pred_region
      %s259 = ssub.s32 %s15, 1
      // Predicated region
      $region13: #{bottleneck_forward.5} parent=11 // pred_check
        %p260 = pneg %p130
      $region14: #{bottleneck_forward.5} parent=11 // pred_check_branch
        %262 = sbr.rel (%p260) target = $region16
      $region15: #{bottleneck_forward.5} parent=11 // pred_region
        _
      $region16: #{bottleneck_forward.5} parent=11 // pred_fallthru
        _
      // Predicated region
      $region17: #{bottleneck_forward.5} parent=11 // pred_check
        %p263 = pneg %p151
      $region18: #{bottleneck_forward.5} parent=11 // pred_check_branch
        %265 = sbr.rel (%p263) target = $region20
      $region19: #{bottleneck_forward.5} parent=11 // pred_region
        _
      $region20: #{bottleneck_forward.5} parent=11 // pred_fallthru
        _
      // Predicated region
      $region21: #{bottleneck_forward.5} parent=11 // pred_check
        %p266 = pneg %p172
      $region22: #{bottleneck_forward.5} parent=11 // pred_check_branch
        %268 = sbr.rel (%p266) target = $region24
      $region23: #{bottleneck_forward.5} parent=11 // pred_region
        _
      $region24: #{bottleneck_forward.5} parent=11 // pred_fallthru
        _
      // Predicated region
      $region25: #{bottleneck_forward.5} parent=11 // pred_check
        %p269 = pneg %p193
      $region26: #{bottleneck_forward.5} parent=11 // pred_check_branch
        %271 = sbr.rel (%p269) target = $region28
      $region27: #{bottleneck_forward.5} parent=11 // pred_region
        _
      $region28: #{bottleneck_forward.5} parent=11 // pred_fallthru
        _
    $region12: #{bottleneck_forward.5} parent=5 // pred_fallthru
      _
    %p272 = scmp.lt.s32.totalorder %s15, 2
    // Predicated region
    $region29: #{bottleneck_forward.5} parent=5 // pred_check
      %p273 = pneg %p272
    $region30: #{bottleneck_forward.5} parent=5 // pred_check_branch
      %275 = sbr.rel (%p273) target = $region32
    $region31: #{bottleneck_forward.5} parent=5 // pred_region
      // Predicated region
      $region33: #{bottleneck_forward.5} parent=31 // pred_check
        %p276 = pneg %p35
      $region34: #{bottleneck_forward.5} parent=31 // pred_check_branch
        %278 = sbr.rel (%p276) target = $region36
      $region35: #{bottleneck_forward.5} parent=31 // pred_region
        %s279 = smul.u32 16, %s15
        %p280 = scmp.lt.s32.totalorder %s279, 31
        %s281 = scalar_select %p280, %s279, 31
        %s282 = smul.addr %s281, 4
        %s283 = scalar_lea.vmem %s0, %s282
        %s284 = smul.u32 16, %s15
      $region36: #{bottleneck_forward.5} parent=31 // pred_fallthru
        _
      // Predicated region
      $region37: #{bottleneck_forward.5} parent=31 // pred_check
        %p285 = pneg %p69
      $region38: #{bottleneck_forward.5} parent=31 // pred_check_branch
        %287 = sbr.rel (%p285) target = $region40
      $region39: #{bottleneck_forward.5} parent=31 // pred_region
        %s288 = smul.u32 %s15, 8
        %s289 = ssub.s32 %s288, 1
        %p290 = scmp.gt.s32.totalorder %s289, 0
        %s291 = scalar_select %p290, %s289, 0
        %s292 = smul.u32 2, %s291
        %p293 = scmp.lt.s32.totalorder %s292, 31
        %s294 = scalar_select %p293, %s292, 31
        %s295 = smul.addr %s294, 4
        %s296 = scalar_lea.vmem %s1, %s295
        %s297 = smul.u32 %s15, 8
        %s298 = ssub.s32 %s297, 1
        %p299 = scmp.gt.s32.totalorder %s298, 0
        %s300 = scalar_select %p299, %s298, 0
        %s301 = smul.u32 2, %s300
      $region40: #{bottleneck_forward.5} parent=31 // pred_fallthru
        _
      // Predicated region
      $region41: #{bottleneck_forward.5} parent=31 // pred_check
        %p302 = pneg %p103
      $region42: #{bottleneck_forward.5} parent=31 // pred_check_branch
        %304 = sbr.rel (%p302) target = $region44
      $region43: #{bottleneck_forward.5} parent=31 // pred_region
        %s305 = sadd.s32 %s15, 1
        %s306 = smul.u32 %s305, 8
        %p307 = scmp.lt.s32.totalorder %s306, 15
        %s308 = scalar_select %p307, %s306, 15
        %s309 = smul.u32 2, %s308
        %p310 = scmp.lt.s32.totalorder %s309, 31
        %s311 = scalar_select %p310, %s309, 31
        %s312 = smul.addr %s311, 4
        %s313 = scalar_lea.vmem %s2, %s312
        %s314 = sadd.s32 %s15, 1
        %s315 = smul.u32 %s314, 8
        %p316 = scmp.lt.s32.totalorder %s315, 15
        %s317 = scalar_select %p316, %s315, 15
        %s318 = smul.u32 2, %s317
      $region44: #{bottleneck_forward.5} parent=31 // pred_fallthru
        _
    $region32: #{bottleneck_forward.5} parent=5 // pred_fallthru
      _
    %p319 = scmp.le.s32.totalorder 1, %s15
    %p320 = scmp.lt.s32.totalorder %s15, 3
    %p321 = pnand %p319, %p320
    %p322 = pneg %p321
    // Predicated region
    $region45: #{bottleneck_forward.5} parent=5 // pred_check
      _
    $region46: #{bottleneck_forward.5} parent=5 // pred_check_branch
      %324 = sbr.rel (%p321) target = $region48
    $region47: #{bottleneck_forward.5} parent=5 // pred_region
      %s325 = ssub.s32 %s15, 1
      %s326 = smul.u32 16, %s20
      %p327 = scmp.lt.s32.totalorder %s326, 31
      %s328 = scalar_select %p327, %s326, 31
      %s329 = smul.addr %s328, 4
      %s330 = scalar_lea.vmem %s0, %s329
      %p331 = pneg %p41
      %p332 = pneg %p38
      %s333 = smul.u32 %s20, 8
      %s334 = ssub.s32 %s333, 1
      %p335 = scmp.gt.s32.totalorder %s334, 0
      %s336 = scalar_select %p335, %s334, 0
      %s337 = smul.u32 2, %s336
      %p338 = scmp.lt.s32.totalorder %s337, 31
      %s339 = scalar_select %p338, %s337, 31
      %s340 = smul.addr %s339, 4
      %s341 = scalar_lea.vmem %s1, %s340
      %p342 = pneg %p75
      %p343 = pneg %p72
      %s344 = sadd.s32 %s20, 1
      %s345 = smul.u32 %s344, 8
      %p346 = scmp.lt.s32.totalorder %s345, 15
      %s347 = scalar_select %p346, %s345, 15
      %s348 = smul.u32 2, %s347
      %p349 = scmp.lt.s32.totalorder %s348, 31
      %s350 = scalar_select %p349, %s348, 31
      %s351 = smul.addr %s350, 4
      %s352 = scalar_lea.vmem %s2, %s351
      %p353 = pneg %p109
      %p354 = pneg %p106
      %p355 = pneg %p130
      %p356 = pneg %p127
      %p357 = pneg %p151
      %p358 = pneg %p148
      %p359 = pneg %p172
      %p360 = pneg %p169
      %p361 = pneg %p193
      %p362 = pneg %p190
      %p363 = pneg %p219
      %p364 = pneg %p216
      %s365 = smul.u32 16, %s20
      %p366 = scmp.lt.s32.totalorder %s365, 31
      %s367 = scalar_select %p366, %s365, 31
      %s368 = smul.addr %s367, 4
      %s369 = scalar_lea.vmem %s7, %s368
      %p370 = pneg %p245
      %p371 = pneg %p242
      %p372 = scmp.lt.s32.totalorder %s20, 1
      %s373 = scalar_select %p372, %s20, 1
      %s374 = smul.addr %s373, 2
      %s375 = scalar_lea.vmem %s8, %s374
      %s376 = smul.u32 16, %s20
      %p377 = scmp.lt.s32.totalorder %s376, 31
      %s378 = scalar_select %p377, %s376, 31
      %s379 = smul.addr %s378, 4
      %s380 = scalar_lea.vmem %s0, %s379
      %s381 = smul.u32 16, %s20
      %s382 = smul.u32 %s20, 8
      %s383 = ssub.s32 %s382, 1
      %p384 = scmp.gt.s32.totalorder %s383, 0
      %s385 = scalar_select %p384, %s383, 0
      %s386 = smul.u32 2, %s385
      %p387 = scmp.lt.s32.totalorder %s386, 31
      %s388 = scalar_select %p387, %s386, 31
      %s389 = smul.addr %s388, 4
      %s390 = scalar_lea.vmem %s1, %s389
      %s391 = smul.u32 %s20, 8
      %s392 = ssub.s32 %s391, 1
      %p393 = scmp.gt.s32.totalorder %s392, 0
      %s394 = scalar_select %p393, %s392, 0
      %s395 = smul.u32 2, %s394
      %s396 = sadd.s32 %s20, 1
      %s397 = smul.u32 %s396, 8
      %p398 = scmp.lt.s32.totalorder %s397, 15
      %s399 = scalar_select %p398, %s397, 15
      %s400 = smul.u32 2, %s399
      %p401 = scmp.lt.s32.totalorder %s400, 31
      %s402 = scalar_select %p401, %s400, 31
      %s403 = smul.addr %s402, 4
      %s404 = scalar_lea.vmem %s2, %s403
      %s405 = sadd.s32 %s20, 1
      %s406 = smul.u32 %s405, 8
      %p407 = scmp.lt.s32.totalorder %s406, 15
      %s408 = scalar_select %p407, %s406, 15
      %s409 = smul.u32 2, %s408
      %s410 = smul.u32 16, %s20
      %p411 = scmp.lt.s32.totalorder %s410, 31
      %s412 = scalar_select %p411, %s410, 31
      %s413 = smul.addr %s412, 4
      %s414 = scalar_lea.vmem %s7, %s413
      %s415 = smul.u32 16, %s20
      %p416 = scmp.lt.s32.totalorder %s20, 1
      %s417 = scalar_select %p416, %s20, 1
      %s418 = smul.addr %s417, 2
      %s419 = scalar_lea.vmem %s8, %s418
      %v421 = vld [vmem:[%s3] sm:$0x3]
      %v422 = vld [vmem:[%s3 + $0x2] sm:$0x3]
      %v423 = vld [vmem:[%s4] sm:$0x1]
      %v424 = vld [vmem:[%s5] sm:$0x1]
      %vm425 = vcmask 1041408
      %v426 = vsel %vm425, %v421, 0.0
      %v427 = vsel %vm425, %v422, 0.0
      %v428 = vadd.f32 %v426, %v427
      %v429 = vmul.f32 %v428, 0.00390625
      %v430 = vmul.f32 %v429, %v429
      %v432 = vrot.slane %v430, 7
      %v434 = vsub.f32 %v429, %v432
      %v435 = vmax.f32 %v434, 0.0
      %v436 = vadd.f32 %v435, 1e-05
      %v437 = vrsqrt.pop %v436
      %v440 = vunpack.c.l.s4 1966171168
      %v441 = vunpack.c.0.s8 %v440
      %v442 = vlaneseq
      %v443 = vshrl.u32 %v442, 7
      %v444 = vsub.s32 %v441, %v443
      %v445 = vrot.slane %v437, %v444
      %v446 = vcombine.high %v445, %v445
      %v448 = vunpack.c.l.s4 1966171168
      %v449 = vunpack.c.0.s8 %v448
      %v450 = vlaneseq
      %v451 = vshrl.u32 %v450, 7
      %v452 = vsub.s32 %v449, %v451
      %v453 = vrot.slane %v446, %v452
      %v455 = vmul.f32 %v423, %v453
      %v456 = vmul.f32 %v429, %v455
      %v457 = vsub.f32 %v424, %v456
      %v458 = vld [vmem:[%s380] sm:$0xf]
      %v459 = vld [vmem:[%s380 + $0x4] sm:$0xf]
      %v460 = vld [vmem:[%s380 + $0x8] sm:$0xf]
      %v461 = vld [vmem:[%s380 + $0xc] sm:$0xf]
      %v462 = vld [vmem:[%s380 + $0x10] sm:$0xf]
      %v463 = vld [vmem:[%s380 + $0x14] sm:$0xf]
      %v464 = vld [vmem:[%s380 + $0x18] sm:$0xf]
      %v465 = vld [vmem:[%s380 + $0x1c] sm:$0xf]
      %v466 = vld [vmem:[%s380 + $0x20] sm:$0xf]
      %v467 = vld [vmem:[%s380 + $0x24] sm:$0xf]
      %v468 = vld [vmem:[%s380 + $0x28] sm:$0xf]
      %v469 = vld [vmem:[%s380 + $0x2c] sm:$0xf]
      %v470 = vld [vmem:[%s380 + $0x30] sm:$0xf]
      %v471 = vld [vmem:[%s380 + $0x34] sm:$0xf]
      %v472 = vld [vmem:[%s380 + $0x38] sm:$0xf]
      %v473 = vld [vmem:[%s380 + $0x3c] sm:$0xf]
      %v474 = vunpack.c.l.bf16 %v458
      %v475 = vunpack.c.l.bf16 %v459
      %v476 = vunpack.c.l.bf16 %v460
      %v477 = vunpack.c.l.bf16 %v461
      %v478 = vunpack.c.l.bf16 %v462
      %v479 = vunpack.c.l.bf16 %v463
      %v480 = vunpack.c.l.bf16 %v464
      %v481 = vunpack.c.l.bf16 %v465
      %v482 = vunpack.c.l.bf16 %v466
      %v483 = vunpack.c.l.bf16 %v467
      %v484 = vunpack.c.l.bf16 %v468
      %v485 = vunpack.c.l.bf16 %v469
      %v486 = vunpack.c.l.bf16 %v470
      %v487 = vunpack.c.l.bf16 %v471
      %v488 = vunpack.c.l.bf16 %v472
      %v489 = vunpack.c.l.bf16 %v473
      %v491 = vlaneseq
      %v492 = vshrl.u32 %v491, 7
      %v493 = vsub.s32 0, %v492
      %v494 = vrot.slane %v455, %v493
      %v496 = vmul.f32 %v474, %v494
      %v497 = vmul.f32 %v475, %v494
      %v498 = vmul.f32 %v476, %v494
      %v499 = vmul.f32 %v477, %v494
      %v500 = vmul.f32 %v478, %v494
      %v501 = vmul.f32 %v479, %v494
      %v502 = vmul.f32 %v480, %v494
      %v503 = vmul.f32 %v481, %v494
      %v504 = vmul.f32 %v482, %v494
      %v505 = vmul.f32 %v483, %v494
      %v506 = vmul.f32 %v484, %v494
      %v507 = vmul.f32 %v485, %v494
      %v508 = vmul.f32 %v486, %v494
      %v509 = vmul.f32 %v487, %v494
      %v510 = vmul.f32 %v488, %v494
      %v511 = vmul.f32 %v489, %v494
      %v513 = vlaneseq
      %v514 = vshrl.u32 %v513, 7
      %v515 = vsub.s32 0, %v514
      %v516 = vrot.slane %v457, %v515
      %v518 = vadd.f32 %v496, %v516
      %v519 = vadd.f32 %v497, %v516
      %v520 = vadd.f32 %v498, %v516
      %v521 = vadd.f32 %v499, %v516
      %v522 = vadd.f32 %v500, %v516
      %v523 = vadd.f32 %v501, %v516
      %v524 = vadd.f32 %v502, %v516
      %v525 = vadd.f32 %v503, %v516
      %v526 = vadd.f32 %v504, %v516
      %v527 = vadd.f32 %v505, %v516
      %v528 = vadd.f32 %v506, %v516
      %v529 = vadd.f32 %v507, %v516
      %v530 = vadd.f32 %v508, %v516
      %v531 = vadd.f32 %v509, %v516
      %v532 = vadd.f32 %v510, %v516
      %v533 = vadd.f32 %v511, %v516
      %v534 = vmax.f32 %v518, 0.0
      %v535 = vmax.f32 %v519, 0.0
      %v536 = vmax.f32 %v520, 0.0
      %v537 = vmax.f32 %v521, 0.0
      %v538 = vmax.f32 %v522, 0.0
      %v539 = vmax.f32 %v523, 0.0
      %v540 = vmax.f32 %v524, 0.0
      %v541 = vmax.f32 %v525, 0.0
      %v542 = vmax.f32 %v526, 0.0
      %v543 = vmax.f32 %v527, 0.0
      %v544 = vmax.f32 %v528, 0.0
      %v545 = vmax.f32 %v529, 0.0
      %v546 = vmax.f32 %v530, 0.0
      %v547 = vmax.f32 %v531, 0.0
      %v548 = vmax.f32 %v532, 0.0
      %v549 = vmax.f32 %v533, 0.0
      %v550 = vmin.f32 %v534, 6.0
      %v551 = vmin.f32 %v535, 6.0
      %v552 = vmin.f32 %v536, 6.0
      %v553 = vmin.f32 %v537, 6.0
      %v554 = vmin.f32 %v538, 6.0
      %v555 = vmin.f32 %v539, 6.0
      %v556 = vmin.f32 %v540, 6.0
      %v557 = vmin.f32 %v541, 6.0
      %v558 = vmin.f32 %v542, 6.0
      %v559 = vmin.f32 %v543, 6.0
      %v560 = vmin.f32 %v544, 6.0
      %v561 = vmin.f32 %v545, 6.0
      %v562 = vmin.f32 %v546, 6.0
      %v563 = vmin.f32 %v547, 6.0
      %v564 = vmin.f32 %v548, 6.0
      %v565 = vmin.f32 %v549, 6.0
      %v566 = vlaneseq
      %v567 = vshrl.u32 %v566, 7
      %v568 = vadd.s32 %v567, 8
      %v569 = vadd.s32 %v567, 16
      %v570 = vadd.s32 %v567, 24
      %v571 = vadd.s32 %v567, 32
      %v572 = vadd.s32 %v567, 40
      %v573 = vadd.s32 %v567, 48
      %v574 = vadd.s32 %v567, 56
      %v575 = vadd.s32 %v567, 64
      %v576 = vadd.s32 %v567, 72
      %v577 = vadd.s32 %v567, 80
      %v578 = vadd.s32 %v567, 88
      %v579 = vadd.s32 %v567, 96
      %v580 = vadd.s32 %v567, 104
      %v581 = vadd.s32 %v567, 112
      %v582 = vadd.s32 %v567, 120
      %s583 = smul.u32 %s20, 128
      %v584 = vstv %s583
      %v585 = vadd.s32 %v567, %v584
      %v586 = vadd.s32 %v568, %v584
      %v587 = vadd.s32 %v569, %v584
      %v588 = vadd.s32 %v570, %v584
      %v589 = vadd.s32 %v571, %v584
      %v590 = vadd.s32 %v572, %v584
      %v591 = vadd.s32 %v573, %v584
      %v592 = vadd.s32 %v574, %v584
      %v593 = vadd.s32 %v575, %v584
      %v594 = vadd.s32 %v576, %v584
      %v595 = vadd.s32 %v577, %v584
      %v596 = vadd.s32 %v578, %v584
      %v597 = vadd.s32 %v579, %v584
      %v598 = vadd.s32 %v580, %v584
      %v599 = vadd.s32 %v581, %v584
      %v600 = vadd.s32 %v582, %v584
      %vm601 = vcmp.lt.s32.totalorder %v585, 0
      %v602 = vsub.s32 0, %v585
      %v603 = vsel %vm601, %v602, %v585
      %v604 = vshrl.u32 %v603, 6
      %v605 = vand.u32 %v603, 63
      %v606 = vsub.s32 0, %v605
      %v607 = vsel %vm601, %v606, %v605
      %vm608 = vcmp.lt.s32.totalorder %v586, 0
      %v609 = vsub.s32 0, %v586
      %v610 = vsel %vm608, %v609, %v586
      %v611 = vshrl.u32 %v610, 6
      %v612 = vand.u32 %v610, 63
      %v613 = vsub.s32 0, %v612
      %v614 = vsel %vm608, %v613, %v612
      %vm615 = vcmp.lt.s32.totalorder %v587, 0
      %v616 = vsub.s32 0, %v587
      %v617 = vsel %vm615, %v616, %v587
      %v618 = vshrl.u32 %v617, 6
      %v619 = vand.u32 %v617, 63
      %v620 = vsub.s32 0, %v619
      %v621 = vsel %vm615, %v620, %v619
      %vm622 = vcmp.lt.s32.totalorder %v588, 0
      %v623 = vsub.s32 0, %v588
      %v624 = vsel %vm622, %v623, %v588
      %v625 = vshrl.u32 %v624, 6
      %v626 = vand.u32 %v624, 63
      %v627 = vsub.s32 0, %v626
      %v628 = vsel %vm622, %v627, %v626
      %vm629 = vcmp.lt.s32.totalorder %v589, 0
      %v630 = vsub.s32 0, %v589
      %v631 = vsel %vm629, %v630, %v589
      %v632 = vshrl.u32 %v631, 6
      %v633 = vand.u32 %v631, 63
      %v634 = vsub.s32 0, %v633
      %v635 = vsel %vm629, %v634, %v633
      %vm636 = vcmp.lt.s32.totalorder %v590, 0
      %v637 = vsub.s32 0, %v590
      %v638 = vsel %vm636, %v637, %v590
      %v639 = vshrl.u32 %v638, 6
      %v640 = vand.u32 %v638, 63
      %v641 = vsub.s32 0, %v640
      %v642 = vsel %vm636, %v641, %v640
      %vm643 = vcmp.lt.s32.totalorder %v591, 0
      %v644 = vsub.s32 0, %v591
      %v645 = vsel %vm643, %v644, %v591
      %v646 = vshrl.u32 %v645, 6
      %v647 = vand.u32 %v645, 63
      %v648 = vsub.s32 0, %v647
      %v649 = vsel %vm643, %v648, %v647
      %vm650 = vcmp.lt.s32.totalorder %v592, 0
      %v651 = vsub.s32 0, %v592
      %v652 = vsel %vm650, %v651, %v592
      %v653 = vshrl.u32 %v652, 6
      %v654 = vand.u32 %v652, 63
      %v655 = vsub.s32 0, %v654
      %v656 = vsel %vm650, %v655, %v654
      %vm657 = vcmp.lt.s32.totalorder %v593, 0
      %v658 = vsub.s32 0, %v593
      %v659 = vsel %vm657, %v658, %v593
      %v660 = vshrl.u32 %v659, 6
      %v661 = vand.u32 %v659, 63
      %v662 = vsub.s32 0, %v661
      %v663 = vsel %vm657, %v662, %v661
      %vm664 = vcmp.lt.s32.totalorder %v594, 0
      %v665 = vsub.s32 0, %v594
      %v666 = vsel %vm664, %v665, %v594
      %v667 = vshrl.u32 %v666, 6
      %v668 = vand.u32 %v666, 63
      %v669 = vsub.s32 0, %v668
      %v670 = vsel %vm664, %v669, %v668
      %vm671 = vcmp.lt.s32.totalorder %v595, 0
      %v672 = vsub.s32 0, %v595
      %v673 = vsel %vm671, %v672, %v595
      %v674 = vshrl.u32 %v673, 6
      %v675 = vand.u32 %v673, 63
      %v676 = vsub.s32 0, %v675
      %v677 = vsel %vm671, %v676, %v675
      %vm678 = vcmp.lt.s32.totalorder %v596, 0
      %v679 = vsub.s32 0, %v596
      %v680 = vsel %vm678, %v679, %v596
      %v681 = vshrl.u32 %v680, 6
      %v682 = vand.u32 %v680, 63
      %v683 = vsub.s32 0, %v682
      %v684 = vsel %vm678, %v683, %v682
      %vm685 = vcmp.lt.s32.totalorder %v597, 0
      %v686 = vsub.s32 0, %v597
      %v687 = vsel %vm685, %v686, %v597
      %v688 = vshrl.u32 %v687, 6
      %v689 = vand.u32 %v687, 63
      %v690 = vsub.s32 0, %v689
      %v691 = vsel %vm685, %v690, %v689
      %vm692 = vcmp.lt.s32.totalorder %v598, 0
      %v693 = vsub.s32 0, %v598
      %v694 = vsel %vm692, %v693, %v598
      %v695 = vshrl.u32 %v694, 6
      %v696 = vand.u32 %v694, 63
      %v697 = vsub.s32 0, %v696
      %v698 = vsel %vm692, %v697, %v696
      %vm699 = vcmp.lt.s32.totalorder %v599, 0
      %v700 = vsub.s32 0, %v599
      %v701 = vsel %vm699, %v700, %v599
      %v702 = vshrl.u32 %v701, 6
      %v703 = vand.u32 %v701, 63
      %v704 = vsub.s32 0, %v703
      %v705 = vsel %vm699, %v704, %v703
      %vm706 = vcmp.lt.s32.totalorder %v600, 0
      %v707 = vsub.s32 0, %v600
      %v708 = vsel %vm706, %v707, %v600
      %v709 = vshrl.u32 %v708, 6
      %v710 = vand.u32 %v708, 63
      %v711 = vsub.s32 0, %v710
      %v712 = vsel %vm706, %v711, %v710
      %vm713 = vcmp.ne.s32.totalorder %v607, 0
      %vm714 = vcmp.ne.s32.totalorder %v614, 0
      %vm715 = vcmp.ne.s32.totalorder %v621, 0
      %vm716 = vcmp.ne.s32.totalorder %v628, 0
      %vm717 = vcmp.ne.s32.totalorder %v635, 0
      %vm718 = vcmp.ne.s32.totalorder %v642, 0
      %vm719 = vcmp.ne.s32.totalorder %v649, 0
      %vm720 = vcmp.ne.s32.totalorder %v656, 0
      %vm721 = vcmp.ne.s32.totalorder %v663, 0
      %vm722 = vcmp.ne.s32.totalorder %v670, 0
      %vm723 = vcmp.ne.s32.totalorder %v677, 0
      %vm724 = vcmp.ne.s32.totalorder %v684, 0
      %vm725 = vcmp.ne.s32.totalorder %v691, 0
      %vm726 = vcmp.ne.s32.totalorder %v698, 0
      %vm727 = vcmp.ne.s32.totalorder %v705, 0
      %vm728 = vcmp.ne.s32.totalorder %v712, 0
      %vm729 = vcmp.lt.s32.totalorder %v607, 0
      %vm730 = vcmp.lt.s32.totalorder %v614, 0
      %vm731 = vcmp.lt.s32.totalorder %v621, 0
      %vm732 = vcmp.lt.s32.totalorder %v628, 0
      %vm733 = vcmp.lt.s32.totalorder %v635, 0
      %vm734 = vcmp.lt.s32.totalorder %v642, 0
      %vm735 = vcmp.lt.s32.totalorder %v649, 0
      %vm736 = vcmp.lt.s32.totalorder %v656, 0
      %vm737 = vcmp.lt.s32.totalorder %v663, 0
      %vm738 = vcmp.lt.s32.totalorder %v670, 0
      %vm739 = vcmp.lt.s32.totalorder %v677, 0
      %vm740 = vcmp.lt.s32.totalorder %v684, 0
      %vm741 = vcmp.lt.s32.totalorder %v691, 0
      %vm742 = vcmp.lt.s32.totalorder %v698, 0
      %vm743 = vcmp.lt.s32.totalorder %v705, 0
      %vm744 = vcmp.lt.s32.totalorder %v712, 0
      %vm745 = vmand %vm729, %vm713
      %vm746 = vmand %vm730, %vm714
      %vm747 = vmand %vm731, %vm715
      %vm748 = vmand %vm732, %vm716
      %vm749 = vmand %vm733, %vm717
      %vm750 = vmand %vm734, %vm718
      %vm751 = vmand %vm735, %vm719
      %vm752 = vmand %vm736, %vm720
      %vm753 = vmand %vm737, %vm721
      %vm754 = vmand %vm738, %vm722
      %vm755 = vmand %vm739, %vm723
      %vm756 = vmand %vm740, %vm724
      %vm757 = vmand %vm741, %vm725
      %vm758 = vmand %vm742, %vm726
      %vm759 = vmand %vm743, %vm727
      %vm760 = vmand %vm744, %vm728
      %v761 = vadd.s32 %v607, 64
      %v762 = vadd.s32 %v614, 64
      %v763 = vadd.s32 %v621, 64
      %v764 = vadd.s32 %v628, 64
      %v765 = vadd.s32 %v635, 64
      %v766 = vadd.s32 %v642, 64
      %v767 = vadd.s32 %v649, 64
      %v768 = vadd.s32 %v656, 64
      %v769 = vadd.s32 %v663, 64
      %v770 = vadd.s32 %v670, 64
      %v771 = vadd.s32 %v677, 64
      %v772 = vadd.s32 %v684, 64
      %v773 = vadd.s32 %v691, 64
      %v774 = vadd.s32 %v698, 64
      %v775 = vadd.s32 %v705, 64
      %v776 = vadd.s32 %v712, 64
      %v777 = vsel %vm745, %v761, %v607
      %v778 = vsel %vm746, %v762, %v614
      %v779 = vsel %vm747, %v763, %v621
      %v780 = vsel %vm748, %v764, %v628
      %v781 = vsel %vm749, %v765, %v635
      %v782 = vsel %vm750, %v766, %v642
      %v783 = vsel %vm751, %v767, %v649
      %v784 = vsel %vm752, %v768, %v656
      %v785 = vsel %vm753, %v769, %v663
      %v786 = vsel %vm754, %v770, %v670
      %v787 = vsel %vm755, %v771, %v677
      %v788 = vsel %vm756, %v772, %v684
      %v789 = vsel %vm757, %v773, %v691
      %v790 = vsel %vm758, %v774, %v698
      %v791 = vsel %vm759, %v775, %v705
      %v792 = vsel %vm760, %v776, %v712
      %v793 = vld [vmem:[%s390 + $0x4] sm:$0x8]
      %v794 = vunpack.c.l.bf16 %v793
      %v795 = vmul.f32 %v794, %v494
      %v796 = vadd.f32 %v795, %v516
      %v797 = vmax.f32 %v796, 0.0
      %v798 = vmin.f32 %v797, 6.0
      %v799 = vld [vmem:[%s404] sm:$0x1]
      %v800 = vunpack.c.l.bf16 %v799
      %v801 = vmul.f32 %v800, %v455
      %v802 = vadd.f32 %v801, %v457
      %v803 = vmax.f32 %v802, 0.0
      %v804 = vmin.f32 %v803, 6.0
      %vm805 = vcmp.eq.s32.totalorder %v567, 0
      %vm806 = vcmp.eq.s32.totalorder %v568, 0
      %vm807 = vcmp.eq.s32.totalorder %v569, 0
      %vm808 = vcmp.eq.s32.totalorder %v570, 0
      %vm809 = vcmp.eq.s32.totalorder %v571, 0
      %vm810 = vcmp.eq.s32.totalorder %v572, 0
      %vm811 = vcmp.eq.s32.totalorder %v573, 0
      %vm812 = vcmp.eq.s32.totalorder %v574, 0
      %vm813 = vcmp.eq.s32.totalorder %v575, 0
      %vm814 = vcmp.eq.s32.totalorder %v576, 0
      %vm815 = vcmp.eq.s32.totalorder %v577, 0
      %vm816 = vcmp.eq.s32.totalorder %v578, 0
      %vm817 = vcmp.eq.s32.totalorder %v579, 0
      %vm818 = vcmp.eq.s32.totalorder %v580, 0
      %vm819 = vcmp.eq.s32.totalorder %v581, 0
      %vm820 = vcmp.eq.s32.totalorder %v582, 0
      %v821 = vrot.slane %v550, 7
      %v822 = vrot.slane %v551, 7
      %v823 = vrot.slane %v552, 7
      %v824 = vrot.slane %v553, 7
      %v825 = vrot.slane %v554, 7
      %v826 = vrot.slane %v555, 7
      %v827 = vrot.slane %v556, 7
      %v828 = vrot.slane %v557, 7
      %v829 = vrot.slane %v558, 7
      %v830 = vrot.slane %v559, 7
      %v831 = vrot.slane %v560, 7
      %v832 = vrot.slane %v561, 7
      %v833 = vrot.slane %v562, 7
      %v834 = vrot.slane %v563, 7
      %v835 = vrot.slane %v564, 7
      %v836 = vrot.slane %v565, 7
      %vm837 = vcmp.lt.s32.totalorder %v567, 1
      %v838 = vsel %vm837, %v835, %v836
      %v839 = vsel %vm837, %v834, %v835
      %v840 = vsel %vm837, %v833, %v834
      %v841 = vsel %vm837, %v832, %v833
      %v842 = vsel %vm837, %v831, %v832
      %v843 = vsel %vm837, %v830, %v831
      %v844 = vsel %vm837, %v829, %v830
      %v845 = vsel %vm837, %v828, %v829
      %v846 = vsel %vm837, %v827, %v828
      %v847 = vsel %vm837, %v826, %v827
      %v848 = vsel %vm837, %v825, %v826
      %v849 = vsel %vm837, %v824, %v825
      %v850 = vsel %vm837, %v823, %v824
      %v851 = vsel %vm837, %v822, %v823
      %v852 = vsel %vm837, %v821, %v822
      %v853 = vsel %vm837, %v836, %v821
      %v854 = vsel %vm805, 1, 0
      %v855 = vsel %vm806, 1, 0
      %v856 = vsel %vm807, 1, 0
      %v857 = vsel %vm808, 1, 0
      %v858 = vsel %vm809, 1, 0
      %v859 = vsel %vm810, 1, 0
      %v860 = vsel %vm811, 1, 0
      %v861 = vsel %vm812, 1, 0
      %v862 = vsel %vm813, 1, 0
      %v863 = vsel %vm814, 1, 0
      %v864 = vsel %vm815, 1, 0
      %v865 = vsel %vm816, 1, 0
      %v866 = vsel %vm817, 1, 0
      %v867 = vsel %vm818, 1, 0
      %v868 = vsel %vm819, 1, 0
      %v869 = vsel %vm820, 1, 0
      %vm870 = vcmp.eq.s32.totalorder %v854, 1
      %vm871 = vcmp.eq.s32.totalorder %v855, 1
      %vm872 = vcmp.eq.s32.totalorder %v856, 1
      %vm873 = vcmp.eq.s32.totalorder %v857, 1
      %vm874 = vcmp.eq.s32.totalorder %v858, 1
      %vm875 = vcmp.eq.s32.totalorder %v859, 1
      %vm876 = vcmp.eq.s32.totalorder %v860, 1
      %vm877 = vcmp.eq.s32.totalorder %v861, 1
      %vm878 = vcmp.eq.s32.totalorder %v862, 1
      %vm879 = vcmp.eq.s32.totalorder %v863, 1
      %vm880 = vcmp.eq.s32.totalorder %v864, 1
      %vm881 = vcmp.eq.s32.totalorder %v865, 1
      %vm882 = vcmp.eq.s32.totalorder %v866, 1
      %vm883 = vcmp.eq.s32.totalorder %v867, 1
      %vm884 = vcmp.eq.s32.totalorder %v868, 1
      %vm885 = vcmp.eq.s32.totalorder %v869, 1
      %v886 = vlaneseq
      %v887 = vshrl.u32 %v886, 7
      %v888 = vsub.s32 7, %v887
      %v889 = vrot.slane %v798, %v888
      %v890 = vsel %vm870, %v889, %v853
      %v891 = vsel %vm871, %v889, %v852
      %v892 = vsel %vm872, %v889, %v851
      %v893 = vsel %vm873, %v889, %v850
      %v894 = vsel %vm874, %v889, %v849
      %v895 = vsel %vm875, %v889, %v848
      %v896 = vsel %vm876, %v889, %v847
      %v897 = vsel %vm877, %v889, %v846
      %v898 = vsel %vm878, %v889, %v845
      %v899 = vsel %vm879, %v889, %v844
      %v900 = vsel %vm880, %v889, %v843
      %v901 = vsel %vm881, %v889, %v842
      %v902 = vsel %vm882, %v889, %v841
      %v903 = vsel %vm883, %v889, %v840
      %v904 = vsel %vm884, %v889, %v839
      %v905 = vsel %vm885, %v889, %v838
      %vm906 = vcmp.ne.s32.totalorder %v777, 0
      %vm907 = vcmp.ne.s32.totalorder %v778, 0
      %vm908 = vcmp.ne.s32.totalorder %v779, 0
      %vm909 = vcmp.ne.s32.totalorder %v780, 0
      %vm910 = vcmp.ne.s32.totalorder %v781, 0
      %vm911 = vcmp.ne.s32.totalorder %v782, 0
      %vm912 = vcmp.ne.s32.totalorder %v783, 0
      %vm913 = vcmp.ne.s32.totalorder %v784, 0
      %vm914 = vcmp.ne.s32.totalorder %v785, 0
      %vm915 = vcmp.ne.s32.totalorder %v786, 0
      %vm916 = vcmp.ne.s32.totalorder %v787, 0
      %vm917 = vcmp.ne.s32.totalorder %v788, 0
      %vm918 = vcmp.ne.s32.totalorder %v789, 0
      %vm919 = vcmp.ne.s32.totalorder %v790, 0
      %vm920 = vcmp.ne.s32.totalorder %v791, 0
      %vm921 = vcmp.ne.s32.totalorder %v792, 0
      %v922 = vsel %vm906, 1, 0
      %v923 = vsel %vm907, 1, 0
      %v924 = vsel %vm908, 1, 0
      %v925 = vsel %vm909, 1, 0
      %v926 = vsel %vm910, 1, 0
      %v927 = vsel %vm911, 1, 0
      %v928 = vsel %vm912, 1, 0
      %v929 = vsel %vm913, 1, 0
      %v930 = vsel %vm914, 1, 0
      %v931 = vsel %vm915, 1, 0
      %v932 = vsel %vm916, 1, 0
      %v933 = vsel %vm917, 1, 0
      %v934 = vsel %vm918, 1, 0
      %v935 = vsel %vm919, 1, 0
      %v936 = vsel %vm920, 1, 0
      %v937 = vsel %vm921, 1, 0
      %vm938 = vcmp.eq.s32.totalorder %v922, 1
      %vm939 = vcmp.eq.s32.totalorder %v923, 1
      %vm940 = vcmp.eq.s32.totalorder %v924, 1
      %vm941 = vcmp.eq.s32.totalorder %v925, 1
      %vm942 = vcmp.eq.s32.totalorder %v926, 1
      %vm943 = vcmp.eq.s32.totalorder %v927, 1
      %vm944 = vcmp.eq.s32.totalorder %v928, 1
      %vm945 = vcmp.eq.s32.totalorder %v929, 1
      %vm946 = vcmp.eq.s32.totalorder %v930, 1
      %vm947 = vcmp.eq.s32.totalorder %v931, 1
      %vm948 = vcmp.eq.s32.totalorder %v932, 1
      %vm949 = vcmp.eq.s32.totalorder %v933, 1
      %vm950 = vcmp.eq.s32.totalorder %v934, 1
      %vm951 = vcmp.eq.s32.totalorder %v935, 1
      %vm952 = vcmp.eq.s32.totalorder %v936, 1
      %vm953 = vcmp.eq.s32.totalorder %v937, 1
      %v954 = vsel %vm938, %v890, 0.0
      %v955 = vsel %vm939, %v891, 0.0
      %v956 = vsel %vm940, %v892, 0.0
      %v957 = vsel %vm941, %v893, 0.0
      %v958 = vsel %vm942, %v894, 0.0
      %v959 = vsel %vm943, %v895, 0.0
      %v960 = vsel %vm944, %v896, 0.0
      %v961 = vsel %vm945, %v897, 0.0
      %v962 = vsel %vm946, %v898, 0.0
      %v963 = vsel %vm947, %v899, 0.0
      %v964 = vsel %vm948, %v900, 0.0
      %v965 = vsel %vm949, %v901, 0.0
      %v966 = vsel %vm950, %v902, 0.0
      %v967 = vsel %vm951, %v903, 0.0
      %v968 = vsel %vm952, %v904, 0.0
      %v969 = vsel %vm953, %v905, 0.0
      %vm970 = vcmp.eq.s32.totalorder %v567, 127
      %vm971 = vcmp.eq.s32.totalorder %v568, 127
      %vm972 = vcmp.eq.s32.totalorder %v569, 127
      %vm973 = vcmp.eq.s32.totalorder %v570, 127
      %vm974 = vcmp.eq.s32.totalorder %v571, 127
      %vm975 = vcmp.eq.s32.totalorder %v572, 127
      %vm976 = vcmp.eq.s32.totalorder %v573, 127
      %vm977 = vcmp.eq.s32.totalorder %v574, 127
      %vm978 = vcmp.eq.s32.totalorder %v575, 127
      %vm979 = vcmp.eq.s32.totalorder %v576, 127
      %vm980 = vcmp.eq.s32.totalorder %v577, 127
      %vm981 = vcmp.eq.s32.totalorder %v578, 127
      %vm982 = vcmp.eq.s32.totalorder %v579, 127
      %vm983 = vcmp.eq.s32.totalorder %v580, 127
      %vm984 = vcmp.eq.s32.totalorder %v581, 127
      %vm985 = vcmp.eq.s32.totalorder %v582, 127
      %v986 = vrot.slane %v550, 1
      %v987 = vrot.slane %v551, 1
      %v988 = vrot.slane %v552, 1
      %v989 = vrot.slane %v553, 1
      %v990 = vrot.slane %v554, 1
      %v991 = vrot.slane %v555, 1
      %v992 = vrot.slane %v556, 1
      %v993 = vrot.slane %v557, 1
      %v994 = vrot.slane %v558, 1
      %v995 = vrot.slane %v559, 1
      %v996 = vrot.slane %v560, 1
      %v997 = vrot.slane %v561, 1
      %v998 = vrot.slane %v562, 1
      %v999 = vrot.slane %v563, 1
      %v1000 = vrot.slane %v564, 1
      %v1001 = vrot.slane %v565, 1
      %vm1002 = vcmp.lt.s32.totalorder %v567, 7
      %v1003 = vsel %vm1002, %v1000, %v1001
      %v1004 = vsel %vm1002, %v999, %v1000
      %v1005 = vsel %vm1002, %v998, %v999
      %v1006 = vsel %vm1002, %v997, %v998
      %v1007 = vsel %vm1002, %v996, %v997
      %v1008 = vsel %vm1002, %v995, %v996
      %v1009 = vsel %vm1002, %v994, %v995
      %v1010 = vsel %vm1002, %v993, %v994
      %v1011 = vsel %vm1002, %v992, %v993
      %v1012 = vsel %vm1002, %v991, %v992
      %v1013 = vsel %vm1002, %v990, %v991
      %v1014 = vsel %vm1002, %v989, %v990
      %v1015 = vsel %vm1002, %v988, %v989
      %v1016 = vsel %vm1002, %v987, %v988
      %v1017 = vsel %vm1002, %v986, %v987
      %v1018 = vsel %vm1002, %v1001, %v986
      %v1019 = vsel %vm970, 1, 0
      %v1020 = vsel %vm971, 1, 0
      %v1021 = vsel %vm972, 1, 0
      %v1022 = vsel %vm973, 1, 0
      %v1023 = vsel %vm974, 1, 0
      %v1024 = vsel %vm975, 1, 0
      %v1025 = vsel %vm976, 1, 0
      %v1026 = vsel %vm977, 1, 0
      %v1027 = vsel %vm978, 1, 0
      %v1028 = vsel %vm979, 1, 0
      %v1029 = vsel %vm980, 1, 0
      %v1030 = vsel %vm981, 1, 0
      %v1031 = vsel %vm982, 1, 0
      %v1032 = vsel %vm983, 1, 0
      %v1033 = vsel %vm984, 1, 0
      %v1034 = vsel %vm985, 1, 0
      %vm1035 = vcmp.eq.s32.totalorder %v1019, 1
      %vm1036 = vcmp.eq.s32.totalorder %v1020, 1
      %vm1037 = vcmp.eq.s32.totalorder %v1021, 1
      %vm1038 = vcmp.eq.s32.totalorder %v1022, 1
      %vm1039 = vcmp.eq.s32.totalorder %v1023, 1
      %vm1040 = vcmp.eq.s32.totalorder %v1024, 1
      %vm1041 = vcmp.eq.s32.totalorder %v1025, 1
      %vm1042 = vcmp.eq.s32.totalorder %v1026, 1
      %vm1043 = vcmp.eq.s32.totalorder %v1027, 1
      %vm1044 = vcmp.eq.s32.totalorder %v1028, 1
      %vm1045 = vcmp.eq.s32.totalorder %v1029, 1
      %vm1046 = vcmp.eq.s32.totalorder %v1030, 1
      %vm1047 = vcmp.eq.s32.totalorder %v1031, 1
      %vm1048 = vcmp.eq.s32.totalorder %v1032, 1
      %vm1049 = vcmp.eq.s32.totalorder %v1033, 1
      %vm1050 = vcmp.eq.s32.totalorder %v1034, 1
      %v1051 = vlaneseq
      %v1052 = vshrl.u32 %v1051, 7
      %v1053 = vsub.s32 0, %v1052
      %v1054 = vrot.slane %v804, %v1053
      %v1055 = vsel %vm1035, %v1054, %v1017
      %v1056 = vsel %vm1036, %v1054, %v1016
      %v1057 = vsel %vm1037, %v1054, %v1015
      %v1058 = vsel %vm1038, %v1054, %v1014
      %v1059 = vsel %vm1039, %v1054, %v1013
      %v1060 = vsel %vm1040, %v1054, %v1012
      %v1061 = vsel %vm1041, %v1054, %v1011
      %v1062 = vsel %vm1042, %v1054, %v1010
      %v1063 = vsel %vm1043, %v1054, %v1009
      %v1064 = vsel %vm1044, %v1054, %v1008
      %v1065 = vsel %vm1045, %v1054, %v1007
      %v1066 = vsel %vm1046, %v1054, %v1006
      %v1067 = vsel %vm1047, %v1054, %v1005
      %v1068 = vsel %vm1048, %v1054, %v1004
      %v1069 = vsel %vm1049, %v1054, %v1003
      %v1070 = vsel %vm1050, %v1054, %v1018
      %vm1071 = vcmp.ne.s32.totalorder %v777, 63
      %vm1072 = vcmp.ne.s32.totalorder %v778, 63
      %vm1073 = vcmp.ne.s32.totalorder %v779, 63
      %vm1074 = vcmp.ne.s32.totalorder %v780, 63
      %vm1075 = vcmp.ne.s32.totalorder %v781, 63
      %vm1076 = vcmp.ne.s32.totalorder %v782, 63
      %vm1077 = vcmp.ne.s32.totalorder %v783, 63
      %vm1078 = vcmp.ne.s32.totalorder %v784, 63
      %vm1079 = vcmp.ne.s32.totalorder %v785, 63
      %vm1080 = vcmp.ne.s32.totalorder %v786, 63
      %vm1081 = vcmp.ne.s32.totalorder %v787, 63
      %vm1082 = vcmp.ne.s32.totalorder %v788, 63
      %vm1083 = vcmp.ne.s32.totalorder %v789, 63
      %vm1084 = vcmp.ne.s32.totalorder %v790, 63
      %vm1085 = vcmp.ne.s32.totalorder %v791, 63
      %vm1086 = vcmp.ne.s32.totalorder %v792, 63
      %v1087 = vsel %vm1071, 1, 0
      %v1088 = vsel %vm1072, 1, 0
      %v1089 = vsel %vm1073, 1, 0
      %v1090 = vsel %vm1074, 1, 0
      %v1091 = vsel %vm1075, 1, 0
      %v1092 = vsel %vm1076, 1, 0
      %v1093 = vsel %vm1077, 1, 0
      %v1094 = vsel %vm1078, 1, 0
      %v1095 = vsel %vm1079, 1, 0
      %v1096 = vsel %vm1080, 1, 0
      %v1097 = vsel %vm1081, 1, 0
      %v1098 = vsel %vm1082, 1, 0
      %v1099 = vsel %vm1083, 1, 0
      %v1100 = vsel %vm1084, 1, 0
      %v1101 = vsel %vm1085, 1, 0
      %v1102 = vsel %vm1086, 1, 0
      %vm1103 = vcmp.eq.s32.totalorder %v1087, 1
      %vm1104 = vcmp.eq.s32.totalorder %v1088, 1
      %vm1105 = vcmp.eq.s32.totalorder %v1089, 1
      %vm1106 = vcmp.eq.s32.totalorder %v1090, 1
      %vm1107 = vcmp.eq.s32.totalorder %v1091, 1
      %vm1108 = vcmp.eq.s32.totalorder %v1092, 1
      %vm1109 = vcmp.eq.s32.totalorder %v1093, 1
      %vm1110 = vcmp.eq.s32.totalorder %v1094, 1
      %vm1111 = vcmp.eq.s32.totalorder %v1095, 1
      %vm1112 = vcmp.eq.s32.totalorder %v1096, 1
      %vm1113 = vcmp.eq.s32.totalorder %v1097, 1
      %vm1114 = vcmp.eq.s32.totalorder %v1098, 1
      %vm1115 = vcmp.eq.s32.totalorder %v1099, 1
      %vm1116 = vcmp.eq.s32.totalorder %v1100, 1
      %vm1117 = vcmp.eq.s32.totalorder %v1101, 1
      %vm1118 = vcmp.eq.s32.totalorder %v1102, 1
      %v1119 = vsel %vm1103, %v1055, 0.0
      %v1120 = vsel %vm1104, %v1056, 0.0
      %v1121 = vsel %vm1105, %v1057, 0.0
      %v1122 = vsel %vm1106, %v1058, 0.0
      %v1123 = vsel %vm1107, %v1059, 0.0
      %v1124 = vsel %vm1108, %v1060, 0.0
      %v1125 = vsel %vm1109, %v1061, 0.0
      %v1126 = vsel %vm1110, %v1062, 0.0
      %v1127 = vsel %vm1111, %v1063, 0.0
      %v1128 = vsel %vm1112, %v1064, 0.0
      %v1129 = vsel %vm1113, %v1065, 0.0
      %v1130 = vsel %vm1114, %v1066, 0.0
      %v1131 = vsel %vm1115, %v1067, 0.0
      %v1132 = vsel %vm1116, %v1068, 0.0
      %v1133 = vsel %vm1117, %v1069, 0.0
      %v1134 = vsel %vm1118, %v1070, 0.0
      %v1135 = vpack.c.bf16 %v955, %v954
      %v1136 = vpack.c.bf16 %v957, %v956
      %v1137 = vpack.c.bf16 %v959, %v958
      %v1138 = vpack.c.bf16 %v961, %v960
      %v1139 = vpack.c.bf16 %v963, %v962
      %v1140 = vpack.c.bf16 %v965, %v964
      %v1141 = vpack.c.bf16 %v967, %v966
      %v1142 = vpack.c.bf16 %v969, %v968
      %v1143 = vpack.c.bf16 %v551, %v550
      %v1144 = vpack.c.bf16 %v553, %v552
      %v1145 = vpack.c.bf16 %v555, %v554
      %v1146 = vpack.c.bf16 %v557, %v556
      %v1147 = vpack.c.bf16 %v559, %v558
      %v1148 = vpack.c.bf16 %v561, %v560
      %v1149 = vpack.c.bf16 %v563, %v562
      %v1150 = vpack.c.bf16 %v565, %v564
      %v1151 = vpack.c.bf16 %v1120, %v1119
      %v1152 = vpack.c.bf16 %v1122, %v1121
      %v1153 = vpack.c.bf16 %v1124, %v1123
      %v1154 = vpack.c.bf16 %v1126, %v1125
      %v1155 = vpack.c.bf16 %v1128, %v1127
      %v1156 = vpack.c.bf16 %v1130, %v1129
      %v1157 = vpack.c.bf16 %v1132, %v1131
      %v1158 = vpack.c.bf16 %v1134, %v1133
      %v1159 = vld [vmem:[%s6] sm:$0xf]
      %v1160 = vld [vmem:[%s6 + $0x4] sm:$0xf]
      %v1161 = vld [vmem:[%s6 + $0x8] sm:$0xf]
      %v1162 = vld [vmem:[%s6 + $0xc] sm:$0xf]
      %v1163 = vld [vmem:[%s6 + $0x10] sm:$0xf]
      %v1164 = vld [vmem:[%s6 + $0x14] sm:$0xf]
      %v1165 = vld [vmem:[%s6 + $0x18] sm:$0xf]
      %v1166 = vld [vmem:[%s6 + $0x1c] sm:$0xf]
      %v1167 = vld [vmem:[%s6 + $0x20] sm:$0xf]
      %v1168 = vld [vmem:[%s6 + $0x24] sm:$0xf]
      %v1169 = vld [vmem:[%s6 + $0x28] sm:$0xf]
      %v1170 = vld [vmem:[%s6 + $0x2c] sm:$0xf]
      %v1171 = vld [vmem:[%s6 + $0x30] sm:$0xf]
      %v1172 = vld [vmem:[%s6 + $0x34] sm:$0xf]
      %v1173 = vld [vmem:[%s6 + $0x38] sm:$0xf]
      %v1174 = vld [vmem:[%s6 + $0x3c] sm:$0xf]
      %v1175 = vld [vmem:[%s6 + $0x40] sm:$0xf]
      %v1176 = vld [vmem:[%s6 + $0x44] sm:$0xf]
      %v1177 = vld [vmem:[%s6 + $0x48] sm:$0xf]
      %v1178 = vld [vmem:[%s6 + $0x4c] sm:$0xf]
      %v1179 = vld [vmem:[%s6 + $0x50] sm:$0xf]
      %v1180 = vld [vmem:[%s6 + $0x54] sm:$0xf]
      %v1181 = vld [vmem:[%s6 + $0x58] sm:$0xf]
      %v1182 = vld [vmem:[%s6 + $0x5c] sm:$0xf]
      %v1183 = vld [vmem:[%s6 + $0x60] sm:$0xf]
      %v1184 = vld [vmem:[%s6 + $0x64] sm:$0xf]
      %v1185 = vld [vmem:[%s6 + $0x68] sm:$0xf]
      %v1186 = vld [vmem:[%s6 + $0x6c] sm:$0xf]
      %v1187 = vld [vmem:[%s6 + $0x70] sm:$0xf]
      %v1188 = vld [vmem:[%s6 + $0x74] sm:$0xf]
      %v1189 = vld [vmem:[%s6 + $0x78] sm:$0xf]
      %v1190 = vld [vmem:[%s6 + $0x7c] sm:$0xf]
      %v1191 = vld [vmem:[%s6 + $0x80] sm:$0xf]
      %v1192 = vld [vmem:[%s6 + $0x84] sm:$0xf]
      %v1193 = vld [vmem:[%s6 + $0x88] sm:$0xf]
      %v1194 = vld [vmem:[%s6 + $0x8c] sm:$0xf]
      %v1195 = vld [vmem:[%s6 + $0x90] sm:$0xf]
      %v1196 = vld [vmem:[%s6 + $0x94] sm:$0xf]
      %v1197 = vld [vmem:[%s6 + $0x98] sm:$0xf]
      %v1198 = vld [vmem:[%s6 + $0x9c] sm:$0xf]
      %v1199 = vld [vmem:[%s6 + $0xa0] sm:$0xf]
      %v1200 = vld [vmem:[%s6 + $0xa4] sm:$0xf]
      %v1201 = vld [vmem:[%s6 + $0xa8] sm:$0xf]
      %v1202 = vld [vmem:[%s6 + $0xac] sm:$0xf]
      %v1203 = vld [vmem:[%s6 + $0xb0] sm:$0xf]
      %v1204 = vld [vmem:[%s6 + $0xb4] sm:$0xf]
      %v1205 = vld [vmem:[%s6 + $0xb8] sm:$0xf]
      %v1206 = vld [vmem:[%s6 + $0xbc] sm:$0xf]
      %v1255 = vunpack.c.l.b16 %v1159
      %v1256 = vunpack.c.l.b16 %v1160
      %v1257 = vunpack.c.l.b16 %v1161
      %v1258 = vunpack.c.l.b16 %v1162
      %v1259 = vunpack.c.l.b16 %v1163
      %v1260 = vunpack.c.l.b16 %v1164
      %v1261 = vunpack.c.l.b16 %v1165
      %v1262 = vunpack.c.l.b16 %v1166
      %v1263 = vunpack.c.l.b16 %v1167
      %v1264 = vunpack.c.l.b16 %v1168
      %v1265 = vunpack.c.l.b16 %v1169
      %v1266 = vunpack.c.l.b16 %v1170
      %v1267 = vunpack.c.l.b16 %v1171
      %v1268 = vunpack.c.l.b16 %v1172
      %v1269 = vunpack.c.l.b16 %v1173
      %v1270 = vunpack.c.l.b16 %v1174
      %v1271 = vunpack.c.l.b16 %v1175
      %v1272 = vunpack.c.l.b16 %v1176
      %v1273 = vunpack.c.l.b16 %v1177
      %v1274 = vunpack.c.l.b16 %v1178
      %v1275 = vunpack.c.l.b16 %v1179
      %v1276 = vunpack.c.l.b16 %v1180
      %v1277 = vunpack.c.l.b16 %v1181
      %v1278 = vunpack.c.l.b16 %v1182
      %v1279 = vunpack.c.l.b16 %v1183
      %v1280 = vunpack.c.l.b16 %v1184
      %v1281 = vunpack.c.l.b16 %v1185
      %v1282 = vunpack.c.l.b16 %v1186
      %v1283 = vunpack.c.l.b16 %v1187
      %v1284 = vunpack.c.l.b16 %v1188
      %v1285 = vunpack.c.l.b16 %v1189
      %v1286 = vunpack.c.l.b16 %v1190
      %v1287 = vunpack.c.l.b16 %v1191
      %v1288 = vunpack.c.l.b16 %v1192
      %v1289 = vunpack.c.l.b16 %v1193
      %v1290 = vunpack.c.l.b16 %v1194
      %v1291 = vunpack.c.l.b16 %v1195
      %v1292 = vunpack.c.l.b16 %v1196
      %v1293 = vunpack.c.l.b16 %v1197
      %v1294 = vunpack.c.l.b16 %v1198
      %v1295 = vunpack.c.l.b16 %v1199
      %v1296 = vunpack.c.l.b16 %v1200
      %v1297 = vunpack.c.l.b16 %v1201
      %v1298 = vunpack.c.l.b16 %v1202
      %v1299 = vunpack.c.l.b16 %v1203
      %v1300 = vunpack.c.l.b16 %v1204
      %v1301 = vunpack.c.l.b16 %v1205
      %v1302 = vunpack.c.l.b16 %v1206
      %v1303 = vpack.c.b16 %v1256, %v1255
      %v1304 = vpack.c.b16 %v1258, %v1257
      %v1305 = vpack.c.b16 %v1260, %v1259
      %v1306 = vpack.c.b16 %v1262, %v1261
      %v1307 = vpack.c.b16 %v1264, %v1263
      %v1308 = vpack.c.b16 %v1266, %v1265
      %v1309 = vpack.c.b16 %v1268, %v1267
      %v1310 = vpack.c.b16 %v1270, %v1269
      %v1311 = vpack.c.b16 %v1272, %v1271
      %v1312 = vpack.c.b16 %v1274, %v1273
      %v1313 = vpack.c.b16 %v1276, %v1275
      %v1314 = vpack.c.b16 %v1278, %v1277
      %v1315 = vpack.c.b16 %v1280, %v1279
      %v1316 = vpack.c.b16 %v1282, %v1281
      %v1317 = vpack.c.b16 %v1284, %v1283
      %v1318 = vpack.c.b16 %v1286, %v1285
      %v1319 = vpack.c.b16 %v1288, %v1287
      %v1320 = vpack.c.b16 %v1290, %v1289
      %v1321 = vpack.c.b16 %v1292, %v1291
      %v1322 = vpack.c.b16 %v1294, %v1293
      %v1323 = vpack.c.b16 %v1296, %v1295
      %v1324 = vpack.c.b16 %v1298, %v1297
      %v1325 = vpack.c.b16 %v1300, %v1299
      %v1326 = vpack.c.b16 %v1302, %v1301
      %1351 = vmatprep.subr.bf16.mxu0 0
      %1352 = vmatpush1.bf16.msra.mxu0 %v1303
      %1353 = vmatprep.subr.bf16.mxu0 0
      %1354 = vmatpush1.bf16.msra.mxu0 %v1304
      %1355 = vmatprep.subr.bf16.mxu0 0
      %1356 = vmatpush1.bf16.msra.mxu0 %v1305
      %1357 = vmatprep.subr.bf16.mxu0 0
      %1358 = vmatpush1.bf16.msra.mxu0 %v1306
      %1359 = vmatprep.subr.bf16.mxu0 0
      %1360 = vmatpush1.bf16.msra.mxu0 %v1307
      %1361 = vmatprep.subr.bf16.mxu0 0
      %1362 = vmatpush1.bf16.msra.mxu0 %v1308
      %1363 = vmatprep.subr.bf16.mxu0 0
      %1364 = vmatpush1.bf16.msra.mxu0 %v1309
      %1365 = vmatprep.subr.bf16.mxu0 0
      %1366 = vmatpush1.bf16.msra.mxu0 %v1310
      %1367 = vmatprep.subr.bf16.mxu0 0
      %1368 = vmatpush1.bf16.msra.mxu0 %v1311
      %1369 = vmatprep.subr.bf16.mxu0 0
      %1370 = vmatpush1.bf16.msra.mxu0 %v1312
      %1371 = vmatprep.subr.bf16.mxu0 0
      %1372 = vmatpush1.bf16.msra.mxu0 %v1313
      %1373 = vmatprep.subr.bf16.mxu0 0
      %1374 = vmatpush1.bf16.msra.mxu0 %v1314
      %1375 = vmatprep.subr.bf16.mxu0 0
      %1376 = vmatpush1.bf16.msra.mxu0 %v1315
      %1377 = vmatprep.subr.bf16.mxu0 0
      %1378 = vmatpush1.bf16.msra.mxu0 %v1316
      %1379 = vmatprep.subr.bf16.mxu0 0
      %1380 = vmatpush1.bf16.msra.mxu0 %v1317
      %1381 = vmatprep.subr.bf16.mxu0 0
      %1382 = vmatpush1.bf16.msra.mxu0 %v1318
      %1383 = vmatprep.mubr.bf16.mxu0 %v1143
      %1384 = vmatmul.mubr.bf16.gmra.mrb[0].mxu0 %v1135
      %v1385 = vpop.f32.mrb[0].mxu0
      %v1386 = vadd.f32 0.0, %v1385
      %v1387 = vpop.f32.mrb[0].mxu0
      %v1388 = vpop.f32.mrb[0].mxu0
      %v1389 = vadd.f32 0.0, %v1388
      %v1390 = vpop.f32.mrb[0].mxu0
      %1391 = vmatprep.mubr.bf16.mxu0 %v1144
      %1392 = vmatmul.mubr.bf16.gmra.mrb[0].mxu0 %v1136
      %v1393 = vpop.f32.mrb[0].mxu0
      %v1394 = vadd.f32 0.0, %v1393
      %v1395 = vpop.f32.mrb[0].mxu0
      %v1396 = vpop.f32.mrb[0].mxu0
      %v1397 = vadd.f32 0.0, %v1396
      %v1398 = vpop.f32.mrb[0].mxu0
      %1399 = vmatprep.mubr.bf16.mxu0 %v1145
      %1400 = vmatmul.mubr.bf16.gmra.mrb[0].mxu0 %v1137
      %v1401 = vpop.f32.mrb[0].mxu0
      %v1402 = vadd.f32 0.0, %v1401
      %v1403 = vpop.f32.mrb[0].mxu0
      %v1404 = vpop.f32.mrb[0].mxu0
      %v1405 = vadd.f32 0.0, %v1404
      %v1406 = vpop.f32.mrb[0].mxu0
      %1407 = vmatprep.mubr.bf16.mxu0 %v1146
      %1408 = vmatmul.mubr.bf16.gmra.mrb[0].mxu0 %v1138
      %v1409 = vpop.f32.mrb[0].mxu0
      %v1410 = vadd.f32 0.0, %v1409
      %v1411 = vpop.f32.mrb[0].mxu0
      %v1412 = vpop.f32.mrb[0].mxu0
      %v1413 = vadd.f32 0.0, %v1412
      %v1414 = vpop.f32.mrb[0].mxu0
      %1415 = vmatprep.mubr.bf16.mxu0 %v1147
      %1416 = vmatmul.mubr.bf16.gmra.mrb[0].mxu0 %v1139
      %v1417 = vpop.f32.mrb[0].mxu0
      %v1418 = vadd.f32 0.0, %v1417
      %v1419 = vpop.f32.mrb[0].mxu0
      %v1420 = vpop.f32.mrb[0].mxu0
      %v1421 = vadd.f32 0.0, %v1420
      %v1422 = vpop.f32.mrb[0].mxu0
      %1423 = vmatprep.mubr.bf16.mxu0 %v1148
      %1424 = vmatmul.mubr.bf16.gmra.mrb[0].mxu0 %v1140
      %v1425 = vpop.f32.mrb[0].mxu0
      %v1426 = vadd.f32 0.0, %v1425
      %v1427 = vpop.f32.mrb[0].mxu0
      %v1428 = vpop.f32.mrb[0].mxu0
      %v1429 = vadd.f32 0.0, %v1428
      %v1430 = vpop.f32.mrb[0].mxu0
      %1431 = vmatprep.mubr.bf16.mxu0 %v1149
      %1432 = vmatmul.mubr.bf16.gmra.mrb[0].mxu0 %v1141
      %v1433 = vpop.f32.mrb[0].mxu0
      %v1434 = vadd.f32 0.0, %v1433
      %v1435 = vpop.f32.mrb[0].mxu0
      %v1436 = vpop.f32.mrb[0].mxu0
      %v1437 = vadd.f32 0.0, %v1436
      %v1438 = vpop.f32.mrb[0].mxu0
      %1439 = vmatprep.mubr.bf16.mxu0 %v1150
      %1440 = vmatmul.mubr.bf16.gmra.mrb[0].mxu0 %v1142
      %v1441 = vpop.f32.mrb[0].mxu0
      %v1442 = vadd.f32 0.0, %v1441
      %v1443 = vpop.f32.mrb[0].mxu0
      %v1444 = vpop.f32.mrb[0].mxu0
      %v1445 = vadd.f32 0.0, %v1444
      %v1446 = vpop.f32.mrb[0].mxu0
      %1447 = vdwg.mxu0
      %1448 = vmatprep.subr.bf16.mxu0 0
      %1449 = vmatpush1.bf16.msra.mxu0 %v1319
      %1450 = vmatprep.subr.bf16.mxu0 0
      %1451 = vmatpush1.bf16.msra.mxu0 %v1320
      %1452 = vmatprep.subr.bf16.mxu0 0
      %1453 = vmatpush1.bf16.msra.mxu0 %v1321
      %1454 = vmatprep.subr.bf16.mxu0 0
      %1455 = vmatpush1.bf16.msra.mxu0 %v1322
      %1456 = vmatprep.subr.bf16.mxu0 0
      %1457 = vmatpush1.bf16.msra.mxu0 %v1323
      %1458 = vmatprep.subr.bf16.mxu0 0
      %1459 = vmatpush1.bf16.msra.mxu0 %v1324
      %1460 = vmatprep.subr.bf16.mxu0 0
      %1461 = vmatpush1.bf16.msra.mxu0 %v1325
      %1462 = vmatprep.subr.bf16.mxu0 0
      %1463 = vmatpush1.bf16.msra.mxu0 %v1326
      %1464 = vmatprep.subr.bf16.mxu0 0
      %1465 = vmatpush1.bf16.msra.mxu0 0
      %1466 = vmatprep.subr.bf16.mxu0 0
      %1467 = vmatpush1.bf16.msra.mxu0 0
      %1468 = vmatprep.subr.bf16.mxu0 0
      %1469 = vmatpush1.bf16.msra.mxu0 0
      %1470 = vmatprep.subr.bf16.mxu0 0
      %1471 = vmatpush1.bf16.msra.mxu0 0
      %1472 = vmatprep.subr.bf16.mxu0 0
      %1473 = vmatpush1.bf16.msra.mxu0 0
      %1474 = vmatprep.subr.bf16.mxu0 0
      %1475 = vmatpush1.bf16.msra.mxu0 0
      %1476 = vmatprep.subr.bf16.mxu0 0
      %1477 = vmatpush1.bf16.msra.mxu0 0
      %1478 = vmatprep.subr.bf16.mxu0 0
      %1479 = vmatpush1.bf16.msra.mxu0 0
      %1480 = vmatprep.mubr.bf16.mxu0 0
      %1481 = vmatmul.mubr.bf16.gmra.mrb[0].mxu0 %v1151
      %v1482 = vpop.f32.mrb[0].mxu0
      %v1483 = vadd.f32 %v1386, %v1482
      %v1484 = vpop.f32.mrb[0].mxu0
      %v1485 = vpop.f32.mrb[0].mxu0
      %v1486 = vadd.f32 %v1389, %v1485
      %v1487 = vpop.f32.mrb[0].mxu0
      %1488 = vmatprep.mubr.bf16.mxu0 0
      %1489 = vmatmul.mubr.bf16.gmra.mrb[0].mxu0 %v1152
      %v1490 = vpop.f32.mrb[0].mxu0
      %v1491 = vadd.f32 %v1394, %v1490
      %v1492 = vpop.f32.mrb[0].mxu0
      %v1493 = vpop.f32.mrb[0].mxu0
      %v1494 = vadd.f32 %v1397, %v1493
      %v1495 = vpop.f32.mrb[0].mxu0
      %1496 = vmatprep.mubr.bf16.mxu0 0
      %1497 = vmatmul.mubr.bf16.gmra.mrb[0].mxu0 %v1153
      %v1498 = vpop.f32.mrb[0].mxu0
      %v1499 = vadd.f32 %v1402, %v1498
      %v1500 = vpop.f32.mrb[0].mxu0
      %v1501 = vpop.f32.mrb[0].mxu0
      %v1502 = vadd.f32 %v1405, %v1501
      %v1503 = vpop.f32.mrb[0].mxu0
      %1504 = vmatprep.mubr.bf16.mxu0 0
      %1505 = vmatmul.mubr.bf16.gmra.mrb[0].mxu0 %v1154
      %v1506 = vpop.f32.mrb[0].mxu0
      %v1507 = vadd.f32 %v1410, %v1506
      %v1508 = vpop.f32.mrb[0].mxu0
      %v1509 = vpop.f32.mrb[0].mxu0
      %v1510 = vadd.f32 %v1413, %v1509
      %v1511 = vpop.f32.mrb[0].mxu0
      %1512 = vmatprep.mubr.bf16.mxu0 0
      %1513 = vmatmul.mubr.bf16.gmra.mrb[0].mxu0 %v1155
      %v1514 = vpop.f32.mrb[0].mxu0
      %v1515 = vadd.f32 %v1418, %v1514
      %v1516 = vpop.f32.mrb[0].mxu0
      %v1517 = vpop.f32.mrb[0].mxu0
      %v1518 = vadd.f32 %v1421, %v1517
      %v1519 = vpop.f32.mrb[0].mxu0
      %1520 = vmatprep.mubr.bf16.mxu0 0
      %1521 = vmatmul.mubr.bf16.gmra.mrb[0].mxu0 %v1156
      %v1522 = vpop.f32.mrb[0].mxu0
      %v1523 = vadd.f32 %v1426, %v1522
      %v1524 = vpop.f32.mrb[0].mxu0
      %v1525 = vpop.f32.mrb[0].mxu0
      %v1526 = vadd.f32 %v1429, %v1525
      %v1527 = vpop.f32.mrb[0].mxu0
      %1528 = vmatprep.mubr.bf16.mxu0 0
      %1529 = vmatmul.mubr.bf16.gmra.mrb[0].mxu0 %v1157
      %v1530 = vpop.f32.mrb[0].mxu0
      %v1531 = vadd.f32 %v1434, %v1530
      %v1532 = vpop.f32.mrb[0].mxu0
      %v1533 = vpop.f32.mrb[0].mxu0
      %v1534 = vadd.f32 %v1437, %v1533
      %v1535 = vpop.f32.mrb[0].mxu0
      %1536 = vmatprep.mubr.bf16.mxu0 0
      %1537 = vmatmul.mubr.bf16.gmra.mrb[0].mxu0 %v1158
      %v1538 = vpop.f32.mrb[0].mxu0
      %v1539 = vadd.f32 %v1442, %v1538
      %v1540 = vpop.f32.mrb[0].mxu0
      %v1541 = vpop.f32.mrb[0].mxu0
      %v1542 = vadd.f32 %v1445, %v1541
      %v1543 = vpop.f32.mrb[0].mxu0
      %1544 = vdwg.mxu0
      %v1545 = vpack.c.bf16 %v1486, %v1483
      %v1546 = vpack.c.bf16 %v1494, %v1491
      %v1547 = vpack.c.bf16 %v1502, %v1499
      %v1548 = vpack.c.bf16 %v1510, %v1507
      %v1549 = vpack.c.bf16 %v1518, %v1515
      %v1550 = vpack.c.bf16 %v1526, %v1523
      %v1551 = vpack.c.bf16 %v1534, %v1531
      %v1552 = vpack.c.bf16 %v1542, %v1539
      %v1561 = vunpack.c.l.b16 %v1545
      %v1562 = vunpack.c.h.b16 %v1545
      %v1563 = vunpack.c.l.b16 %v1546
      %v1564 = vunpack.c.h.b16 %v1546
      %v1565 = vunpack.c.l.b16 %v1547
      %v1566 = vunpack.c.h.b16 %v1547
      %v1567 = vunpack.c.l.b16 %v1548
      %v1568 = vunpack.c.h.b16 %v1548
      %v1569 = vunpack.c.l.b16 %v1549
      %v1570 = vunpack.c.h.b16 %v1549
      %v1571 = vunpack.c.l.b16 %v1550
      %v1572 = vunpack.c.h.b16 %v1550
      %v1573 = vunpack.c.l.b16 %v1551
      %v1574 = vunpack.c.h.b16 %v1551
      %v1575 = vunpack.c.l.b16 %v1552
      %v1576 = vunpack.c.h.b16 %v1552
      %v1577 = vpack.c.b16 %v1561, %v1561
      %v1578 = vpack.c.b16 %v1562, %v1562
      %v1579 = vpack.c.b16 %v1563, %v1563
      %v1580 = vpack.c.b16 %v1564, %v1564
      %v1581 = vpack.c.b16 %v1565, %v1565
      %v1582 = vpack.c.b16 %v1566, %v1566
      %v1583 = vpack.c.b16 %v1567, %v1567
      %v1584 = vpack.c.b16 %v1568, %v1568
      %v1585 = vpack.c.b16 %v1569, %v1569
      %v1586 = vpack.c.b16 %v1570, %v1570
      %v1587 = vpack.c.b16 %v1571, %v1571
      %v1588 = vpack.c.b16 %v1572, %v1572
      %v1589 = vpack.c.b16 %v1573, %v1573
      %v1590 = vpack.c.b16 %v1574, %v1574
      %v1591 = vpack.c.b16 %v1575, %v1575
      %v1592 = vpack.c.b16 %v1576, %v1576
      %1609 = vst [vmem:[%s414] sm:$0xf] %v1577
      %1610 = vst [vmem:[%s414 + $0x4] sm:$0xf] %v1578
      %1611 = vst [vmem:[%s414 + $0x8] sm:$0xf] %v1579
      %1612 = vst [vmem:[%s414 + $0xc] sm:$0xf] %v1580
      %1613 = vst [vmem:[%s414 + $0x10] sm:$0xf] %v1581
      %1614 = vst [vmem:[%s414 + $0x14] sm:$0xf] %v1582
      %1615 = vst [vmem:[%s414 + $0x18] sm:$0xf] %v1583
      %1616 = vst [vmem:[%s414 + $0x1c] sm:$0xf] %v1584
      %1617 = vst [vmem:[%s414 + $0x20] sm:$0xf] %v1585
      %1618 = vst [vmem:[%s414 + $0x24] sm:$0xf] %v1586
      %1619 = vst [vmem:[%s414 + $0x28] sm:$0xf] %v1587
      %1620 = vst [vmem:[%s414 + $0x2c] sm:$0xf] %v1588
      %1621 = vst [vmem:[%s414 + $0x30] sm:$0xf] %v1589
      %1622 = vst [vmem:[%s414 + $0x34] sm:$0xf] %v1590
      %1623 = vst [vmem:[%s414 + $0x38] sm:$0xf] %v1591
      %1624 = vst [vmem:[%s414 + $0x3c] sm:$0xf] %v1592
      %v1625 = vunpack.c.l.bf16 %v1545
      %v1626 = vunpack.c.h.bf16 %v1545
      %v1627 = vunpack.c.l.bf16 %v1546
      %v1628 = vunpack.c.h.bf16 %v1546
      %v1629 = vunpack.c.l.bf16 %v1547
      %v1630 = vunpack.c.h.bf16 %v1547
      %v1631 = vunpack.c.l.bf16 %v1548
      %v1632 = vunpack.c.h.bf16 %v1548
      %v1633 = vunpack.c.l.bf16 %v1549
      %v1634 = vunpack.c.h.bf16 %v1549
      %v1635 = vunpack.c.l.bf16 %v1550
      %v1636 = vunpack.c.h.bf16 %v1550
      %v1637 = vunpack.c.l.bf16 %v1551
      %v1638 = vunpack.c.h.bf16 %v1551
      %v1639 = vunpack.c.l.bf16 %v1552
      %v1640 = vunpack.c.h.bf16 %v1552
      %v1641 = vadd.f32 %v1625, %v1626
      %v1642 = vadd.f32 %v1641, %v1627
      %v1643 = vadd.f32 %v1642, %v1628
      %v1644 = vadd.f32 %v1643, %v1629
      %v1645 = vadd.f32 %v1644, %v1630
      %v1646 = vadd.f32 %v1645, %v1631
      %v1647 = vadd.f32 %v1646, %v1632
      %v1648 = vadd.f32 %v1647, %v1633
      %v1649 = vadd.f32 %v1648, %v1634
      %v1650 = vadd.f32 %v1649, %v1635
      %v1651 = vadd.f32 %v1650, %v1636
      %v1652 = vadd.f32 %v1651, %v1637
      %v1653 = vadd.f32 %v1652, %v1638
      %v1654 = vadd.f32 %v1653, %v1639
      %v1655 = vadd.f32 %v1654, %v1640
      %v1656 = vrot.slane %v1655, 4
      %v1657 = vadd.f32 %v1655, %v1656
      %v1658 = vrot.slane %v1657, 2
      %v1659 = vadd.f32 %v1657, %v1658
      %v1660 = vrot.slane %v1659, 1
      %v1661 = vadd.f32 %v1659, %v1660
      %v1662 = vmul.f32 %v1625, %v1625
      %v1663 = vmul.f32 %v1626, %v1626
      %v1664 = vmul.f32 %v1627, %v1627
      %v1665 = vmul.f32 %v1628, %v1628
      %v1666 = vmul.f32 %v1629, %v1629
      %v1667 = vmul.f32 %v1630, %v1630
      %v1668 = vmul.f32 %v1631, %v1631
      %v1669 = vmul.f32 %v1632, %v1632
      %v1670 = vmul.f32 %v1633, %v1633
      %v1671 = vmul.f32 %v1634, %v1634
      %v1672 = vmul.f32 %v1635, %v1635
      %v1673 = vmul.f32 %v1636, %v1636
      %v1674 = vmul.f32 %v1637, %v1637
      %v1675 = vmul.f32 %v1638, %v1638
      %v1676 = vmul.f32 %v1639, %v1639
      %v1677 = vmul.f32 %v1640, %v1640
      %v1678 = vadd.f32 %v1662, %v1663
      %v1679 = vadd.f32 %v1678, %v1664
      %v1680 = vadd.f32 %v1679, %v1665
      %v1681 = vadd.f32 %v1680, %v1666
      %v1682 = vadd.f32 %v1681, %v1667
      %v1683 = vadd.f32 %v1682, %v1668
      %v1684 = vadd.f32 %v1683, %v1669
      %v1685 = vadd.f32 %v1684, %v1670
      %v1686 = vadd.f32 %v1685, %v1671
      %v1687 = vadd.f32 %v1686, %v1672
      %v1688 = vadd.f32 %v1687, %v1673
      %v1689 = vadd.f32 %v1688, %v1674
      %v1690 = vadd.f32 %v1689, %v1675
      %v1691 = vadd.f32 %v1690, %v1676
      %v1692 = vadd.f32 %v1691, %v1677
      %v1693 = vrot.slane %v1692, 4
      %v1694 = vadd.f32 %v1692, %v1693
      %v1695 = vrot.slane %v1694, 2
      %v1696 = vadd.f32 %v1694, %v1695
      %v1697 = vrot.slane %v1696, 1
      %v1698 = vadd.f32 %v1696, %v1697
      %vm1699 = vcmask 1040384
      %v1700 = vsel %vm1699, %v1661, %v1698
      %1701 = vst [vmem:[%s419] sm:$0x3] %v1700
      %s1702 = smul.u32 16, %s20
      %p1703 = scmp.lt.s32.totalorder %s1702, 31
      %s1704 = scalar_select %p1703, %s1702, 31
      %s1705 = smul.addr %s1704, 4
      %s1706 = scalar_lea.vmem %s7, %s1705
      %p1707 = scmp.lt.s32.totalorder %s20, 1
      %s1708 = scalar_select %p1707, %s20, 1
      %s1709 = smul.addr %s1708, 2
      %s1710 = scalar_lea.vmem %s8, %s1709
      // Predicated region
      $region49: #{bottleneck_forward.5} parent=47 // pred_check
        %p1711 = pneg %p216
      $region50: #{bottleneck_forward.5} parent=47 // pred_check_branch
        %1713 = sbr.rel (%p1711) target = $region52
      $region51: #{bottleneck_forward.5} parent=47 // pred_region
        %s1714 = smul.u32 16, %s20
      $region52: #{bottleneck_forward.5} parent=47 // pred_fallthru
        _
      // Predicated region
      $region53: #{bottleneck_forward.5} parent=47 // pred_check
        %p1715 = pneg %p242
      $region54: #{bottleneck_forward.5} parent=47 // pred_check_branch
        %1717 = sbr.rel (%p1715) target = $region56
      $region55: #{bottleneck_forward.5} parent=47 // pred_region
        _
      $region56: #{bottleneck_forward.5} parent=47 // pred_fallthru
        _
    $region48: #{bottleneck_forward.5} parent=5 // pred_fallthru
      _
    %p1718 = scmp.le.s32.totalorder 2, %s15
    // Predicated region
    $region57: #{bottleneck_forward.5} parent=5 // pred_check
      %p1719 = pneg %p1718
    $region58: #{bottleneck_forward.5} parent=5 // pred_check_branch
      %1721 = sbr.rel (%p1719) target = $region60
    $region59: #{bottleneck_forward.5} parent=5 // pred_region
      %s1722 = ssub.s32 %s15, 2
      // Predicated region
      $region61: #{bottleneck_forward.5} parent=59 // pred_check
        %p1723 = pneg %p222
      $region62: #{bottleneck_forward.5} parent=59 // pred_check_branch
        %1725 = sbr.rel (%p1723) target = $region64
      $region63: #{bottleneck_forward.5} parent=59 // pred_region
        %s1726 = smul.u32 16, %s21
        %p1727 = scmp.lt.s32.totalorder %s1726, 31
        %s1728 = scalar_select %p1727, %s1726, 31
        %s1729 = smul.addr %s1728, 4
        %s1730 = scalar_lea.vmem %s7, %s1729
      $region64: #{bottleneck_forward.5} parent=59 // pred_fallthru
        _
      // Predicated region
      $region65: #{bottleneck_forward.5} parent=59 // pred_check
        %p1731 = pneg %p248
      $region66: #{bottleneck_forward.5} parent=59 // pred_check_branch
        %1733 = sbr.rel (%p1731) target = $region68
      $region67: #{bottleneck_forward.5} parent=59 // pred_region
        %p1734 = scmp.lt.s32.totalorder %s21, 1
        %s1735 = scalar_select %p1734, %s21, 1
        %s1736 = smul.addr %s1735, 2
        %s1737 = scalar_lea.vmem %s8, %s1736
      $region68: #{bottleneck_forward.5} parent=59 // pred_fallthru
        _
    $region60: #{bottleneck_forward.5} parent=5 // pred_fallthru
      _
  $region6: #{bottleneck_forward.5} parent=0 // loop_footer
    %s19 = sadd.s32 1, %s15
  $region7: #{bottleneck_forward.5} parent=0 // loop_footer_branch
    %14 = sbr.rel target = $region3
  $region8: #{bottleneck_forward.5} parent=0 // loop_exit
    _

</llo_original>
